<compile_context>
chip_gen: v5e
topology: v5e:2x2
jax: 0.10.0
libtpu: 0.0.40
codegen_flags: <defaults>
</compile_context>

<pallas_src>
import jax
import jax.numpy as jnp
from jax import lax
from jax.experimental import pallas as pl
from jax.experimental.pallas import tpu as pltpu


KP = 128  # class dimension (K=5) padded to one full lane width -> lane-dense outputs


def _leaky(v):
    return jnp.where(v > 0, v, 0.2 * v)


def _l2norm(m, eps=1e-12):
    nrm = jnp.sqrt(jnp.sum(m * m, axis=-1, keepdims=True))
    return m / jnp.maximum(nrm, eps)


# ---------------------------------------------------------------------------
# Kernel 1: pairwise cosine-similarity gram for both (raw, crop) branches.
# ---------------------------------------------------------------------------
def pairwise_similarity(emb):
    """emb: (2, B, N, C) -> (2, B, N, N) cosine gram with >0.999 entries zeroed."""
    two, B, N, C = emb.shape

    def kernel(e_ref, o_ref):
        for b in range(B):                                  # B is tiny -> static unroll
            en = _l2norm(e_ref[0, b])                       # (N, C)
            g = lax.dot_general(en, en, (((1,), (1,)), ((), ())),
                                preferred_element_type=jnp.float32)
            o_ref[0, b] = jnp.where(g > 0.999, 0.0, g)

    return pl.pallas_call(
        kernel,
        out_shape=jax.ShapeDtypeStruct((two, B, N, N), jnp.float32),
        grid=(two,),
        in_specs=[pl.BlockSpec((1, B, N, C), lambda i: (i, 0, 0, 0))],
        out_specs=pl.BlockSpec((1, B, N, N), lambda i: (i, 0, 0, 0)),
        compiler_params=pltpu.CompilerParams(dimension_semantics=("parallel",)),
    )(emb.astype(jnp.float32))


# ---------------------------------------------------------------------------
# Kernel 2: fully fused GCN + prototype/cosine head + semantic logits + loss.
# ---------------------------------------------------------------------------
def fused_gcn_head(emb, adj, ytd, sw_pad,
                   wadj, wsw_T, bsw, wdw_T, bdw, tw_T, tb, K):
    """
    emb:    (2, B, N, C)  node embeddings (raw branch 0, crop branch 1)
    adj:    (2, B, N, N)  binary top-k similarity graph
    ytd:    (B, N, KP)    one-hot labels / class-count, node- and lane-padded
    sw_pad: (B, N, C)     word vectors, node-padded
    Returns (sim, logits, loss_slab):
      sim    (2, B, N, KP)  cosine(prototype_k, z_n)        -> use rows >= num_train
      logits (2, B, N, KP)  z @ support_vec_t^T             -> use cols < K
      loss   (2, 8, 128)    orthogonality loss broadcast    -> use [0, 0, 0]
    """
    two, B, N, C = emb.shape

    def kernel(emb_ref, adj_ref, ytd_ref, sw_ref,
               wadj_ref, wswT_ref, bsw_ref, wdwT_ref, bdw_ref, twT_ref, tb_ref,
               sim_ref, logit_ref, loss_ref):
        # row-validity mask for padded class rows, and off-diagonal mask for the loss
        valid = (lax.broadcasted_iota(jnp.int32, (KP, C), 0) < K).astype(jnp.float32)
        rr = lax.broadcasted_iota(jnp.int32, (KP, KP), 0)
        cc = lax.broadcasted_iota(jnp.int32, (KP, KP), 1)
        offdiag = (rr != cc).astype(jnp.float32)

        loss_acc = jnp.float32(0.0)
        for b in range(B):                                   # static unroll, B = 2
            ytd_b = ytd_ref[b]                               # (N, KP)

            # -- semantic support prototypes (shared by both branches) ------
            support = lax.dot_general(ytd_b, sw_ref[b], (((0,), (0,)), ((), ())),
                                      preferred_element_type=jnp.float32)   # (KP, C)
            sv_t = jnp.maximum(
                jnp.dot(support, twT_ref[...],
                        preferred_element_type=jnp.float32) + tb_ref[...], 0.0) * valid
            support_t = 0.2 * sv_t + 0.8 * support                          # (KP, C)

            # -- MaximizeDistanceLossWithRegularization ---------------------
            en = _l2norm(sv_t)
            dp = lax.dot_general(en, en, (((1,), (1,)), ((), ())),
                                 preferred_element_type=jnp.float32) * offdiag
            loss_acc = loss_acc + jnp.sum(dp * dp)

            # -- GraphConvolution -------------------------------------------
            X = emb_ref[0, b]                                # (N, C)
            A = adj_ref[0, b]                                # (N, N)

            # static_adj: Conv1d(N, N, 1, bias=False) over the node axis
            h1 = _leaky(jnp.dot(wadj_ref[...], X, preferred_element_type=jnp.float32))
            # static_weight: Conv1d(C, C, 1) + bias over the feature axis
            out_static = _leaky(jnp.dot(h1, wswT_ref[...],
                                        preferred_element_type=jnp.float32) + bsw_ref[...])
            h = X + out_static                               # residual

            # adjacency normalisation + propagation.  torch computes
            #   A_norm[i,j] = A[i,j] * 0.5 / (sum_j A[i,j] + 1e-6) + 0.8*I
            #   out[c,j]    = sum_i x[c,i] * A_norm[i,j]
            # node-major:   out[j,c] = sum_i A[i,j]*r_i*h[i,c] + 0.8*h[j,c]
            rowsum = jnp.sum(A, axis=1, keepdims=True)                       # (N, 1)
            r = 0.5 * pl.reciprocal(rowsum + 1e-6, approx=True)
            prop = lax.dot_general(A, r * h, (((0,), (0,)), ((), ())),
                                   preferred_element_type=jnp.float32)       # (N, C)
            y = _leaky(prop + 0.8 * h)                       # identity folded algebraically
            # dynamic_weight: Conv1d(C, C, 1) + bias
            z = _leaky(jnp.dot(y, wdwT_ref[...],
                               preferred_element_type=jnp.float32) + bdw_ref[...])

            # -- class prototypes + cosine similarity as one small matmul ---
            proto = lax.dot_general(ytd_b, z, (((0,), (0,)), ((), ())),
                                    preferred_element_type=jnp.float32)      # (KP, C)
            sim = lax.dot_general(_l2norm(z), _l2norm(proto), (((1,), (1,)), ((), ())),
                                  preferred_element_type=jnp.float32)        # (N, KP)
            sim_ref[0, b] = sim

            # -- output logits against the mixed semantic support vectors ---
            logit_ref[0, b] = lax.dot_general(z, support_t, (((1,), (1,)), ((), ())),
                                              preferred_element_type=jnp.float32)

        loss_ref[0] = jnp.full((8, 128), loss_acc, dtype=jnp.float32)

    out_shape = (
        jax.ShapeDtypeStruct((two, B, N, KP), jnp.float32),
        jax.ShapeDtypeStruct((two, B, N, KP), jnp.float32),
        jax.ShapeDtypeStruct((two, 8, 128), jnp.float32),
    )
    in_specs = [
        pl.BlockSpec((1, B, N, C), lambda i: (i, 0, 0, 0)),   # emb (per branch)
        pl.BlockSpec((1, B, N, N), lambda i: (i, 0, 0, 0)),   # adjacency (per branch)
        pl.BlockSpec((B, N, KP), lambda i: (0, 0, 0)),        # ytd (shared)
        pl.BlockSpec((B, N, C), lambda i: (0, 0, 0)),         # word vectors (shared)
        pl.BlockSpec((N, N), lambda i: (0, 0)),               # static_adj weight
        pl.BlockSpec((C, C), lambda i: (0, 0)),               # static_weight W^T
        pl.BlockSpec((1, C), lambda i: (0, 0)),               # static_weight bias
        pl.BlockSpec((C, C), lambda i: (0, 0)),               # dynamic_weight W^T
        pl.BlockSpec((1, C), lambda i: (0, 0)),               # dynamic_weight bias
        pl.BlockSpec((C, C), lambda i: (0, 0)),               # transform Linear W^T (BN folded)
        pl.BlockSpec((1, C), lambda i: (0, 0)),               # transform bias (BN folded)
    ]
    out_specs = (
        pl.BlockSpec((1, B, N, KP), lambda i: (i, 0, 0, 0)),
        pl.BlockSpec((1, B, N, KP), lambda i: (i, 0, 0, 0)),
        pl.BlockSpec((1, 8, 128), lambda i: (i, 0, 0)),
    )
    return pl.pallas_call(
        kernel,
        out_shape=out_shape,
        grid=(two,),
        in_specs=in_specs,
        out_specs=out_specs,
        compiler_params=pltpu.CompilerParams(dimension_semantics=("parallel",)),
    )(emb.astype(jnp.float32), adj.astype(jnp.float32), ytd, sw_pad,
      wadj, wsw_T, bsw, wdw_T, bdw, tw_T, tb)


# ---------------------------------------------------------------------------
# Model forward (eval-mode) built from the two kernels above
# ---------------------------------------------------------------------------
def init_params(key, C, N):
    ks = jax.random.split(key, 7)
    s = 0.1
    return dict(
        wadj=s * jax.random.normal(ks[0], (N, N), jnp.float32),   # static_adj Conv1d(N,N,1)
        wsw_T=s * jax.random.normal(ks[1], (C, C), jnp.float32),  # static_weight Conv1d(C,C,1)^T
        bsw=s * jax.random.normal(ks[2], (1, C), jnp.float32),
        wdw_T=s * jax.random.normal(ks[3], (C, C), jnp.float32),  # dynamic_weight Conv1d(C,C,1)^T
        bdw=s * jax.random.normal(ks[4], (1, C), jnp.float32),
        tw_T=s * jax.random.normal(ks[5], (C, C), jnp.float32),   # transform Linear(C,C)^T
        tb=s * jax.random.normal(ks[6], (1, C), jnp.float32),
    )


def model_forward(ftrain, ftest, ftrain_crop, ftest_crop, ytrain, s_wordvec, params):
    """Eval-mode forward of `Model` starting from pooled backbone features.

    ftrain/ftrain_crop: (B, num_train, C)   ftest/ftest_crop: (B, num_test, C)
    ytrain: (B, num_train, K) one-hot       s_wordvec: (B, num_train, C)
    Returns (similar1, similar2, outputs1, outputs2, orth_loss).
    """
    B, num_train, C = ftrain.shape
    num_test = ftest.shape[1]
    K = ytrain.shape[2]
    N = num_train + num_test
    topk = int(8 + num_train / 5)

    # label-equality block (small_tensor)
    eq = jnp.all(ytrain[:, :, None, :] == ytrain[:, None, :, :], axis=3)
    eyemask = jnp.eye(num_train, dtype=bool)[None]
    small = (eq & ~eyemask).astype(jnp.float32)                    # (B, NT, NT)

    # stack raw & crop branches: (2, B, N, C)
    emb = jnp.stack([jnp.concatenate([ftrain, ftest], axis=1),
                     jnp.concatenate([ftrain_crop, ftest_crop], axis=1)], axis=0)

    # similarity graph: fused gram kernel + top-k scatter (glue JAX)
    sim = pairwise_similarity(emb)                                 # (2, B, N, N)
    _, idx = lax.top_k(sim, topk)
    sim_bin = jnp.sum(jax.nn.one_hot(idx, N, dtype=jnp.float32), axis=3)
    sim_bin = sim_bin.at[:, :, :num_train, :num_train].set(
        jnp.broadcast_to(small[None], (2, B, num_train, num_train)))

    # count-normalised one-hot labels, node- and lane-padded; padded word vectors
    cnt = jnp.sum(ytrain, axis=1)                                  # (B, K)
    ytd = jnp.zeros((B, N, KP), jnp.float32).at[:, :num_train, :K].set(
        ytrain / cnt[:, None, :])
    sw_pad = jnp.zeros((B, N, C), jnp.float32).at[:, :num_train, :].set(
        s_wordvec.astype(jnp.float32))

    # fold eval-mode BatchNorm1d scale into the transform Linear weights
    bn_scale = 1.0 / jnp.sqrt(1.0 + 1e-5)
    tw_T_f = params['tw_T'] * bn_scale
    tb_f = params['tb'] * bn_scale

    sim_out, logit_out, loss_out = fused_gcn_head(
        emb, sim_bin, ytd, sw_pad,
        params['wadj'], params['wsw_T'], params['bsw'],
        params['wdw_T'], params['bdw'], tw_T_f, tb_f, K)

    similar1 = sim_out[0, :, num_train:, :K]                       # (B, num_test, K)
    similar2 = sim_out[1, :, num_train:, :K]
    outputs1 = logit_out[0, :, :, :K]                              # (B, N, K)
    outputs2 = logit_out[1, :, :, :K]
    orth_loss = loss_out[0, 0, 0]
    return similar1, similar2, outputs1, outputs2, orth_loss


# ---------------------------------------------------------------------------
# Driver
# ---------------------------------------------------------------------------
if __name__ == "__main__":
    key = jax.random.PRNGKey(0)
    B, num_train, num_test, C, K = 2, 10, 6, 64, 5
    N = num_train + num_test

    k = jax.random.split(key, 8)
    ftrain = jax.random.normal(k[0], (B, num_train, C), jnp.float32)
    ftest = jax.random.normal(k[1], (B, num_test, C), jnp.float32)
    ftrain_crop = jax.random.normal(k[2], (B, num_train, C), jnp.float32)
    ftest_crop = jax.random.normal(k[3], (B, num_test, C), jnp.float32)
    s_wordvec = jax.random.normal(k[4], (B, num_train, C), jnp.float32)

    labels = jnp.tile(jnp.arange(K), num_train // K)               # 2 shots / class
    ytrain = jnp.broadcast_to(jax.nn.one_hot(labels, K, dtype=jnp.float32)[None],
                              (B, num_train, K))

    params = init_params(k[5], C, N)

    fwd = jax.jit(model_forward)
    similar1, similar2, outputs1, outputs2, orth_loss = fwd(
        ftrain, ftest, ftrain_crop, ftest_crop, ytrain, s_wordvec, params)

    jax.block_until_ready((similar1, similar2, outputs1, outputs2, orth_loss))

    assert similar1.shape == (B, num_test, K)
    assert similar2.shape == (B, num_test, K)
    assert outputs1.shape == (B, N, K)
    assert outputs2.shape == (B, N, K)
    assert orth_loss.shape == ()
    print("KERNEL_OK")
</pallas_src>

<mosaic_0001>
module attributes {stable_mosaic.version = 11 : i64} {
  func.func @kernel(%arg0: i32, %arg1: memref<1x2x16x64xf32, #tpu.memory_space<vmem>>, %arg2: memref<1x2x16x16xf32, #tpu.memory_space<vmem>>) attributes {dimension_semantics = [#tpu.dimension_semantics<parallel>], iteration_bounds = array<i64: 2>, scalar_prefetch = 0 : i64, scratch_operands = 0 : i64, tpu.core_type = #tpu.core_type<tc>, window_params = [{transform_indices = @transform_0, window_bounds = array<i64: 1, 2, 16, 64>}, {transform_indices = @transform_1, window_bounds = array<i64: 1, 2, 16, 16>}]} {
    %c0 = arith.constant 0 : index
    %c0_0 = arith.constant 0 : index
    %c0_1 = arith.constant 0 : index
    %c0_2 = arith.constant 0 : index
    %0 = vector.load %arg1[%c0, %c0_0, %c0_1, %c0_2] : memref<1x2x16x64xf32, #tpu.memory_space<vmem>>, vector<1x1x16x64xf32>
    %1 = vector.shape_cast %0 : vector<1x1x16x64xf32> to vector<16x64xf32>
    %2 = arith.mulf %1, %1 : vector<16x64xf32>
    %cst = arith.constant dense<0.000000e+00> : vector<16xf32>
    %3 = vector.multi_reduction <add>, %2, %cst [1] : vector<16x64xf32> to vector<16xf32>
    %4 = vector.shape_cast %3 : vector<16xf32> to vector<16x1xf32>
    %5 = math.sqrt %4 : vector<16x1xf32>
    %cst_3 = arith.constant 9.99999996E-13 : f32
    %6 = vector.broadcast %cst_3 : f32 to vector<16x1xf32>
    %7 = arith.maximumf %5, %6 : vector<16x1xf32>
    %8 = vector.broadcast %7 : vector<16x1xf32> to vector<16x64xf32>
    %9 = arith.divf %1, %8 : vector<16x64xf32>
    %cst_4 = arith.constant dense<0.000000e+00> : vector<16x16xf32>
    %10 = tpu.matmul %9, %9, %cst_4 {dimension_numbers = #tpu.dot_dimension_numbers<[1], [1], [0], [0], [0, 0, 1, 0], [], []>} : vector<16x64xf32>, vector<16x64xf32>, vector<16x16xf32> -> vector<16x16xf32>
    %cst_5 = arith.constant 9.990000e-01 : f32
    %11 = vector.broadcast %cst_5 : f32 to vector<16x16xf32>
    %12 = arith.cmpf ogt, %10, %11 : vector<16x16xf32>
    %cst_6 = arith.constant 0.000000e+00 : f32
    %13 = vector.broadcast %cst_6 : f32 to vector<16x16xf32>
    %14 = arith.select %12, %13, %10 : vector<16x16xi1>, vector<16x16xf32>
    %c0_7 = arith.constant 0 : index
    %c0_8 = arith.constant 0 : index
    %c0_9 = arith.constant 0 : index
    %c0_10 = arith.constant 0 : index
    %15 = vector.load %arg2[%c0_7, %c0_8, %c0_9, %c0_10] : memref<1x2x16x16xf32, #tpu.memory_space<vmem>>, vector<1x1x16x16xf32>
    %16 = vector.shape_cast %15 : vector<1x1x16x16xf32> to vector<16x16xf32>
    %17 = vector.shape_cast %14 : vector<16x16xf32> to vector<1x1x16x16xf32>
    tpu.vector_store %arg2[%c0_7, %c0_8, %c0_9, %c0_10], %17 {strides = array<i32>} : memref<1x2x16x16xf32, #tpu.memory_space<vmem>>, vector<1x1x16x16xf32>,
    %c0_11 = arith.constant 0 : index
    %c1 = arith.constant 1 : index
    %c0_12 = arith.constant 0 : index
    %c0_13 = arith.constant 0 : index
    %18 = vector.load %arg1[%c0_11, %c1, %c0_12, %c0_13] : memref<1x2x16x64xf32, #tpu.memory_space<vmem>>, vector<1x1x16x64xf32>
    %19 = vector.shape_cast %18 : vector<1x1x16x64xf32> to vector<16x64xf32>
    %20 = arith.mulf %19, %19 : vector<16x64xf32>
    %cst_14 = arith.constant dense<0.000000e+00> : vector<16xf32>
    %21 = vector.multi_reduction <add>, %20, %cst_14 [1] : vector<16x64xf32> to vector<16xf32>
    %22 = vector.shape_cast %21 : vector<16xf32> to vector<16x1xf32>
    %23 = math.sqrt %22 : vector<16x1xf32>
    %cst_15 = arith.constant 9.99999996E-13 : f32
    %24 = vector.broadcast %cst_15 : f32 to vector<16x1xf32>
    %25 = arith.maximumf %23, %24 : vector<16x1xf32>
    %26 = vector.broadcast %25 : vector<16x1xf32> to vector<16x64xf32>
    %27 = arith.divf %19, %26 : vector<16x64xf32>
    %cst_16 = arith.constant dense<0.000000e+00> : vector<16x16xf32>
    %28 = tpu.matmul %27, %27, %cst_16 {dimension_numbers = #tpu.dot_dimension_numbers<[1], [1], [0], [0], [0, 0, 1, 0], [], []>} : vector<16x64xf32>, vector<16x64xf32>, vector<16x16xf32> -> vector<16x16xf32>
    %cst_17 = arith.constant 9.990000e-01 : f32
    %29 = vector.broadcast %cst_17 : f32 to vector<16x16xf32>
    %30 = arith.cmpf ogt, %28, %29 : vector<16x16xf32>
    %cst_18 = arith.constant 0.000000e+00 : f32
    %31 = vector.broadcast %cst_18 : f32 to vector<16x16xf32>
    %32 = arith.select %30, %31, %28 : vector<16x16xi1>, vector<16x16xf32>
    %c0_19 = arith.constant 0 : index
    %c1_20 = arith.constant 1 : index
    %c0_21 = arith.constant 0 : index
    %c0_22 = arith.constant 0 : index
    %33 = vector.load %arg2[%c0_19, %c1_20, %c0_21, %c0_22] : memref<1x2x16x16xf32, #tpu.memory_space<vmem>>, vector<1x1x16x16xf32>
    %34 = vector.shape_cast %33 : vector<1x1x16x16xf32> to vector<16x16xf32>
    %35 = vector.shape_cast %32 : vector<16x16xf32> to vector<1x1x16x16xf32>
    tpu.vector_store %arg2[%c0_19, %c1_20, %c0_21, %c0_22], %35 {strides = array<i32>} : memref<1x2x16x16xf32, #tpu.memory_space<vmem>>, vector<1x1x16x16xf32>,
    return
  }
  func.func @transform_0(%arg0: i32) -> (i32, i32, i32, i32) {
    %c0_i32 = arith.constant 0 : i32
    %c0_i32_0 = arith.constant 0 : i32
    %c0_i32_1 = arith.constant 0 : i32
    %c0_i32_2 = arith.constant 0 : i32
    return %arg0, %c0_i32, %c0_i32_0, %c0_i32_1 : i32, i32, i32, i32
  }
  func.func @transform_1(%arg0: i32) -> (i32, i32, i32, i32) {
    %c0_i32 = arith.constant 0 : i32
    %c0_i32_0 = arith.constant 0 : i32
    %c0_i32_1 = arith.constant 0 : i32
    %c0_i32_2 = arith.constant 0 : i32
    return %arg0, %c0_i32, %c0_i32_0, %c0_i32_1 : i32, i32, i32, i32
  }
}

module attributes {stable_mosaic.version = 11 : i64} {
  func.func @kernel(%arg0: i32, %arg1: memref<1x2x16x64xf32, #tpu.memory_space<vmem>>, %arg2: memref<1x2x16x16xf32, #tpu.memory_space<vmem>>, %arg3: memref<2x16x128xf32, #tpu.memory_space<vmem>>, %arg4: memref<2x16x64xf32, #tpu.memory_space<vmem>>, %arg5: memref<16x16xf32, #tpu.memory_space<vmem>>, %arg6: memref<64x64xf32, #tpu.memory_space<vmem>>, %arg7: memref<1x64xf32, #tpu.memory_space<vmem>>, %arg8: memref<64x64xf32, #tpu.memory_space<vmem>>, %arg9: memref<1x64xf32, #tpu.memory_space<vmem>>, %arg10: memref<64x64xf32, #tpu.memory_space<vmem>>, %arg11: memref<1x64xf32, #tpu.memory_space<vmem>>, %arg12: memref<1x2x16x128xf32, #tpu.memory_space<vmem>>, %arg13: memref<1x2x16x128xf32, #tpu.memory_space<vmem>>, %arg14: memref<1x8x128xf32, #tpu.memory_space<vmem>>) attributes {dimension_semantics = [#tpu.dimension_semantics<parallel>], iteration_bounds = array<i64: 2>, scalar_prefetch = 0 : i64, scratch_operands = 0 : i64, tpu.core_type = #tpu.core_type<tc>, window_params = [{transform_indices = @transform_0, window_bounds = array<i64: 1, 2, 16, 64>}, {transform_indices = @transform_1, window_bounds = array<i64: 1, 2, 16, 16>}, {pipeline_mode = #tpu.pipeline_mode<synchronous>, transform_indices = @transform_2, window_bounds = array<i64: 2, 16, 128>}, {pipeline_mode = #tpu.pipeline_mode<synchronous>, transform_indices = @transform_3, window_bounds = array<i64: 2, 16, 64>}, {pipeline_mode = #tpu.pipeline_mode<synchronous>, transform_indices = @transform_4, window_bounds = array<i64: 16, 16>}, {pipeline_mode = #tpu.pipeline_mode<synchronous>, transform_indices = @transform_5, window_bounds = array<i64: 64, 64>}, {pipeline_mode = #tpu.pipeline_mode<synchronous>, transform_indices = @transform_6, window_bounds = array<i64: 1, 64>}, {pipeline_mode = #tpu.pipeline_mode<synchronous>, transform_indices = @transform_7, window_bounds = array<i64: 64, 64>}, {pipeline_mode = #tpu.pipeline_mode<synchronous>, transform_indices = @transform_8, window_bounds = array<i64: 1, 64>}, {pipeline_mode = #tpu.pipeline_mode<synchronous>, transform_indices = @transform_9, window_bounds = array<i64: 64, 64>}, {pipeline_mode = #tpu.pipeline_mode<synchronous>, transform_indices = @transform_10, window_bounds = array<i64: 1, 64>}, {transform_indices = @transform_11, window_bounds = array<i64: 1, 2, 16, 128>}, {transform_indices = @transform_12, window_bounds = array<i64: 1, 2, 16, 128>}, {transform_indices = @transform_13, window_bounds = array<i64: 1, 8, 128>}]} {
    %0 = tpu.iota {dimensions = array<i32: 0>} : vector<128x64xi32>
    %c5_i32 = arith.constant 5 : i32
    %1 = vector.broadcast %c5_i32 : i32 to vector<128x64xi32>
    %2 = arith.cmpi slt, %0, %1 : vector<128x64xi32>
    %3 = arith.extui %2 : vector<128x64xi1> to vector<128x64xi32>
    %4 = arith.sitofp %3 : vector<128x64xi32> to vector<128x64xf32>
    %5 = tpu.iota {dimensions = array<i32: 0>} : vector<128x128xi32>
    %6 = tpu.iota {dimensions = array<i32: 1>} : vector<128x128xi32>
    %7 = arith.cmpi ne, %5, %6 : vector<128x128xi32>
    %8 = arith.extui %7 : vector<128x128xi1> to vector<128x128xi32>
    %9 = arith.sitofp %8 : vector<128x128xi32> to vector<128x128xf32>
    %c0 = arith.constant 0 : index
    %c0_0 = arith.constant 0 : index
    %c0_1 = arith.constant 0 : index
    %10 = vector.load %arg3[%c0, %c0_0, %c0_1] : memref<2x16x128xf32, #tpu.memory_space<vmem>>, vector<1x16x128xf32>
    %11 = vector.shape_cast %10 : vector<1x16x128xf32> to vector<16x128xf32>
    %c0_2 = arith.constant 0 : index
    %c0_3 = arith.constant 0 : index
    %c0_4 = arith.constant 0 : index
    %12 = vector.load %arg4[%c0_2, %c0_3, %c0_4] : memref<2x16x64xf32, #tpu.memory_space<vmem>>, vector<1x16x64xf32>
    %13 = vector.shape_cast %12 : vector<1x16x64xf32> to vector<16x64xf32>
    %cst = arith.constant dense<0.000000e+00> : vector<128x64xf32>
    %14 = tpu.matmul %11, %13, %cst {dimension_numbers = #tpu.dot_dimension_numbers<[0], [0], [1], [1], [0, 1, 1, 1], [], []>} : vector<16x128xf32>, vector<16x64xf32>, vector<128x64xf32> -> vector<128x64xf32>
    %c0_5 = arith.constant 0 : index
    %c0_6 = arith.constant 0 : index
    %15 = vector.load %arg10[%c0_5, %c0_6] : memref<64x64xf32, #tpu.memory_space<vmem>>, vector<64x64xf32>
    %cst_7 = arith.constant dense<0.000000e+00> : vector<128x64xf32>
    %16 = tpu.matmul %14, %15, %cst_7 {dimension_numbers = #tpu.dot_dimension_numbers<[1], [0], [0], [1], [0, 0, 1, 1], [], []>} : vector<128x64xf32>, vector<64x64xf32>, vector<128x64xf32> -> vector<128x64xf32>
    %c0_8 = arith.constant 0 : index
    %c0_9 = arith.constant 0 : index
    %17 = vector.load %arg11[%c0_8, %c0_9] : memref<1x64xf32, #tpu.memory_space<vmem>>, vector<1x64xf32>
    %18 = vector.broadcast %17 : vector<1x64xf32> to vector<128x64xf32>
    %19 = arith.addf %16, %18 : vector<128x64xf32>
    %cst_10 = arith.constant 0.000000e+00 : f32
    %20 = vector.broadcast %cst_10 : f32 to vector<128x64xf32>
    %21 = arith.maximumf %19, %20 : vector<128x64xf32>
    %22 = arith.mulf %21, %4 : vector<128x64xf32>
    %cst_11 = arith.constant 2.000000e-01 : f32
    %23 = vector.broadcast %cst_11 : f32 to vector<128x64xf32>
    %24 = arith.mulf %23, %22 : vector<128x64xf32>
    %cst_12 = arith.constant 8.000000e-01 : f32
    %25 = vector.broadcast %cst_12 : f32 to vector<128x64xf32>
    %26 = arith.mulf %25, %14 : vector<128x64xf32>
    %27 = arith.addf %24, %26 : vector<128x64xf32>
    %28 = arith.mulf %22, %22 : vector<128x64xf32>
    %cst_13 = arith.constant dense<0.000000e+00> : vector<128xf32>
    %29 = vector.multi_reduction <add>, %28, %cst_13 [1] : vector<128x64xf32> to vector<128xf32>
    %30 = vector.shape_cast %29 : vector<128xf32> to vector<128x1xf32>
    %31 = math.sqrt %30 : vector<128x1xf32>
    %cst_14 = arith.constant 9.99999996E-13 : f32
    %32 = vector.broadcast %cst_14 : f32 to vector<128x1xf32>
    %33 = arith.maximumf %31, %32 : vector<128x1xf32>
    %34 = vector.broadcast %33 : vector<128x1xf32> to vector<128x64xf32>
    %35 = arith.divf %22, %34 : vector<128x64xf32>
    %cst_15 = arith.constant dense<0.000000e+00> : vector<128x128xf32>
    %36 = tpu.matmul %35, %35, %cst_15 {dimension_numbers = #tpu.dot_dimension_numbers<[1], [1], [0], [0], [0, 0, 1, 0], [], []>} : vector<128x64xf32>, vector<128x64xf32>, vector<128x128xf32> -> vector<128x128xf32>
    %37 = arith.mulf %36, %9 : vector<128x128xf32>
    %38 = arith.mulf %37, %37 : vector<128x128xf32>
    %39 = vector.shape_cast %38 : vector<128x128xf32> to vector<1x128x128xf32>
    %cst_16 = arith.constant dense<0.000000e+00> : vector<1xf32>
    %40 = vector.multi_reduction <add>, %39, %cst_16 [1, 2] : vector<1x128x128xf32> to vector<1xf32>
    %41 = vector.shape_cast %40 : vector<1xf32> to vector<1x1x1xf32>
    %42 = vector.extract %41[0, 0, 0] : f32 from vector<1x1x1xf32>
    %cst_17 = arith.constant 0.000000e+00 : f32
    %43 = arith.addf %cst_17, %42 : f32
    %c0_18 = arith.constant 0 : index
    %c0_19 = arith.constant 0 : index
    %c0_20 = arith.constant 0 : index
    %c0_21 = arith.constant 0 : index
    %44 = vector.load %arg1[%c0_18, %c0_19, %c0_20, %c0_21] : memref<1x2x16x64xf32, #tpu.memory_space<vmem>>, vector<1x1x16x64xf32>
    %45 = vector.shape_cast %44 : vector<1x1x16x64xf32> to vector<16x64xf32>
    %c0_22 = arith.constant 0 : index
    %c0_23 = arith.constant 0 : index
    %c0_24 = arith.constant 0 : index
    %c0_25 = arith.constant 0 : index
    %46 = vector.load %arg2[%c0_22, %c0_23, %c0_24, %c0_25] : memref<1x2x16x16xf32, #tpu.memory_space<vmem>>, vector<1x1x16x16xf32>
    %47 = vector.shape_cast %46 : vector<1x1x16x16xf32> to vector<16x16xf32>
    %c0_26 = arith.constant 0 : index
    %c0_27 = arith.constant 0 : index
    %48 = vector.load %arg5[%c0_26, %c0_27] : memref<16x16xf32, #tpu.memory_space<vmem>>, vector<16x16xf32>
    %cst_28 = arith.constant dense<0.000000e+00> : vector<16x64xf32>
    %49 = tpu.matmul %48, %45, %cst_28 {dimension_numbers = #tpu.dot_dimension_numbers<[1], [0], [0], [1], [0, 0, 1, 1], [], []>} : vector<16x16xf32>, vector<16x64xf32>, vector<16x64xf32> -> vector<16x64xf32>
    %cst_29 = arith.constant 0.000000e+00 : f32
    %50 = vector.broadcast %cst_29 : f32 to vector<16x64xf32>
    %51 = arith.cmpf ogt, %49, %50 : vector<16x64xf32>
    %cst_30 = arith.constant 2.000000e-01 : f32
    %52 = vector.broadcast %cst_30 : f32 to vector<16x64xf32>
    %53 = arith.mulf %52, %49 : vector<16x64xf32>
    %54 = arith.select %51, %49, %53 : vector<16x64xi1>, vector<16x64xf32>
    %c0_31 = arith.constant 0 : index
    %c0_32 = arith.constant 0 : index
    %55 = vector.load %arg6[%c0_31, %c0_32] : memref<64x64xf32, #tpu.memory_space<vmem>>, vector<64x64xf32>
    %cst_33 = arith.constant dense<0.000000e+00> : vector<16x64xf32>
    %56 = tpu.matmul %54, %55, %cst_33 {dimension_numbers = #tpu.dot_dimension_numbers<[1], [0], [0], [1], [0, 0, 1, 1], [], []>} : vector<16x64xf32>, vector<64x64xf32>, vector<16x64xf32> -> vector<16x64xf32>
    %c0_34 = arith.constant 0 : index
    %c0_35 = arith.constant 0 : index
    %57 = vector.load %arg7[%c0_34, %c0_35] : memref<1x64xf32, #tpu.memory_space<vmem>>, vector<1x64xf32>
    %58 = vector.broadcast %57 : vector<1x64xf32> to vector<16x64xf32>
    %59 = arith.addf %56, %58 : vector<16x64xf32>
    %cst_36 = arith.constant 0.000000e+00 : f32
    %60 = vector.broadcast %cst_36 : f32 to vector<16x64xf32>
    %61 = arith.cmpf ogt, %59, %60 : vector<16x64xf32>
    %cst_37 = arith.constant 2.000000e-01 : f32
    %62 = vector.broadcast %cst_37 : f32 to vector<16x64xf32>
    %63 = arith.mulf %62, %59 : vector<16x64xf32>
    %64 = arith.select %61, %59, %63 : vector<16x64xi1>, vector<16x64xf32>
    %65 = arith.addf %45, %64 : vector<16x64xf32>
    %cst_38 = arith.constant dense<0.000000e+00> : vector<16xf32>
    %66 = vector.multi_reduction <add>, %47, %cst_38 [1] : vector<16x16xf32> to vector<16xf32>
    %67 = vector.shape_cast %66 : vector<16xf32> to vector<16x1xf32>
    %cst_39 = arith.constant 9.99999997E-7 : f32
    %68 = vector.broadcast %cst_39 : f32 to vector<16x1xf32>
    %69 = arith.addf %67, %68 : vector<16x1xf32>
    %70 = tpu.reciprocal %69 {approx = true} : vector<16x1xf32> -> vector<16x1xf32>
    %cst_40 = arith.constant 5.000000e-01 : f32
    %71 = vector.broadcast %cst_40 : f32 to vector<16x1xf32>
    %72 = arith.mulf %71, %70 : vector<16x1xf32>
    %73 = vector.broadcast %72 : vector<16x1xf32> to vector<16x64xf32>
    %74 = arith.mulf %73, %65 : vector<16x64xf32>
    %cst_41 = arith.constant dense<0.000000e+00> : vector<16x64xf32>
    %75 = tpu.matmul %47, %74, %cst_41 {dimension_numbers = #tpu.dot_dimension_numbers<[0], [0], [1], [1], [0, 1, 1, 1], [], []>} : vector<16x16xf32>, vector<16x64xf32>, vector<16x64xf32> -> vector<16x64xf32>
    %cst_42 = arith.constant 8.000000e-01 : f32
    %76 = vector.broadcast %cst_42 : f32 to vector<16x64xf32>
    %77 = arith.mulf %76, %65 : vector<16x64xf32>
    %78 = arith.addf %75, %77 : vector<16x64xf32>
    %cst_43 = arith.constant 0.000000e+00 : f32
    %79 = vector.broadcast %cst_43 : f32 to vector<16x64xf32>
    %80 = arith.cmpf ogt, %78, %79 : vector<16x64xf32>
    %cst_44 = arith.constant 2.000000e-01 : f32
    %81 = vector.broadcast %cst_44 : f32 to vector<16x64xf32>
    %82 = arith.mulf %81, %78 : vector<16x64xf32>
    %83 = arith.select %80, %78, %82 : vector<16x64xi1>, vector<16x64xf32>
    %c0_45 = arith.constant 0 : index
    %c0_46 = arith.constant 0 : index
    %84 = vector.load %arg8[%c0_45, %c0_46] : memref<64x64xf32, #tpu.memory_space<vmem>>, vector<64x64xf32>
    %cst_47 = arith.constant dense<0.000000e+00> : vector<16x64xf32>
    %85 = tpu.matmul %83, %84, %cst_47 {dimension_numbers = #tpu.dot_dimension_numbers<[1], [0], [0], [1], [0, 0, 1, 1], [], []>} : vector<16x64xf32>, vector<64x64xf32>, vector<16x64xf32> -> vector<16x64xf32>
    %c0_48 = arith.constant 0 : index
    %c0_49 = arith.constant 0 : index
    %86 = vector.load %arg9[%c0_48, %c0_49] : memref<1x64xf32, #tpu.memory_space<vmem>>, vector<1x64xf32>
    %87 = vector.broadcast %86 : vector<1x64xf32> to vector<16x64xf32>
    %88 = arith.addf %85, %87 : vector<16x64xf32>
    %cst_50 = arith.constant 0.000000e+00 : f32
    %89 = vector.broadcast %cst_50 : f32 to vector<16x64xf32>
    %90 = arith.cmpf ogt, %88, %89 : vector<16x64xf32>
    %cst_51 = arith.constant 2.000000e-01 : f32
    %91 = vector.broadcast %cst_51 : f32 to vector<16x64xf32>
    %92 = arith.mulf %91, %88 : vector<16x64xf32>
    %93 = arith.select %90, %88, %92 : vector<16x64xi1>, vector<16x64xf32>
    %cst_52 = arith.constant dense<0.000000e+00> : vector<128x64xf32>
    %94 = tpu.matmul %11, %93, %cst_52 {dimension_numbers = #tpu.dot_dimension_numbers<[0], [0], [1], [1], [0, 1, 1, 1], [], []>} : vector<16x128xf32>, vector<16x64xf32>, vector<128x64xf32> -> vector<128x64xf32>
    %95 = arith.mulf %93, %93 : vector<16x64xf32>
    %cst_53 = arith.constant dense<0.000000e+00> : vector<16xf32>
    %96 = vector.multi_reduction <add>, %95, %cst_53 [1] : vector<16x64xf32> to vector<16xf32>
    %97 = vector.shape_cast %96 : vector<16xf32> to vector<16x1xf32>
    %98 = math.sqrt %97 : vector<16x1xf32>
    %cst_54 = arith.constant 9.99999996E-13 : f32
    %99 = vector.broadcast %cst_54 : f32 to vector<16x1xf32>
    %100 = arith.maximumf %98, %99 : vector<16x1xf32>
    %101 = vector.broadcast %100 : vector<16x1xf32> to vector<16x64xf32>
    %102 = arith.divf %93, %101 : vector<16x64xf32>
    %103 = arith.mulf %94, %94 : vector<128x64xf32>
    %cst_55 = arith.constant dense<0.000000e+00> : vector<128xf32>
    %104 = vector.multi_reduction <add>, %103, %cst_55 [1] : vector<128x64xf32> to vector<128xf32>
    %105 = vector.shape_cast %104 : vector<128xf32> to vector<128x1xf32>
    %106 = math.sqrt %105 : vector<128x1xf32>
    %cst_56 = arith.constant 9.99999996E-13 : f32
    %107 = vector.broadcast %cst_56 : f32 to vector<128x1xf32>
    %108 = arith.maximumf %106, %107 : vector<128x1xf32>
    %109 = vector.broadcast %108 : vector<128x1xf32> to vector<128x64xf32>
    %110 = arith.divf %94, %109 : vector<128x64xf32>
    %cst_57 = arith.constant dense<0.000000e+00> : vector<16x128xf32>
    %111 = tpu.matmul %102, %110, %cst_57 {dimension_numbers = #tpu.dot_dimension_numbers<[1], [1], [0], [0], [0, 0, 1, 0], [], []>} : vector<16x64xf32>, vector<128x64xf32>, vector<16x128xf32> -> vector<16x128xf32>
    %c0_58 = arith.constant 0 : index
    %c0_59 = arith.constant 0 : index
    %c0_60 = arith.constant 0 : index
    %c0_61 = arith.constant 0 : index
    %112 = vector.load %arg12[%c0_58, %c0_59, %c0_60, %c0_61] : memref<1x2x16x128xf32, #tpu.memory_space<vmem>>, vector<1x1x16x128xf32>
    %113 = vector.shape_cast %112 : vector<1x1x16x128xf32> to vector<16x128xf32>
    %114 = vector.shape_cast %111 : vector<16x128xf32> to vector<1x1x16x128xf32>
    tpu.vector_store %arg12[%c0_58, %c0_59, %c0_60, %c0_61], %114 {strides = array<i32>} : memref<1x2x16x128xf32, #tpu.memory_space<vmem>>, vector<1x1x16x128xf32>,
    %cst_62 = arith.constant dense<0.000000e+00> : vector<16x128xf32>
    %115 = tpu.matmul %93, %27, %cst_62 {dimension_numbers = #tpu.dot_dimension_numbers<[1], [1], [0], [0], [0, 0, 1, 0], [], []>} : vector<16x64xf32>, vector<128x64xf32>, vector<16x128xf32> -> vector<16x128xf32>
    %c0_63 = arith.constant 0 : index
    %c0_64 = arith.constant 0 : index
    %c0_65 = arith.constant 0 : index
    %c0_66 = arith.constant 0 : index
    %116 = vector.load %arg13[%c0_63, %c0_64, %c0_65, %c0_66] : memref<1x2x16x128xf32, #tpu.memory_space<vmem>>, vector<1x1x16x128xf32>
    %117 = vector.shape_cast %116 : vector<1x1x16x128xf32> to vector<16x128xf32>
    %118 = vector.shape_cast %115 : vector<16x128xf32> to vector<1x1x16x128xf32>
    tpu.vector_store %arg13[%c0_63, %c0_64, %c0_65, %c0_66], %118 {strides = array<i32>} : memref<1x2x16x128xf32, #tpu.memory_space<vmem>>, vector<1x1x16x128xf32>,
    %c1 = arith.constant 1 : index
    %c0_67 = arith.constant 0 : index
    %c0_68 = arith.constant 0 : index
    %119 = vector.load %arg3[%c1, %c0_67, %c0_68] : memref<2x16x128xf32, #tpu.memory_space<vmem>>, vector<1x16x128xf32>
    %120 = vector.shape_cast %119 : vector<1x16x128xf32> to vector<16x128xf32>
    %c1_69 = arith.constant 1 : index
    %c0_70 = arith.constant 0 : index
    %c0_71 = arith.constant 0 : index
    %121 = vector.load %arg4[%c1_69, %c0_70, %c0_71] : memref<2x16x64xf32, #tpu.memory_space<vmem>>, vector<1x16x64xf32>
    %122 = vector.shape_cast %121 : vector<1x16x64xf32> to vector<16x64xf32>
    %cst_72 = arith.constant dense<0.000000e+00> : vector<128x64xf32>
    %123 = tpu.matmul %120, %122, %cst_72 {dimension_numbers = #tpu.dot_dimension_numbers<[0], [0], [1], [1], [0, 1, 1, 1], [], []>} : vector<16x128xf32>, vector<16x64xf32>, vector<128x64xf32> -> vector<128x64xf32>
    %c0_73 = arith.constant 0 : index
    %c0_74 = arith.constant 0 : index
    %124 = vector.load %arg10[%c0_73, %c0_74] : memref<64x64xf32, #tpu.memory_space<vmem>>, vector<64x64xf32>
    %cst_75 = arith.constant dense<0.000000e+00> : vector<128x64xf32>
    %125 = tpu.matmul %123, %124, %cst_75 {dimension_numbers = #tpu.dot_dimension_numbers<[1], [0], [0], [1], [0, 0, 1, 1], [], []>} : vector<128x64xf32>, vector<64x64xf32>, vector<128x64xf32> -> vector<128x64xf32>
    %c0_76 = arith.constant 0 : index
    %c0_77 = arith.constant 0 : index
    %126 = vector.load %arg11[%c0_76, %c0_77] : memref<1x64xf32, #tpu.memory_space<vmem>>, vector<1x64xf32>
    %127 = vector.broadcast %126 : vector<1x64xf32> to vector<128x64xf32>
    %128 = arith.addf %125, %127 : vector<128x64xf32>
    %cst_78 = arith.constant 0.000000e+00 : f32
    %129 = vector.broadcast %cst_78 : f32 to vector<128x64xf32>
    %130 = arith.maximumf %128, %129 : vector<128x64xf32>
    %131 = arith.mulf %130, %4 : vector<128x64xf32>
    %cst_79 = arith.constant 2.000000e-01 : f32
    %132 = vector.broadcast %cst_79 : f32 to vector<128x64xf32>
    %133 = arith.mulf %132, %131 : vector<128x64xf32>
    %cst_80 = arith.constant 8.000000e-01 : f32
    %134 = vector.broadcast %cst_80 : f32 to vector<128x64xf32>
    %135 = arith.mulf %134, %123 : vector<128x64xf32>
    %136 = arith.addf %133, %135 : vector<128x64xf32>
    %137 = arith.mulf %131, %131 : vector<128x64xf32>
    %cst_81 = arith.constant dense<0.000000e+00> : vector<128xf32>
    %138 = vector.multi_reduction <add>, %137, %cst_81 [1] : vector<128x64xf32> to vector<128xf32>
    %139 = vector.shape_cast %138 : vector<128xf32> to vector<128x1xf32>
    %140 = math.sqrt %139 : vector<128x1xf32>
    %cst_82 = arith.constant 9.99999996E-13 : f32
    %141 = vector.broadcast %cst_82 : f32 to vector<128x1xf32>
    %142 = arith.maximumf %140, %141 : vector<128x1xf32>
    %143 = vector.broadcast %142 : vector<128x1xf32> to vector<128x64xf32>
    %144 = arith.divf %131, %143 : vector<128x64xf32>
    %cst_83 = arith.constant dense<0.000000e+00> : vector<128x128xf32>
    %145 = tpu.matmul %144, %144, %cst_83 {dimension_numbers = #tpu.dot_dimension_numbers<[1], [1], [0], [0], [0, 0, 1, 0], [], []>} : vector<128x64xf32>, vector<128x64xf32>, vector<128x128xf32> -> vector<128x128xf32>
    %146 = arith.mulf %145, %9 : vector<128x128xf32>
    %147 = arith.mulf %146, %146 : vector<128x128xf32>
    %148 = vector.shape_cast %147 : vector<128x128xf32> to vector<1x128x128xf32>
    %cst_84 = arith.constant dense<0.000000e+00> : vector<1xf32>
    %149 = vector.multi_reduction <add>, %148, %cst_84 [1, 2] : vector<1x128x128xf32> to vector<1xf32>
    %150 = vector.shape_cast %149 : vector<1xf32> to vector<1x1x1xf32>
    %151 = vector.extract %150[0, 0, 0] : f32 from vector<1x1x1xf32>
    %152 = arith.addf %43, %151 : f32
    %c0_85 = arith.constant 0 : index
    %c1_86 = arith.constant 1 : index
    %c0_87 = arith.constant 0 : index
    %c0_88 = arith.constant 0 : index
    %153 = vector.load %arg1[%c0_85, %c1_86, %c0_87, %c0_88] : memref<1x2x16x64xf32, #tpu.memory_space<vmem>>, vector<1x1x16x64xf32>
    %154 = vector.shape_cast %153 : vector<1x1x16x64xf32> to vector<16x64xf32>
    %c0_89 = arith.constant 0 : index
    %c1_90 = arith.constant 1 : index
    %c0_91 = arith.constant 0 : index
    %c0_92 = arith.constant 0 : index
    %155 = vector.load %arg2[%c0_89, %c1_90, %c0_91, %c0_92] : memref<1x2x16x16xf32, #tpu.memory_space<vmem>>, vector<1x1x16x16xf32>
    %156 = vector.shape_cast %155 : vector<1x1x16x16xf32> to vector<16x16xf32>
    %c0_93 = arith.constant 0 : index
    %c0_94 = arith.constant 0 : index
    %157 = vector.load %arg5[%c0_93, %c0_94] : memref<16x16xf32, #tpu.memory_space<vmem>>, vector<16x16xf32>
    %cst_95 = arith.constant dense<0.000000e+00> : vector<16x64xf32>
    %158 = tpu.matmul %157, %154, %cst_95 {dimension_numbers = #tpu.dot_dimension_numbers<[1], [0], [0], [1], [0, 0, 1, 1], [], []>} : vector<16x16xf32>, vector<16x64xf32>, vector<16x64xf32> -> vector<16x64xf32>
    %cst_96 = arith.constant 0.000000e+00 : f32
    %159 = vector.broadcast %cst_96 : f32 to vector<16x64xf32>
    %160 = arith.cmpf ogt, %158, %159 : vector<16x64xf32>
    %cst_97 = arith.constant 2.000000e-01 : f32
    %161 = vector.broadcast %cst_97 : f32 to vector<16x64xf32>
    %162 = arith.mulf %161, %158 : vector<16x64xf32>
    %163 = arith.select %160, %158, %162 : vector<16x64xi1>, vector<16x64xf32>
    %c0_98 = arith.constant 0 : index
    %c0_99 = arith.constant 0 : index
    %164 = vector.load %arg6[%c0_98, %c0_99] : memref<64x64xf32, #tpu.memory_space<vmem>>, vector<64x64xf32>
    %cst_100 = arith.constant dense<0.000000e+00> : vector<16x64xf32>
    %165 = tpu.matmul %163, %164, %cst_100 {dimension_numbers = #tpu.dot_dimension_numbers<[1], [0], [0], [1], [0, 0, 1, 1], [], []>} : vector<16x64xf32>, vector<64x64xf32>, vector<16x64xf32> -> vector<16x64xf32>
    %c0_101 = arith.constant 0 : index
    %c0_102 = arith.constant 0 : index
    %166 = vector.load %arg7[%c0_101, %c0_102] : memref<1x64xf32, #tpu.memory_space<vmem>>, vector<1x64xf32>
    %167 = vector.broadcast %166 : vector<1x64xf32> to vector<16x64xf32>
    %168 = arith.addf %165, %167 : vector<16x64xf32>
    %cst_103 = arith.constant 0.000000e+00 : f32
    %169 = vector.broadcast %cst_103 : f32 to vector<16x64xf32>
    %170 = arith.cmpf ogt, %168, %169 : vector<16x64xf32>
    %cst_104 = arith.constant 2.000000e-01 : f32
    %171 = vector.broadcast %cst_104 : f32 to vector<16x64xf32>
    %172 = arith.mulf %171, %168 : vector<16x64xf32>
    %173 = arith.select %170, %168, %172 : vector<16x64xi1>, vector<16x64xf32>
    %174 = arith.addf %154, %173 : vector<16x64xf32>
    %cst_105 = arith.constant dense<0.000000e+00> : vector<16xf32>
    %175 = vector.multi_reduction <add>, %156, %cst_105 [1] : vector<16x16xf32> to vector<16xf32>
    %176 = vector.shape_cast %175 : vector<16xf32> to vector<16x1xf32>
    %cst_106 = arith.constant 9.99999997E-7 : f32
    %177 = vector.broadcast %cst_106 : f32 to vector<16x1xf32>
    %178 = arith.addf %176, %177 : vector<16x1xf32>
    %179 = tpu.reciprocal %178 {approx = true} : vector<16x1xf32> -> vector<16x1xf32>
    %cst_107 = arith.constant 5.000000e-01 : f32
    %180 = vector.broadcast %cst_107 : f32 to vector<16x1xf32>
    %181 = arith.mulf %180, %179 : vector<16x1xf32>
    %182 = vector.broadcast %181 : vector<16x1xf32> to vector<16x64xf32>
    %183 = arith.mulf %182, %174 : vector<16x64xf32>
    %cst_108 = arith.constant dense<0.000000e+00> : vector<16x64xf32>
    %184 = tpu.matmul %156, %183, %cst_108 {dimension_numbers = #tpu.dot_dimension_numbers<[0], [0], [1], [1], [0, 1, 1, 1], [], []>} : vector<16x16xf32>, vector<16x64xf32>, vector<16x64xf32> -> vector<16x64xf32>
    %cst_109 = arith.constant 8.000000e-01 : f32
    %185 = vector.broadcast %cst_109 : f32 to vector<16x64xf32>
    %186 = arith.mulf %185, %174 : vector<16x64xf32>
    %187 = arith.addf %184, %186 : vector<16x64xf32>
    %cst_110 = arith.constant 0.000000e+00 : f32
    %188 = vector.broadcast %cst_110 : f32 to vector<16x64xf32>
    %189 = arith.cmpf ogt, %187, %188 : vector<16x64xf32>
    %cst_111 = arith.constant 2.000000e-01 : f32
    %190 = vector.broadcast %cst_111 : f32 to vector<16x64xf32>
    %191 = arith.mulf %190, %187 : vector<16x64xf32>
    %192 = arith.select %189, %187, %191 : vector<16x64xi1>, vector<16x64xf32>
    %c0_112 = arith.constant 0 : index
    %c0_113 = arith.constant 0 : index
    %193 = vector.load %arg8[%c0_112, %c0_113] : memref<64x64xf32, #tpu.memory_space<vmem>>, vector<64x64xf32>
    %cst_114 = arith.constant dense<0.000000e+00> : vector<16x64xf32>
    %194 = tpu.matmul %192, %193, %cst_114 {dimension_numbers = #tpu.dot_dimension_numbers<[1], [0], [0], [1], [0, 0, 1, 1], [], []>} : vector<16x64xf32>, vector<64x64xf32>, vector<16x64xf32> -> vector<16x64xf32>
    %c0_115 = arith.constant 0 : index
    %c0_116 = arith.constant 0 : index
    %195 = vector.load %arg9[%c0_115, %c0_116] : memref<1x64xf32, #tpu.memory_space<vmem>>, vector<1x64xf32>
    %196 = vector.broadcast %195 : vector<1x64xf32> to vector<16x64xf32>
    %197 = arith.addf %194, %196 : vector<16x64xf32>
    %cst_117 = arith.constant 0.000000e+00 : f32
    %198 = vector.broadcast %cst_117 : f32 to vector<16x64xf32>
    %199 = arith.cmpf ogt, %197, %198 : vector<16x64xf32>
    %cst_118 = arith.constant 2.000000e-01 : f32
    %200 = vector.broadcast %cst_118 : f32 to vector<16x64xf32>
    %201 = arith.mulf %200, %197 : vector<16x64xf32>
    %202 = arith.select %199, %197, %201 : vector<16x64xi1>, vector<16x64xf32>
    %cst_119 = arith.constant dense<0.000000e+00> : vector<128x64xf32>
    %203 = tpu.matmul %120, %202, %cst_119 {dimension_numbers = #tpu.dot_dimension_numbers<[0], [0], [1], [1], [0, 1, 1, 1], [], []>} : vector<16x128xf32>, vector<16x64xf32>, vector<128x64xf32> -> vector<128x64xf32>
    %204 = arith.mulf %202, %202 : vector<16x64xf32>
    %cst_120 = arith.constant dense<0.000000e+00> : vector<16xf32>
    %205 = vector.multi_reduction <add>, %204, %cst_120 [1] : vector<16x64xf32> to vector<16xf32>
    %206 = vector.shape_cast %205 : vector<16xf32> to vector<16x1xf32>
    %207 = math.sqrt %206 : vector<16x1xf32>
    %cst_121 = arith.constant 9.99999996E-13 : f32
    %208 = vector.broadcast %cst_121 : f32 to vector<16x1xf32>
    %209 = arith.maximumf %207, %208 : vector<16x1xf32>
    %210 = vector.broadcast %209 : vector<16x1xf32> to vector<16x64xf32>
    %211 = arith.divf %202, %210 : vector<16x64xf32>
    %212 = arith.mulf %203, %203 : vector<128x64xf32>
    %cst_122 = arith.constant dense<0.000000e+00> : vector<128xf32>
    %213 = vector.multi_reduction <add>, %212, %cst_122 [1] : vector<128x64xf32> to vector<128xf32>
    %214 = vector.shape_cast %213 : vector<128xf32> to vector<128x1xf32>
    %215 = math.sqrt %214 : vector<128x1xf32>
    %cst_123 = arith.constant 9.99999996E-13 : f32
    %216 = vector.broadcast %cst_123 : f32 to vector<128x1xf32>
    %217 = arith.maximumf %215, %216 : vector<128x1xf32>
    %218 = vector.broadcast %217 : vector<128x1xf32> to vector<128x64xf32>
    %219 = arith.divf %203, %218 : vector<128x64xf32>
    %cst_124 = arith.constant dense<0.000000e+00> : vector<16x128xf32>
    %220 = tpu.matmul %211, %219, %cst_124 {dimension_numbers = #tpu.dot_dimension_numbers<[1], [1], [0], [0], [0, 0, 1, 0], [], []>} : vector<16x64xf32>, vector<128x64xf32>, vector<16x128xf32> -> vector<16x128xf32>
    %c0_125 = arith.constant 0 : index
    %c1_126 = arith.constant 1 : index
    %c0_127 = arith.constant 0 : index
    %c0_128 = arith.constant 0 : index
    %221 = vector.load %arg12[%c0_125, %c1_126, %c0_127, %c0_128] : memref<1x2x16x128xf32, #tpu.memory_space<vmem>>, vector<1x1x16x128xf32>
    %222 = vector.shape_cast %221 : vector<1x1x16x128xf32> to vector<16x128xf32>
    %223 = vector.shape_cast %220 : vector<16x128xf32> to vector<1x1x16x128xf32>
    tpu.vector_store %arg12[%c0_125, %c1_126, %c0_127, %c0_128], %223 {strides = array<i32>} : memref<1x2x16x128xf32, #tpu.memory_space<vmem>>, vector<1x1x16x128xf32>,
    %cst_129 = arith.constant dense<0.000000e+00> : vector<16x128xf32>
    %224 = tpu.matmul %202, %136, %cst_129 {dimension_numbers = #tpu.dot_dimension_numbers<[1], [1], [0], [0], [0, 0, 1, 0], [], []>} : vector<16x64xf32>, vector<128x64xf32>, vector<16x128xf32> -> vector<16x128xf32>
    %c0_130 = arith.constant 0 : index
    %c1_131 = arith.constant 1 : index
    %c0_132 = arith.constant 0 : index
    %c0_133 = arith.constant 0 : index
    %225 = vector.load %arg13[%c0_130, %c1_131, %c0_132, %c0_133] : memref<1x2x16x128xf32, #tpu.memory_space<vmem>>, vector<1x1x16x128xf32>
    %226 = vector.shape_cast %225 : vector<1x1x16x128xf32> to vector<16x128xf32>
    %227 = vector.shape_cast %224 : vector<16x128xf32> to vector<1x1x16x128xf32>
    tpu.vector_store %arg13[%c0_130, %c1_131, %c0_132, %c0_133], %227 {strides = array<i32>} : memref<1x2x16x128xf32, #tpu.memory_space<vmem>>, vector<1x1x16x128xf32>,
    %228 = vector.broadcast %152 : f32 to vector<8x128xf32>
    %c0_134 = arith.constant 0 : index
    %c0_135 = arith.constant 0 : index
    %c0_136 = arith.constant 0 : index
    %229 = vector.load %arg14[%c0_134, %c0_135, %c0_136] : memref<1x8x128xf32, #tpu.memory_space<vmem>>, vector<1x8x128xf32>
    %230 = vector.shape_cast %229 : vector<1x8x128xf32> to vector<8x128xf32>
    %231 = vector.shape_cast %228 : vector<8x128xf32> to vector<1x8x128xf32>
    tpu.vector_store %arg14[%c0_134, %c0_135, %c0_136], %231 {strides = array<i32>} : memref<1x8x128xf32, #tpu.memory_space<vmem>>, vector<1x8x128xf32>,
    return
  }
  func.func @transform_0(%arg0: i32) -> (i32, i32, i32, i32) {
    %c0_i32 = arith.constant 0 : i32
    %c0_i32_0 = arith.constant 0 : i32
    %c0_i32_1 = arith.constant 0 : i32
    %c0_i32_2 = arith.constant 0 : i32
    return %arg0, %c0_i32, %c0_i32_0, %c0_i32_1 : i32, i32, i32, i32
  }
  func.func @transform_1(%arg0: i32) -> (i32, i32, i32, i32) {
    %c0_i32 = arith.constant 0 : i32
    %c0_i32_0 = arith.constant 0 : i32
    %c0_i32_1 = arith.constant 0 : i32
    %c0_i32_2 = arith.constant 0 : i32
    return %arg0, %c0_i32, %c0_i32_0, %c0_i32_1 : i32, i32, i32, i32
  }
  func.func @transform_2(%arg0: i32) -> (i32, i32, i32) {
    %c0_i32 = arith.constant 0 : i32
    %c0_i32_0 = arith.constant 0 : i32
    %c0_i32_1 = arith.constant 0 : i32
    %c0_i32_2 = arith.constant 0 : i32
    return %c0_i32, %c0_i32_0, %c0_i32_1 : i32, i32, i32
  }
  func.func @transform_3(%arg0: i32) -> (i32, i32, i32) {
    %c0_i32 = arith.constant 0 : i32
    %c0_i32_0 = arith.constant 0 : i32
    %c0_i32_1 = arith.constant 0 : i32
    %c0_i32_2 = arith.constant 0 : i32
    return %c0_i32, %c0_i32_0, %c0_i32_1 : i32, i32, i32
  }
  func.func @transform_4(%arg0: i32) -> (i32, i32) {
    %c0_i32 = arith.constant 0 : i32
    %c0_i32_0 = arith.constant 0 : i32
    %c0_i32_1 = arith.constant 0 : i32
    return %c0_i32, %c0_i32_0 : i32, i32
  }
  func.func @transform_5(%arg0: i32) -> (i32, i32) {
    %c0_i32 = arith.constant 0 : i32
    %c0_i32_0 = arith.constant 0 : i32
    %c0_i32_1 = arith.constant 0 : i32
    return %c0_i32, %c0_i32_0 : i32, i32
  }
  func.func @transform_6(%arg0: i32) -> (i32, i32) {
    %c0_i32 = arith.constant 0 : i32
    %c0_i32_0 = arith.constant 0 : i32
    %c0_i32_1 = arith.constant 0 : i32
    return %c0_i32, %c0_i32_0 : i32, i32
  }
  func.func @transform_7(%arg0: i32) -> (i32, i32) {
    %c0_i32 = arith.constant 0 : i32
    %c0_i32_0 = arith.constant 0 : i32
    %c0_i32_1 = arith.constant 0 : i32
    return %c0_i32, %c0_i32_0 : i32, i32
  }
  func.func @transform_8(%arg0: i32) -> (i32, i32) {
    %c0_i32 = arith.constant 0 : i32
    %c0_i32_0 = arith.constant 0 : i32
    %c0_i32_1 = arith.constant 0 : i32
    return %c0_i32, %c0_i32_0 : i32, i32
  }
  func.func @transform_9(%arg0: i32) -> (i32, i32) {
    %c0_i32 = arith.constant 0 : i32
    %c0_i32_0 = arith.constant 0 : i32
    %c0_i32_1 = arith.constant 0 : i32
    return %c0_i32, %c0_i32_0 : i32, i32
  }
  func.func @transform_10(%arg0: i32) -> (i32, i32) {
    %c0_i32 = arith.constant 0 : i32
    %c0_i32_0 = arith.constant 0 : i32
    %c0_i32_1 = arith.constant 0 : i32
    return %c0_i32, %c0_i32_0 : i32, i32
  }
  func.func @transform_11(%arg0: i32) -> (i32, i32, i32, i32) {
    %c0_i32 = arith.constant 0 : i32
    %c0_i32_0 = arith.constant 0 : i32
    %c0_i32_1 = arith.constant 0 : i32
    %c0_i32_2 = arith.constant 0 : i32
    return %arg0, %c0_i32, %c0_i32_0, %c0_i32_1 : i32, i32, i32, i32
  }
  func.func @transform_12(%arg0: i32) -> (i32, i32, i32, i32) {
    %c0_i32 = arith.constant 0 : i32
    %c0_i32_0 = arith.constant 0 : i32
    %c0_i32_1 = arith.constant 0 : i32
    %c0_i32_2 = arith.constant 0 : i32
    return %arg0, %c0_i32, %c0_i32_0, %c0_i32_1 : i32, i32, i32, i32
  }
  func.func @transform_13(%arg0: i32) -> (i32, i32, i32) {
    %c0_i32 = arith.constant 0 : i32
    %c0_i32_0 = arith.constant 0 : i32
    %c0_i32_1 = arith.constant 0 : i32
    return %arg0, %c0_i32, %c0_i32_0 : i32, i32, i32
  }
}

</mosaic_0001>

<llo_original>
// kernel: model_forward.2
$region0: #{model_forward.2}
  #allocation0 [shape = 'u32[]', space=smem, size = 0x4, offset = 0x4, fixed_abs, tag = 'smem constant byte address 0x4 - core index']
  #allocation1 [shape = 'u32[72,128]{1,0:T(1,128)}', space=vmem, size = 0x9000, scoped, tag = 'internal scratch']
  %s0 = inlined_call_operand.vmem [shape: f32[2,2,16,64], index: 0, kind: input, shape index: {}]
  %s1 = inlined_call_operand.vmem [shape: f32[2,2,16,16], index: 1, kind: output, shape index: {}]
  %s2 = sld [smem:[#allocation0]]
  $region37: #{model_forward.2} parent=0
    _
  %s4 = ssub.s32 1, %s2
  %s5 = scalar_select 0, %s4, %s2
  loop: start=0, step=1, limit=4
  $region2: #{model_forward.2} parent=0 // loop_pre_header
    _
  $region3: #{model_forward.2} parent=0 // loop_header
    %s7 = sphi 0, %s11
    %p8 = scmp.ge.s32.totalorder %s7, 4
    %s17 = sphi 0, %s19
    %s20 = sphi 0, %s17
    %s21 = sphi 0, %s20
    %s37 = sphi 0, %s21
    %s43 = sphi 0, %s45
    %s46 = sphi 0, %s43
    %s47 = sphi 0, %s46
    %s63 = sphi 0, %s47
  $region4: #{model_forward.2} parent=0 // loop_header_branch
    %10 = sbr.rel (%p8) target = $region8
  $region5: #{model_forward.2} parent=0 // loop_body
    %s12 = ssub.s32 %s7, 1
    %s13 = ssub.s32 %s7, 2
    %s14 = sadd.s32 %s7, 1
    %s15 = ssub.s32 %s7, %s14
    %p16 = scmp.eq.s32.totalorder %s15, 0
    %s18 = sadd.s32 %s17, 1
    %s19 = scalar_select %p16, %s17, %s18
    %p22 = pneg %p16
    %p23 = scmp.eq.s32.totalorder %s7, 1
    %p24 = por %p22, %p23
    %p25 = scmp.ne.s32.totalorder %s17, %s20
    %p26 = scmp.eq.s32.totalorder %s7, 0
    %p27 = por %p25, %p26
    %p28 = scmp.ne.s32.totalorder %s17, %s20
    %p29 = scmp.eq.s32.totalorder %s12, 1
    %p30 = por %p28, %p29
    %p31 = scmp.ne.s32.totalorder %s20, %s21
    %p32 = scmp.eq.s32.totalorder %s12, 0
    %p33 = por %p31, %p32
    %p34 = scmp.ne.s32.totalorder %s20, %s21
    %p35 = scmp.eq.s32.totalorder %s13, 1
    %p36 = por %p34, %p35
    %p38 = scmp.ne.s32.totalorder %s21, %s37
    %p39 = scmp.eq.s32.totalorder %s13, 0
    %p40 = por %p38, %p39
    %s41 = ssub.s32 %s7, %s14
    %p42 = scmp.eq.s32.totalorder %s41, 0
    %s44 = sadd.s32 %s43, 1
    %s45 = scalar_select %p42, %s43, %s44
    %p48 = pneg %p42
    %p49 = scmp.eq.s32.totalorder %s7, 1
    %p50 = por %p48, %p49
    %p51 = scmp.ne.s32.totalorder %s43, %s46
    %p52 = scmp.eq.s32.totalorder %s7, 0
    %p53 = por %p51, %p52
    %p54 = scmp.ne.s32.totalorder %s43, %s46
    %p55 = scmp.eq.s32.totalorder %s12, 1
    %p56 = por %p54, %p55
    %p57 = scmp.ne.s32.totalorder %s46, %s47
    %p58 = scmp.eq.s32.totalorder %s12, 0
    %p59 = por %p57, %p58
    %p60 = scmp.ne.s32.totalorder %s46, %s47
    %p61 = scmp.eq.s32.totalorder %s13, 1
    %p62 = por %p60, %p61
    %p64 = scmp.ne.s32.totalorder %s47, %s63
    %p65 = scmp.eq.s32.totalorder %s13, 0
    %p66 = por %p64, %p65
    %p67 = scmp.le.s32.totalorder 1, %s7
    %p68 = scmp.lt.s32.totalorder %s7, 3
    %p69 = pnand %p67, %p68
    %p70 = pneg %p69
    // Predicated region
    $region9: #{model_forward.2} parent=5 // pred_check
      _
    $region10: #{model_forward.2} parent=5 // pred_check_branch
      %72 = sbr.rel (%p69) target = $region12
    $region11: #{model_forward.2} parent=5 // pred_region
      %s73 = ssub.s32 %s7, 1
    $region12: #{model_forward.2} parent=5 // pred_fallthru
      _
    %p74 = scmp.lt.s32.totalorder %s7, 2
    // Predicated region
    $region13: #{model_forward.2} parent=5 // pred_check
      %p75 = pneg %p74
    $region14: #{model_forward.2} parent=5 // pred_check_branch
      %77 = sbr.rel (%p75) target = $region16
    $region15: #{model_forward.2} parent=5 // pred_region
      // Predicated region
      $region17: #{model_forward.2} parent=15 // pred_check
        %p78 = pneg %p27
      $region18: #{model_forward.2} parent=15 // pred_check_branch
        %80 = sbr.rel (%p78) target = $region20
      $region19: #{model_forward.2} parent=15 // pred_region
        %p81 = scmp.lt.s32.totalorder %s7, 1
        %s82 = scalar_select %p81, %s7, 1
        %s83 = smul.addr %s82, 4
        %s84 = smul.addr %s83, 8
        %s85 = scalar_lea.vmem %s0, %s84
      $region20: #{model_forward.2} parent=15 // pred_fallthru
        _
    $region16: #{model_forward.2} parent=5 // pred_fallthru
      _
    %p86 = scmp.le.s32.totalorder 1, %s7
    %p87 = scmp.lt.s32.totalorder %s7, 3
    %p88 = pnand %p86, %p87
    %p89 = pneg %p88
    // Predicated region
    $region21: #{model_forward.2} parent=5 // pred_check
      _
    $region22: #{model_forward.2} parent=5 // pred_check_branch
      %91 = sbr.rel (%p88) target = $region24
    $region23: #{model_forward.2} parent=5 // pred_region
      %s92 = ssub.s32 %s7, 1
      %p93 = scmp.lt.s32.totalorder %s12, 1
      %s94 = scalar_select %p93, %s12, 1
      %s95 = smul.addr %s94, 4
      %s96 = smul.addr %s95, 8
      %s97 = scalar_lea.vmem %s0, %s96
      %p98 = pneg %p33
      %p99 = pneg %p30
      %p100 = pneg %p59
      %p101 = pneg %p56
      %p102 = scmp.lt.s32.totalorder %s12, 1
      %s103 = scalar_select %p102, %s12, 1
      %s104 = smul.addr %s103, 4
      %s105 = smul.addr %s104, 8
      %s106 = scalar_lea.vmem %s1, %s105
      %p107 = scmp.lt.s32.totalorder %s12, 1
      %s108 = scalar_select %p107, %s12, 1
      %s109 = smul.addr %s108, 4
      %s110 = smul.addr %s109, 8
      %s111 = scalar_lea.vmem %s0, %s110
      %p112 = scmp.lt.s32.totalorder %s12, 1
      %s113 = scalar_select %p112, %s12, 1
      %s114 = smul.addr %s113, 4
      %s115 = smul.addr %s114, 8
      %s116 = scalar_lea.vmem %s1, %s115
      %v117 = vld [vmem:[%s111] sm:$0xff]
      %v118 = vld [vmem:[%s111 + $0x8] sm:$0xff]
      %v119 = vmul.f32 %v117, %v117
      %v120 = vmul.f32 %v118, %v118
      %vm121 = vcmask 523264
      %v122 = vsel %vm121, %v119, 0.0
      %123 = vadd.xlane.f32.xlu0 %v122
      %v124 = vpop.xlane.xlu0 %123
      %v125 = vsel %vm121, %v120, 0.0
      %126 = vadd.xlane.f32.xlu0 %v125
      %v127 = vpop.xlane.xlu0 %126
      %v128 = vrsqrt.pop %v124
      %v129 = vmul.f32 %v128, %v124
      %v130 = vmul.f32 %v129, %v128
      %v131 = vmul.f32 0.5, %v130
      %v132 = vsub.f32 1.5, %v131
      %v133 = vmul.f32 %v128, %v132
      %v134 = vmul.f32 %v124, %v133
      %vm135 = vcmp.eq.f32.partialorder %v124, inf
      %v136 = vsel %vm135, %v124, %v134
      %vm137 = vcmp.eq.f32.partialorder %v124, 0.0
      %v138 = vand.u32 %v124, 2147483648
      %v139 = vsel %vm137, %v138, %v136
      %v140 = vrsqrt.pop %v127
      %v141 = vmul.f32 %v140, %v127
      %v142 = vmul.f32 %v141, %v140
      %v143 = vmul.f32 0.5, %v142
      %v144 = vsub.f32 1.5, %v143
      %v145 = vmul.f32 %v140, %v144
      %v146 = vmul.f32 %v127, %v145
      %vm147 = vcmp.eq.f32.partialorder %v127, inf
      %v148 = vsel %vm147, %v127, %v146
      %vm149 = vcmp.eq.f32.partialorder %v127, 0.0
      %v150 = vand.u32 %v127, 2147483648
      %v151 = vsel %vm149, %v150, %v148
      %v152 = vmax.f32 %v139, 1e-12
      %v153 = vmax.f32 %v151, 1e-12
      %v154 = vrcp.pop %v152
      %v155 = vmul.f32 %v152, %v154
      %v156 = vsub.f32 1.0, %v155
      %v157 = vmul.f32 %v154, %v156
      %v158 = vadd.f32 %v154, %v157
      %vm159 = vweird.f32 %v152
      %vm160 = vweird.f32 %v154
      %vm161 = vmor %vm159, %vm160
      %v162 = vsel %vm161, %v154, %v158
      %v163 = vand.u32 2147483647, %v152
      %vm164 = vcmp.eq.f32.partialorder %v163, 8.507059e+37
      %v165 = vand.u32 %v152, 2147483648
      %v166 = vor.u32 1.1754944e-38, %v165
      %v167 = vsel %vm164, %v166, %v162
      %v168 = vmul.f32 %v117, %v167
      %v169 = vrcp.pop %v153
      %v170 = vmul.f32 %v153, %v169
      %v171 = vsub.f32 1.0, %v170
      %v172 = vmul.f32 %v169, %v171
      %v173 = vadd.f32 %v169, %v172
      %vm174 = vweird.f32 %v153
      %vm175 = vweird.f32 %v169
      %vm176 = vmor %vm174, %vm175
      %v177 = vsel %vm176, %v169, %v173
      %v178 = vand.u32 2147483647, %v153
      %vm179 = vcmp.eq.f32.partialorder %v178, 8.507059e+37
      %v180 = vand.u32 %v153, 2147483648
      %v181 = vor.u32 1.1754944e-38, %v180
      %v182 = vsel %vm179, %v181, %v177
      %v183 = vmul.f32 %v118, %v182
      %v185 = vsel %vm121, %v168, 0
      %v188 = vsel %vm121, %v183, 0
      %190 = vmatpush.xpose.msra.mxu0 0.0
      %191 = vmatpush.xpose.msra.mxu0 0.0
      %192 = vmatpush.xpose.msra.mxu0 0.0
      %193 = vmatpush.xpose.msra.mxu0 0.0
      %194 = vmatpush.xpose.msra.mxu0 0.0
      %195 = vmatpush.xpose.msra.mxu0 0.0
      %196 = vmatpush.xpose.msra.mxu0 0.0
      %197 = vmatpush.xpose.msra.mxu0 0.0
      %198 = vmatpush.xpose.msra.mxu0 0.0
      %199 = vmatpush.xpose.msra.mxu0 0.0
      %200 = vmatpush.xpose.msra.mxu0 0.0
      %201 = vmatpush.xpose.msra.mxu0 0.0
      %202 = vmatpush.xpose.msra.mxu0 0.0
      %203 = vmatpush.xpose.msra.mxu0 0.0
      %204 = vmatpush.xpose.msra.mxu0 %v188
      %205 = vmatpush.xpose.msra.mxu0 %v185
      %206 = vmatmul.f32.gmra.mxu0 %v185
      %v207 = vpop.f32.mrf.mxu0
      %v208 = vadd.f32 0.0, %v207
      %209 = vmatmul.f32.gmra.mxu0 %v188
      %v210 = vpop.f32.mrf.mxu0
      %v211 = vadd.f32 0.0, %v210
      %212 = vdwg.mxu0
      %vm213 = vcmp.gt.f32.partialorder %v208, 0.999
      %vm214 = vcmp.gt.f32.partialorder %v211, 0.999
      %v215 = vsel %vm213, 0.0, %v208
      %v216 = vsel %vm214, 0.0, %v211
      %vm217 = vcmask 130048
      %218 = vst.msk [vmem:[%s116] sm:$0xff] %vm217, %v215
      %219 = vst.msk [vmem:[%s116 + $0x8] sm:$0xff] %vm217, %v216
      %s220 = scalar_lea.vmem %s111, 16
      %v221 = vld [vmem:[%s220] sm:$0xff]
      %v222 = vld [vmem:[%s220 + $0x8] sm:$0xff]
      %v223 = vmul.f32 %v221, %v221
      %v224 = vmul.f32 %v222, %v222
      %v225 = vsel %vm121, %v223, 0.0
      %226 = vadd.xlane.f32.xlu0 %v225
      %v227 = vpop.xlane.xlu0 %226
      %v228 = vsel %vm121, %v224, 0.0
      %229 = vadd.xlane.f32.xlu0 %v228
      %v230 = vpop.xlane.xlu0 %229
      %v231 = vrsqrt.pop %v227
      %v232 = vmul.f32 %v231, %v227
      %v233 = vmul.f32 %v232, %v231
      %v234 = vmul.f32 0.5, %v233
      %v235 = vsub.f32 1.5, %v234
      %v236 = vmul.f32 %v231, %v235
      %v237 = vmul.f32 %v227, %v236
      %vm238 = vcmp.eq.f32.partialorder %v227, inf
      %v239 = vsel %vm238, %v227, %v237
      %vm240 = vcmp.eq.f32.partialorder %v227, 0.0
      %v241 = vand.u32 %v227, 2147483648
      %v242 = vsel %vm240, %v241, %v239
      %v243 = vrsqrt.pop %v230
      %v244 = vmul.f32 %v243, %v230
      %v245 = vmul.f32 %v244, %v243
      %v246 = vmul.f32 0.5, %v245
      %v247 = vsub.f32 1.5, %v246
      %v248 = vmul.f32 %v243, %v247
      %v249 = vmul.f32 %v230, %v248
      %vm250 = vcmp.eq.f32.partialorder %v230, inf
      %v251 = vsel %vm250, %v230, %v249
      %vm252 = vcmp.eq.f32.partialorder %v230, 0.0
      %v253 = vand.u32 %v230, 2147483648
      %v254 = vsel %vm252, %v253, %v251
      %v255 = vmax.f32 %v242, 1e-12
      %v256 = vmax.f32 %v254, 1e-12
      %v257 = vrcp.pop %v255
      %v258 = vmul.f32 %v255, %v257
      %v259 = vsub.f32 1.0, %v258
      %v260 = vmul.f32 %v257, %v259
      %v261 = vadd.f32 %v257, %v260
      %vm262 = vweird.f32 %v255
      %vm263 = vweird.f32 %v257
      %vm264 = vmor %vm262, %vm263
      %v265 = vsel %vm264, %v257, %v261
      %v266 = vand.u32 2147483647, %v255
      %vm267 = vcmp.eq.f32.partialorder %v266, 8.507059e+37
      %v268 = vand.u32 %v255, 2147483648
      %v269 = vor.u32 1.1754944e-38, %v268
      %v270 = vsel %vm267, %v269, %v265
      %v271 = vmul.f32 %v221, %v270
      %v272 = vrcp.pop %v256
      %v273 = vmul.f32 %v256, %v272
      %v274 = vsub.f32 1.0, %v273
      %v275 = vmul.f32 %v272, %v274
      %v276 = vadd.f32 %v272, %v275
      %vm277 = vweird.f32 %v256
      %vm278 = vweird.f32 %v272
      %vm279 = vmor %vm277, %vm278
      %v280 = vsel %vm279, %v272, %v276
      %v281 = vand.u32 2147483647, %v256
      %vm282 = vcmp.eq.f32.partialorder %v281, 8.507059e+37
      %v283 = vand.u32 %v256, 2147483648
      %v284 = vor.u32 1.1754944e-38, %v283
      %v285 = vsel %vm282, %v284, %v280
      %v286 = vmul.f32 %v222, %v285
      %v288 = vsel %vm121, %v271, 0
      %v291 = vsel %vm121, %v286, 0
      %293 = vmatpush.xpose.msra.mxu0 0.0
      %294 = vmatpush.xpose.msra.mxu0 0.0
      %295 = vmatpush.xpose.msra.mxu0 0.0
      %296 = vmatpush.xpose.msra.mxu0 0.0
      %297 = vmatpush.xpose.msra.mxu0 0.0
      %298 = vmatpush.xpose.msra.mxu0 0.0
      %299 = vmatpush.xpose.msra.mxu0 0.0
      %300 = vmatpush.xpose.msra.mxu0 0.0
      %301 = vmatpush.xpose.msra.mxu0 0.0
      %302 = vmatpush.xpose.msra.mxu0 0.0
      %303 = vmatpush.xpose.msra.mxu0 0.0
      %304 = vmatpush.xpose.msra.mxu0 0.0
      %305 = vmatpush.xpose.msra.mxu0 0.0
      %306 = vmatpush.xpose.msra.mxu0 0.0
      %307 = vmatpush.xpose.msra.mxu0 %v291
      %308 = vmatpush.xpose.msra.mxu0 %v288
      %309 = vmatmul.f32.gmra.mxu0 %v288
      %v310 = vpop.f32.mrf.mxu0
      %v311 = vadd.f32 0.0, %v310
      %312 = vmatmul.f32.gmra.mxu0 %v291
      %v313 = vpop.f32.mrf.mxu0
      %v314 = vadd.f32 0.0, %v313
      %315 = vdwg.mxu0
      %vm316 = vcmp.gt.f32.partialorder %v311, 0.999
      %vm317 = vcmp.gt.f32.partialorder %v314, 0.999
      %v318 = vsel %vm316, 0.0, %v311
      %v319 = vsel %vm317, 0.0, %v314
      %s320 = scalar_lea.vmem %s116, 16
      %321 = vst.msk [vmem:[%s320] sm:$0xff] %vm217, %v318
      %322 = vst.msk [vmem:[%s320 + $0x8] sm:$0xff] %vm217, %v319
      %p323 = scmp.lt.s32.totalorder %s12, 1
      %s324 = scalar_select %p323, %s12, 1
      %s325 = smul.addr %s324, 4
      %s326 = smul.addr %s325, 8
      %s327 = scalar_lea.vmem %s1, %s326
      // Predicated region
      $region25: #{model_forward.2} parent=23 // pred_check
        %p328 = pneg %p56
      $region26: #{model_forward.2} parent=23 // pred_check_branch
        %330 = sbr.rel (%p328) target = $region28
      $region27: #{model_forward.2} parent=23 // pred_region
        _
      $region28: #{model_forward.2} parent=23 // pred_fallthru
        _
    $region24: #{model_forward.2} parent=5 // pred_fallthru
      _
    %p331 = scmp.le.s32.totalorder 2, %s7
    // Predicated region
    $region29: #{model_forward.2} parent=5 // pred_check
      %p332 = pneg %p331
    $region30: #{model_forward.2} parent=5 // pred_check_branch
      %334 = sbr.rel (%p332) target = $region32
    $region31: #{model_forward.2} parent=5 // pred_region
      %s335 = ssub.s32 %s7, 2
      // Predicated region
      $region33: #{model_forward.2} parent=31 // pred_check
        %p336 = pneg %p62
      $region34: #{model_forward.2} parent=31 // pred_check_branch
        %338 = sbr.rel (%p336) target = $region36
      $region35: #{model_forward.2} parent=31 // pred_region
        %p339 = scmp.lt.s32.totalorder %s13, 1
        %s340 = scalar_select %p339, %s13, 1
        %s341 = smul.addr %s340, 4
        %s342 = smul.addr %s341, 8
        %s343 = scalar_lea.vmem %s1, %s342
      $region36: #{model_forward.2} parent=31 // pred_fallthru
        _
    $region32: #{model_forward.2} parent=5 // pred_fallthru
      _
  $region6: #{model_forward.2} parent=0 // loop_footer
    %s11 = sadd.s32 1, %s7
  $region7: #{model_forward.2} parent=0 // loop_footer_branch
    %6 = sbr.rel target = $region3
  $region8: #{model_forward.2} parent=0 // loop_exit
    _

// kernel: model_forward.3
$region0: #{model_forward.3}
  #allocation0 [shape = 'u32[]', space=smem, size = 0x4, offset = 0x4, fixed_abs, tag = 'smem constant byte address 0x4 - core index']
  #allocation1 [shape = 'u32[72,128]{1,0:T(1,128)}', space=vmem, size = 0x9000, scoped, tag = 'internal scratch']
  %s0 = inlined_call_operand.vmem [shape: f32[2,2,16,64], index: 0, kind: input, shape index: {}]
  %s1 = inlined_call_operand.vmem [shape: f32[2,2,16,16], index: 1, kind: input, shape index: {}]
  %s2 = inlined_call_operand.vmem [shape: f32[2,16,128], index: 2, kind: input, shape index: {}]
  %s3 = inlined_call_operand.vmem [shape: f32[2,16,64], index: 3, kind: input, shape index: {}]
  %s4 = inlined_call_operand.vmem [shape: f32[16,16], index: 4, kind: input, shape index: {}]
  %s5 = inlined_call_operand.vmem [shape: f32[64,64], index: 5, kind: input, shape index: {}]
  %s6 = inlined_call_operand.vmem [shape: f32[1,64], index: 6, kind: input, shape index: {}]
  %s7 = inlined_call_operand.vmem [shape: f32[64,64], index: 7, kind: input, shape index: {}]
  %s8 = inlined_call_operand.vmem [shape: f32[1,64], index: 8, kind: input, shape index: {}]
  %s9 = inlined_call_operand.vmem [shape: f32[64,64], index: 9, kind: input, shape index: {}]
  %s10 = inlined_call_operand.vmem [shape: f32[1,64], index: 10, kind: input, shape index: {}]
  %s11 = inlined_call_operand.vmem [shape: f32[2,2,16,128], index: 11, kind: output, shape index: {0}]
  %s12 = inlined_call_operand.vmem [shape: f32[2,2,16,128], index: 12, kind: output, shape index: {1}]
  %s13 = inlined_call_operand.vmem [shape: f32[2,8,128], index: 13, kind: output, shape index: {2}]
  %14 = xla_tuple %s11, %s12, %s13
  %s15 = sld [smem:[#allocation0]]
  $region93: #{model_forward.3} parent=0
    _
  %s17 = ssub.s32 1, %s15
  %s18 = scalar_select 0, %s17, %s15
  loop: start=0, step=1, limit=4
  $region2: #{model_forward.3} parent=0 // loop_pre_header
    _
  $region3: #{model_forward.3} parent=0 // loop_header
    %s20 = sphi 0, %s24
    %p21 = scmp.ge.s32.totalorder %s20, 4
    %s30 = sphi 0, %s32
    %s33 = sphi 0, %s30
    %s34 = sphi 0, %s33
    %s50 = sphi 0, %s34
    %s56 = sphi 0, %s58
    %s59 = sphi 0, %s56
    %s60 = sphi 0, %s59
    %s76 = sphi 0, %s60
    %s80 = sphi 0, %s80
    %s82 = sphi 0, %s80
    %s83 = sphi 0, %s82
    %s97 = sphi 0, %s83
    %s101 = sphi 0, %s101
    %s103 = sphi 0, %s101
    %s104 = sphi 0, %s103
    %s118 = sphi 0, %s104
    %s122 = sphi 0, %s122
    %s124 = sphi 0, %s122
    %s125 = sphi 0, %s124
    %s139 = sphi 0, %s125
    %s143 = sphi 0, %s143
    %s145 = sphi 0, %s143
    %s146 = sphi 0, %s145
    %s160 = sphi 0, %s146
    %s164 = sphi 0, %s164
    %s166 = sphi 0, %s164
    %s167 = sphi 0, %s166
    %s181 = sphi 0, %s167
    %s185 = sphi 0, %s185
    %s187 = sphi 0, %s185
    %s188 = sphi 0, %s187
    %s202 = sphi 0, %s188
    %s206 = sphi 0, %s206
    %s208 = sphi 0, %s206
    %s209 = sphi 0, %s208
    %s223 = sphi 0, %s209
    %s227 = sphi 0, %s227
    %s229 = sphi 0, %s227
    %s230 = sphi 0, %s229
    %s244 = sphi 0, %s230
    %s248 = sphi 0, %s248
    %s250 = sphi 0, %s248
    %s251 = sphi 0, %s250
    %s265 = sphi 0, %s251
    %s271 = sphi 0, %s273
    %s274 = sphi 0, %s271
    %s275 = sphi 0, %s274
    %s291 = sphi 0, %s275
    %s297 = sphi 0, %s299
    %s300 = sphi 0, %s297
    %s301 = sphi 0, %s300
    %s317 = sphi 0, %s301
    %s323 = sphi 0, %s325
    %s326 = sphi 0, %s323
    %s327 = sphi 0, %s326
    %s343 = sphi 0, %s327
  $region4: #{model_forward.3} parent=0 // loop_header_branch
    %23 = sbr.rel (%p21) target = $region8
  $region5: #{model_forward.3} parent=0 // loop_body
    %s25 = ssub.s32 %s20, 1
    %s26 = ssub.s32 %s20, 2
    %s27 = sadd.s32 %s20, 1
    %s28 = ssub.s32 %s20, %s27
    %p29 = scmp.eq.s32.totalorder %s28, 0
    %s31 = sadd.s32 %s30, 1
    %s32 = scalar_select %p29, %s30, %s31
    %p35 = pneg %p29
    %p36 = scmp.eq.s32.totalorder %s20, 1
    %p37 = por %p35, %p36
    %p38 = scmp.ne.s32.totalorder %s30, %s33
    %p39 = scmp.eq.s32.totalorder %s20, 0
    %p40 = por %p38, %p39
    %p41 = scmp.ne.s32.totalorder %s30, %s33
    %p42 = scmp.eq.s32.totalorder %s25, 1
    %p43 = por %p41, %p42
    %p44 = scmp.ne.s32.totalorder %s33, %s34
    %p45 = scmp.eq.s32.totalorder %s25, 0
    %p46 = por %p44, %p45
    %p47 = scmp.ne.s32.totalorder %s33, %s34
    %p48 = scmp.eq.s32.totalorder %s26, 1
    %p49 = por %p47, %p48
    %p51 = scmp.ne.s32.totalorder %s34, %s50
    %p52 = scmp.eq.s32.totalorder %s26, 0
    %p53 = por %p51, %p52
    %s54 = ssub.s32 %s20, %s27
    %p55 = scmp.eq.s32.totalorder %s54, 0
    %s57 = sadd.s32 %s56, 1
    %s58 = scalar_select %p55, %s56, %s57
    %p61 = pneg %p55
    %p62 = scmp.eq.s32.totalorder %s20, 1
    %p63 = por %p61, %p62
    %p64 = scmp.ne.s32.totalorder %s56, %s59
    %p65 = scmp.eq.s32.totalorder %s20, 0
    %p66 = por %p64, %p65
    %p67 = scmp.ne.s32.totalorder %s56, %s59
    %p68 = scmp.eq.s32.totalorder %s25, 1
    %p69 = por %p67, %p68
    %p70 = scmp.ne.s32.totalorder %s59, %s60
    %p71 = scmp.eq.s32.totalorder %s25, 0
    %p72 = por %p70, %p71
    %p73 = scmp.ne.s32.totalorder %s59, %s60
    %p74 = scmp.eq.s32.totalorder %s26, 1
    %p75 = por %p73, %p74
    %p77 = scmp.ne.s32.totalorder %s60, %s76
    %p78 = scmp.eq.s32.totalorder %s26, 0
    %p79 = por %p77, %p78
    %s81 = sadd.s32 %s80, 1
    %p84 = scmp.eq.s32.totalorder %s20, 1
    %p85 = scmp.ne.s32.totalorder %s80, %s82
    %p86 = scmp.eq.s32.totalorder %s20, 0
    %p87 = por %p85, %p86
    %p88 = scmp.ne.s32.totalorder %s80, %s82
    %p89 = scmp.eq.s32.totalorder %s25, 1
    %p90 = por %p88, %p89
    %p91 = scmp.ne.s32.totalorder %s82, %s83
    %p92 = scmp.eq.s32.totalorder %s25, 0
    %p93 = por %p91, %p92
    %p94 = scmp.ne.s32.totalorder %s82, %s83
    %p95 = scmp.eq.s32.totalorder %s26, 1
    %p96 = por %p94, %p95
    %p98 = scmp.ne.s32.totalorder %s83, %s97
    %p99 = scmp.eq.s32.totalorder %s26, 0
    %p100 = por %p98, %p99
    %s102 = sadd.s32 %s101, 1
    %p105 = scmp.eq.s32.totalorder %s20, 1
    %p106 = scmp.ne.s32.totalorder %s101, %s103
    %p107 = scmp.eq.s32.totalorder %s20, 0
    %p108 = por %p106, %p107
    %p109 = scmp.ne.s32.totalorder %s101, %s103
    %p110 = scmp.eq.s32.totalorder %s25, 1
    %p111 = por %p109, %p110
    %p112 = scmp.ne.s32.totalorder %s103, %s104
    %p113 = scmp.eq.s32.totalorder %s25, 0
    %p114 = por %p112, %p113
    %p115 = scmp.ne.s32.totalorder %s103, %s104
    %p116 = scmp.eq.s32.totalorder %s26, 1
    %p117 = por %p115, %p116
    %p119 = scmp.ne.s32.totalorder %s104, %s118
    %p120 = scmp.eq.s32.totalorder %s26, 0
    %p121 = por %p119, %p120
    %s123 = sadd.s32 %s122, 1
    %p126 = scmp.eq.s32.totalorder %s20, 1
    %p127 = scmp.ne.s32.totalorder %s122, %s124
    %p128 = scmp.eq.s32.totalorder %s20, 0
    %p129 = por %p127, %p128
    %p130 = scmp.ne.s32.totalorder %s122, %s124
    %p131 = scmp.eq.s32.totalorder %s25, 1
    %p132 = por %p130, %p131
    %p133 = scmp.ne.s32.totalorder %s124, %s125
    %p134 = scmp.eq.s32.totalorder %s25, 0
    %p135 = por %p133, %p134
    %p136 = scmp.ne.s32.totalorder %s124, %s125
    %p137 = scmp.eq.s32.totalorder %s26, 1
    %p138 = por %p136, %p137
    %p140 = scmp.ne.s32.totalorder %s125, %s139
    %p141 = scmp.eq.s32.totalorder %s26, 0
    %p142 = por %p140, %p141
    %s144 = sadd.s32 %s143, 1
    %p147 = scmp.eq.s32.totalorder %s20, 1
    %p148 = scmp.ne.s32.totalorder %s143, %s145
    %p149 = scmp.eq.s32.totalorder %s20, 0
    %p150 = por %p148, %p149
    %p151 = scmp.ne.s32.totalorder %s143, %s145
    %p152 = scmp.eq.s32.totalorder %s25, 1
    %p153 = por %p151, %p152
    %p154 = scmp.ne.s32.totalorder %s145, %s146
    %p155 = scmp.eq.s32.totalorder %s25, 0
    %p156 = por %p154, %p155
    %p157 = scmp.ne.s32.totalorder %s145, %s146
    %p158 = scmp.eq.s32.totalorder %s26, 1
    %p159 = por %p157, %p158
    %p161 = scmp.ne.s32.totalorder %s146, %s160
    %p162 = scmp.eq.s32.totalorder %s26, 0
    %p163 = por %p161, %p162
    %s165 = sadd.s32 %s164, 1
    %p168 = scmp.eq.s32.totalorder %s20, 1
    %p169 = scmp.ne.s32.totalorder %s164, %s166
    %p170 = scmp.eq.s32.totalorder %s20, 0
    %p171 = por %p169, %p170
    %p172 = scmp.ne.s32.totalorder %s164, %s166
    %p173 = scmp.eq.s32.totalorder %s25, 1
    %p174 = por %p172, %p173
    %p175 = scmp.ne.s32.totalorder %s166, %s167
    %p176 = scmp.eq.s32.totalorder %s25, 0
    %p177 = por %p175, %p176
    %p178 = scmp.ne.s32.totalorder %s166, %s167
    %p179 = scmp.eq.s32.totalorder %s26, 1
    %p180 = por %p178, %p179
    %p182 = scmp.ne.s32.totalorder %s167, %s181
    %p183 = scmp.eq.s32.totalorder %s26, 0
    %p184 = por %p182, %p183
    %s186 = sadd.s32 %s185, 1
    %p189 = scmp.eq.s32.totalorder %s20, 1
    %p190 = scmp.ne.s32.totalorder %s185, %s187
    %p191 = scmp.eq.s32.totalorder %s20, 0
    %p192 = por %p190, %p191
    %p193 = scmp.ne.s32.totalorder %s185, %s187
    %p194 = scmp.eq.s32.totalorder %s25, 1
    %p195 = por %p193, %p194
    %p196 = scmp.ne.s32.totalorder %s187, %s188
    %p197 = scmp.eq.s32.totalorder %s25, 0
    %p198 = por %p196, %p197
    %p199 = scmp.ne.s32.totalorder %s187, %s188
    %p200 = scmp.eq.s32.totalorder %s26, 1
    %p201 = por %p199, %p200
    %p203 = scmp.ne.s32.totalorder %s188, %s202
    %p204 = scmp.eq.s32.totalorder %s26, 0
    %p205 = por %p203, %p204
    %s207 = sadd.s32 %s206, 1
    %p210 = scmp.eq.s32.totalorder %s20, 1
    %p211 = scmp.ne.s32.totalorder %s206, %s208
    %p212 = scmp.eq.s32.totalorder %s20, 0
    %p213 = por %p211, %p212
    %p214 = scmp.ne.s32.totalorder %s206, %s208
    %p215 = scmp.eq.s32.totalorder %s25, 1
    %p216 = por %p214, %p215
    %p217 = scmp.ne.s32.totalorder %s208, %s209
    %p218 = scmp.eq.s32.totalorder %s25, 0
    %p219 = por %p217, %p218
    %p220 = scmp.ne.s32.totalorder %s208, %s209
    %p221 = scmp.eq.s32.totalorder %s26, 1
    %p222 = por %p220, %p221
    %p224 = scmp.ne.s32.totalorder %s209, %s223
    %p225 = scmp.eq.s32.totalorder %s26, 0
    %p226 = por %p224, %p225
    %s228 = sadd.s32 %s227, 1
    %p231 = scmp.eq.s32.totalorder %s20, 1
    %p232 = scmp.ne.s32.totalorder %s227, %s229
    %p233 = scmp.eq.s32.totalorder %s20, 0
    %p234 = por %p232, %p233
    %p235 = scmp.ne.s32.totalorder %s227, %s229
    %p236 = scmp.eq.s32.totalorder %s25, 1
    %p237 = por %p235, %p236
    %p238 = scmp.ne.s32.totalorder %s229, %s230
    %p239 = scmp.eq.s32.totalorder %s25, 0
    %p240 = por %p238, %p239
    %p241 = scmp.ne.s32.totalorder %s229, %s230
    %p242 = scmp.eq.s32.totalorder %s26, 1
    %p243 = por %p241, %p242
    %p245 = scmp.ne.s32.totalorder %s230, %s244
    %p246 = scmp.eq.s32.totalorder %s26, 0
    %p247 = por %p245, %p246
    %s249 = sadd.s32 %s248, 1
    %p252 = scmp.eq.s32.totalorder %s20, 1
    %p253 = scmp.ne.s32.totalorder %s248, %s250
    %p254 = scmp.eq.s32.totalorder %s20, 0
    %p255 = por %p253, %p254
    %p256 = scmp.ne.s32.totalorder %s248, %s250
    %p257 = scmp.eq.s32.totalorder %s25, 1
    %p258 = por %p256, %p257
    %p259 = scmp.ne.s32.totalorder %s250, %s251
    %p260 = scmp.eq.s32.totalorder %s25, 0
    %p261 = por %p259, %p260
    %p262 = scmp.ne.s32.totalorder %s250, %s251
    %p263 = scmp.eq.s32.totalorder %s26, 1
    %p264 = por %p262, %p263
    %p266 = scmp.ne.s32.totalorder %s251, %s265
    %p267 = scmp.eq.s32.totalorder %s26, 0
    %p268 = por %p266, %p267
    %s269 = ssub.s32 %s20, %s27
    %p270 = scmp.eq.s32.totalorder %s269, 0
    %s272 = sadd.s32 %s271, 1
    %s273 = scalar_select %p270, %s271, %s272
    %p276 = pneg %p270
    %p277 = scmp.eq.s32.totalorder %s20, 1
    %p278 = por %p276, %p277
    %p279 = scmp.ne.s32.totalorder %s271, %s274
    %p280 = scmp.eq.s32.totalorder %s20, 0
    %p281 = por %p279, %p280
    %p282 = scmp.ne.s32.totalorder %s271, %s274
    %p283 = scmp.eq.s32.totalorder %s25, 1
    %p284 = por %p282, %p283
    %p285 = scmp.ne.s32.totalorder %s274, %s275
    %p286 = scmp.eq.s32.totalorder %s25, 0
    %p287 = por %p285, %p286
    %p288 = scmp.ne.s32.totalorder %s274, %s275
    %p289 = scmp.eq.s32.totalorder %s26, 1
    %p290 = por %p288, %p289
    %p292 = scmp.ne.s32.totalorder %s275, %s291
    %p293 = scmp.eq.s32.totalorder %s26, 0
    %p294 = por %p292, %p293
    %s295 = ssub.s32 %s20, %s27
    %p296 = scmp.eq.s32.totalorder %s295, 0
    %s298 = sadd.s32 %s297, 1
    %s299 = scalar_select %p296, %s297, %s298
    %p302 = pneg %p296
    %p303 = scmp.eq.s32.totalorder %s20, 1
    %p304 = por %p302, %p303
    %p305 = scmp.ne.s32.totalorder %s297, %s300
    %p306 = scmp.eq.s32.totalorder %s20, 0
    %p307 = por %p305, %p306
    %p308 = scmp.ne.s32.totalorder %s297, %s300
    %p309 = scmp.eq.s32.totalorder %s25, 1
    %p310 = por %p308, %p309
    %p311 = scmp.ne.s32.totalorder %s300, %s301
    %p312 = scmp.eq.s32.totalorder %s25, 0
    %p313 = por %p311, %p312
    %p314 = scmp.ne.s32.totalorder %s300, %s301
    %p315 = scmp.eq.s32.totalorder %s26, 1
    %p316 = por %p314, %p315
    %p318 = scmp.ne.s32.totalorder %s301, %s317
    %p319 = scmp.eq.s32.totalorder %s26, 0
    %p320 = por %p318, %p319
    %s321 = ssub.s32 %s20, %s27
    %p322 = scmp.eq.s32.totalorder %s321, 0
    %s324 = sadd.s32 %s323, 1
    %s325 = scalar_select %p322, %s323, %s324
    %p328 = pneg %p322
    %p329 = scmp.eq.s32.totalorder %s20, 1
    %p330 = por %p328, %p329
    %p331 = scmp.ne.s32.totalorder %s323, %s326
    %p332 = scmp.eq.s32.totalorder %s20, 0
    %p333 = por %p331, %p332
    %p334 = scmp.ne.s32.totalorder %s323, %s326
    %p335 = scmp.eq.s32.totalorder %s25, 1
    %p336 = por %p334, %p335
    %p337 = scmp.ne.s32.totalorder %s326, %s327
    %p338 = scmp.eq.s32.totalorder %s25, 0
    %p339 = por %p337, %p338
    %p340 = scmp.ne.s32.totalorder %s326, %s327
    %p341 = scmp.eq.s32.totalorder %s26, 1
    %p342 = por %p340, %p341
    %p344 = scmp.ne.s32.totalorder %s327, %s343
    %p345 = scmp.eq.s32.totalorder %s26, 0
    %p346 = por %p344, %p345
    %p347 = scmp.le.s32.totalorder 1, %s20
    %p348 = scmp.lt.s32.totalorder %s20, 3
    %p349 = pnand %p347, %p348
    %p350 = pneg %p349
    // Predicated region
    $region9: #{model_forward.3} parent=5 // pred_check
      _
    $region10: #{model_forward.3} parent=5 // pred_check_branch
      %352 = sbr.rel (%p349) target = $region12
    $region11: #{model_forward.3} parent=5 // pred_region
      %s353 = ssub.s32 %s20, 1
      // Predicated region
      $region13: #{model_forward.3} parent=11 // pred_check
        %p354 = pneg %p93
      $region14: #{model_forward.3} parent=11 // pred_check_branch
        %356 = sbr.rel (%p354) target = $region16
      $region15: #{model_forward.3} parent=11 // pred_region
        _
      $region16: #{model_forward.3} parent=11 // pred_fallthru
        _
      // Predicated region
      $region17: #{model_forward.3} parent=11 // pred_check
        %p357 = pneg %p114
      $region18: #{model_forward.3} parent=11 // pred_check_branch
        %359 = sbr.rel (%p357) target = $region20
      $region19: #{model_forward.3} parent=11 // pred_region
        _
      $region20: #{model_forward.3} parent=11 // pred_fallthru
        _
      // Predicated region
      $region21: #{model_forward.3} parent=11 // pred_check
        %p360 = pneg %p135
      $region22: #{model_forward.3} parent=11 // pred_check_branch
        %362 = sbr.rel (%p360) target = $region24
      $region23: #{model_forward.3} parent=11 // pred_region
        _
      $region24: #{model_forward.3} parent=11 // pred_fallthru
        _
      // Predicated region
      $region25: #{model_forward.3} parent=11 // pred_check
        %p363 = pneg %p156
      $region26: #{model_forward.3} parent=11 // pred_check_branch
        %365 = sbr.rel (%p363) target = $region28
      $region27: #{model_forward.3} parent=11 // pred_region
        _
      $region28: #{model_forward.3} parent=11 // pred_fallthru
        _
      // Predicated region
      $region29: #{model_forward.3} parent=11 // pred_check
        %p366 = pneg %p177
      $region30: #{model_forward.3} parent=11 // pred_check_branch
        %368 = sbr.rel (%p366) target = $region32
      $region31: #{model_forward.3} parent=11 // pred_region
        _
      $region32: #{model_forward.3} parent=11 // pred_fallthru
        _
      // Predicated region
      $region33: #{model_forward.3} parent=11 // pred_check
        %p369 = pneg %p198
      $region34: #{model_forward.3} parent=11 // pred_check_branch
        %371 = sbr.rel (%p369) target = $region36
      $region35: #{model_forward.3} parent=11 // pred_region
        _
      $region36: #{model_forward.3} parent=11 // pred_fallthru
        _
      // Predicated region
      $region37: #{model_forward.3} parent=11 // pred_check
        %p372 = pneg %p219
      $region38: #{model_forward.3} parent=11 // pred_check_branch
        %374 = sbr.rel (%p372) target = $region40
      $region39: #{model_forward.3} parent=11 // pred_region
        _
      $region40: #{model_forward.3} parent=11 // pred_fallthru
        _
      // Predicated region
      $region41: #{model_forward.3} parent=11 // pred_check
        %p375 = pneg %p240
      $region42: #{model_forward.3} parent=11 // pred_check_branch
        %377 = sbr.rel (%p375) target = $region44
      $region43: #{model_forward.3} parent=11 // pred_region
        _
      $region44: #{model_forward.3} parent=11 // pred_fallthru
        _
      // Predicated region
      $region45: #{model_forward.3} parent=11 // pred_check
        %p378 = pneg %p261
      $region46: #{model_forward.3} parent=11 // pred_check_branch
        %380 = sbr.rel (%p378) target = $region48
      $region47: #{model_forward.3} parent=11 // pred_region
        _
      $region48: #{model_forward.3} parent=11 // pred_fallthru
        _
    $region12: #{model_forward.3} parent=5 // pred_fallthru
      _
    %p381 = scmp.lt.s32.totalorder %s20, 2
    // Predicated region
    $region49: #{model_forward.3} parent=5 // pred_check
      %p382 = pneg %p381
    $region50: #{model_forward.3} parent=5 // pred_check_branch
      %384 = sbr.rel (%p382) target = $region52
    $region51: #{model_forward.3} parent=5 // pred_region
      // Predicated region
      $region53: #{model_forward.3} parent=51 // pred_check
        %p385 = pneg %p40
      $region54: #{model_forward.3} parent=51 // pred_check_branch
        %387 = sbr.rel (%p385) target = $region56
      $region55: #{model_forward.3} parent=51 // pred_region
        %p388 = scmp.lt.s32.totalorder %s20, 1
        %s389 = scalar_select %p388, %s20, 1
        %s390 = smul.addr %s389, 4
        %s391 = smul.addr %s390, 8
        %s392 = scalar_lea.vmem %s0, %s391
      $region56: #{model_forward.3} parent=51 // pred_fallthru
        _
      // Predicated region
      $region57: #{model_forward.3} parent=51 // pred_check
        %p393 = pneg %p66
      $region58: #{model_forward.3} parent=51 // pred_check_branch
        %395 = sbr.rel (%p393) target = $region60
      $region59: #{model_forward.3} parent=51 // pred_region
        %p396 = scmp.lt.s32.totalorder %s20, 1
        %s397 = scalar_select %p396, %s20, 1
        %s398 = smul.addr %s397, 4
        %s399 = smul.addr %s398, 8
        %s400 = scalar_lea.vmem %s1, %s399
      $region60: #{model_forward.3} parent=51 // pred_fallthru
        _
    $region52: #{model_forward.3} parent=5 // pred_fallthru
      _
    %p401 = scmp.le.s32.totalorder 1, %s20
    %p402 = scmp.lt.s32.totalorder %s20, 3
    %p403 = pnand %p401, %p402
    %p404 = pneg %p403
    // Predicated region
    $region61: #{model_forward.3} parent=5 // pred_check
      _
    $region62: #{model_forward.3} parent=5 // pred_check_branch
      %406 = sbr.rel (%p403) target = $region64
    $region63: #{model_forward.3} parent=5 // pred_region
      %s407 = ssub.s32 %s20, 1
      %p408 = scmp.lt.s32.totalorder %s25, 1
      %s409 = scalar_select %p408, %s25, 1
      %s410 = smul.addr %s409, 4
      %s411 = smul.addr %s410, 8
      %s412 = scalar_lea.vmem %s0, %s411
      %p413 = pneg %p46
      %p414 = pneg %p43
      %p415 = scmp.lt.s32.totalorder %s25, 1
      %s416 = scalar_select %p415, %s25, 1
      %s417 = smul.addr %s416, 4
      %s418 = smul.addr %s417, 8
      %s419 = scalar_lea.vmem %s1, %s418
      %p420 = pneg %p72
      %p421 = pneg %p69
      %p422 = pneg %p93
      %p423 = pneg %p90
      %p424 = pneg %p114
      %p425 = pneg %p111
      %p426 = pneg %p135
      %p427 = pneg %p132
      %p428 = pneg %p156
      %p429 = pneg %p153
      %p430 = pneg %p177
      %p431 = pneg %p174
      %p432 = pneg %p198
      %p433 = pneg %p195
      %p434 = pneg %p219
      %p435 = pneg %p216
      %p436 = pneg %p240
      %p437 = pneg %p237
      %p438 = pneg %p261
      %p439 = pneg %p258
      %p440 = pneg %p287
      %p441 = pneg %p284
      %p442 = scmp.lt.s32.totalorder %s25, 1
      %s443 = scalar_select %p442, %s25, 1
      %s444 = smul.addr %s443, 4
      %s445 = smul.addr %s444, 8
      %s446 = scalar_lea.vmem %s11, %s445
      %p447 = pneg %p313
      %p448 = pneg %p310
      %p449 = scmp.lt.s32.totalorder %s25, 1
      %s450 = scalar_select %p449, %s25, 1
      %s451 = smul.addr %s450, 4
      %s452 = smul.addr %s451, 8
      %s453 = scalar_lea.vmem %s12, %s452
      %p454 = pneg %p339
      %p455 = pneg %p336
      %p456 = scmp.lt.s32.totalorder %s25, 1
      %s457 = scalar_select %p456, %s25, 1
      %s458 = smul.addr %s457, 8
      %s459 = scalar_lea.vmem %s13, %s458
      %p460 = scmp.lt.s32.totalorder %s25, 1
      %s461 = scalar_select %p460, %s25, 1
      %s462 = smul.addr %s461, 4
      %s463 = smul.addr %s462, 8
      %s464 = scalar_lea.vmem %s0, %s463
      %p465 = scmp.lt.s32.totalorder %s25, 1
      %s466 = scalar_select %p465, %s25, 1
      %s467 = smul.addr %s466, 4
      %s468 = smul.addr %s467, 8
      %s469 = scalar_lea.vmem %s1, %s468
      %p470 = scmp.lt.s32.totalorder %s25, 1
      %s471 = scalar_select %p470, %s25, 1
      %s472 = smul.addr %s471, 4
      %s473 = smul.addr %s472, 8
      %s474 = scalar_lea.vmem %s11, %s473
      %p475 = scmp.lt.s32.totalorder %s25, 1
      %s476 = scalar_select %p475, %s25, 1
      %s477 = smul.addr %s476, 4
      %s478 = smul.addr %s477, 8
      %s479 = scalar_lea.vmem %s12, %s478
      %p480 = scmp.lt.s32.totalorder %s25, 1
      %s481 = scalar_select %p480, %s25, 1
      %s482 = smul.addr %s481, 8
      %s483 = scalar_lea.vmem %s13, %s482
      %v484 = vlaneseq
      %v485 = vshrl.u32 %v484, 7
      %v486 = vadd.s32 %v485, 8
      %v487 = vadd.s32 %v485, 16
      %v488 = vadd.s32 %v485, 24
      %v489 = vadd.s32 %v485, 32
      %v490 = vadd.s32 %v485, 40
      %v491 = vadd.s32 %v485, 48
      %v492 = vadd.s32 %v485, 56
      %v493 = vadd.s32 %v485, 64
      %v494 = vadd.s32 %v485, 72
      %v495 = vadd.s32 %v485, 80
      %v496 = vadd.s32 %v485, 88
      %v497 = vadd.s32 %v485, 96
      %v498 = vadd.s32 %v485, 104
      %v499 = vadd.s32 %v485, 112
      %v500 = vadd.s32 %v485, 120
      %vm501 = vcmp.lt.s32.totalorder %v485, 5
      %vm502 = vcmp.lt.s32.totalorder %v486, 5
      %vm503 = vcmp.lt.s32.totalorder %v487, 5
      %vm504 = vcmp.lt.s32.totalorder %v488, 5
      %vm505 = vcmp.lt.s32.totalorder %v489, 5
      %vm506 = vcmp.lt.s32.totalorder %v490, 5
      %vm507 = vcmp.lt.s32.totalorder %v491, 5
      %vm508 = vcmp.lt.s32.totalorder %v492, 5
      %vm509 = vcmp.lt.s32.totalorder %v493, 5
      %vm510 = vcmp.lt.s32.totalorder %v494, 5
      %vm511 = vcmp.lt.s32.totalorder %v495, 5
      %vm512 = vcmp.lt.s32.totalorder %v496, 5
      %vm513 = vcmp.lt.s32.totalorder %v497, 5
      %vm514 = vcmp.lt.s32.totalorder %v498, 5
      %vm515 = vcmp.lt.s32.totalorder %v499, 5
      %vm516 = vcmp.lt.s32.totalorder %v500, 5
      %v517 = vsel %vm501, 1, 0
      %v518 = vsel %vm502, 1, 0
      %v519 = vsel %vm503, 1, 0
      %v520 = vsel %vm504, 1, 0
      %v521 = vsel %vm505, 1, 0
      %v522 = vsel %vm506, 1, 0
      %v523 = vsel %vm507, 1, 0
      %v524 = vsel %vm508, 1, 0
      %v525 = vsel %vm509, 1, 0
      %v526 = vsel %vm510, 1, 0
      %v527 = vsel %vm511, 1, 0
      %v528 = vsel %vm512, 1, 0
      %v529 = vsel %vm513, 1, 0
      %v530 = vsel %vm514, 1, 0
      %v531 = vsel %vm515, 1, 0
      %v532 = vsel %vm516, 1, 0
      %v533 = vcvt.s32.f32 %v517
      %v534 = vcvt.s32.f32 %v518
      %v535 = vcvt.s32.f32 %v519
      %v536 = vcvt.s32.f32 %v520
      %v537 = vcvt.s32.f32 %v521
      %v538 = vcvt.s32.f32 %v522
      %v539 = vcvt.s32.f32 %v523
      %v540 = vcvt.s32.f32 %v524
      %v541 = vcvt.s32.f32 %v525
      %v542 = vcvt.s32.f32 %v526
      %v543 = vcvt.s32.f32 %v527
      %v544 = vcvt.s32.f32 %v528
      %v545 = vcvt.s32.f32 %v529
      %v546 = vcvt.s32.f32 %v530
      %v547 = vcvt.s32.f32 %v531
      %v548 = vcvt.s32.f32 %v532
      %v549 = vlaneseq
      %v550 = vand.u32 %v549, 127
      %vm551 = vcmp.ne.s32.totalorder %v485, %v550
      %vm552 = vcmp.ne.s32.totalorder %v486, %v550
      %vm553 = vcmp.ne.s32.totalorder %v487, %v550
      %vm554 = vcmp.ne.s32.totalorder %v488, %v550
      %vm555 = vcmp.ne.s32.totalorder %v489, %v550
      %vm556 = vcmp.ne.s32.totalorder %v490, %v550
      %vm557 = vcmp.ne.s32.totalorder %v491, %v550
      %vm558 = vcmp.ne.s32.totalorder %v492, %v550
      %vm559 = vcmp.ne.s32.totalorder %v493, %v550
      %vm560 = vcmp.ne.s32.totalorder %v494, %v550
      %vm561 = vcmp.ne.s32.totalorder %v495, %v550
      %vm562 = vcmp.ne.s32.totalorder %v496, %v550
      %vm563 = vcmp.ne.s32.totalorder %v497, %v550
      %vm564 = vcmp.ne.s32.totalorder %v498, %v550
      %vm565 = vcmp.ne.s32.totalorder %v499, %v550
      %vm566 = vcmp.ne.s32.totalorder %v500, %v550
      %v567 = vsel %vm551, 1, 0
      %v568 = vsel %vm552, 1, 0
      %v569 = vsel %vm553, 1, 0
      %v570 = vsel %vm554, 1, 0
      %v571 = vsel %vm555, 1, 0
      %v572 = vsel %vm556, 1, 0
      %v573 = vsel %vm557, 1, 0
      %v574 = vsel %vm558, 1, 0
      %v575 = vsel %vm559, 1, 0
      %v576 = vsel %vm560, 1, 0
      %v577 = vsel %vm561, 1, 0
      %v578 = vsel %vm562, 1, 0
      %v579 = vsel %vm563, 1, 0
      %v580 = vsel %vm564, 1, 0
      %v581 = vsel %vm565, 1, 0
      %v582 = vsel %vm566, 1, 0
      %v583 = vcvt.s32.f32 %v567
      %v584 = vcvt.s32.f32 %v568
      %v585 = vcvt.s32.f32 %v569
      %v586 = vcvt.s32.f32 %v570
      %v587 = vcvt.s32.f32 %v571
      %v588 = vcvt.s32.f32 %v572
      %v589 = vcvt.s32.f32 %v573
      %v590 = vcvt.s32.f32 %v574
      %v591 = vcvt.s32.f32 %v575
      %v592 = vcvt.s32.f32 %v576
      %v593 = vcvt.s32.f32 %v577
      %v594 = vcvt.s32.f32 %v578
      %v595 = vcvt.s32.f32 %v579
      %v596 = vcvt.s32.f32 %v580
      %v597 = vcvt.s32.f32 %v581
      %v598 = vcvt.s32.f32 %v582
      %v599 = vld [vmem:[%s2] sm:$0xff]
      %v600 = vld [vmem:[%s2 + $0x8] sm:$0xff]
      %v601 = vld [vmem:[%s3] sm:$0xff]
      %v602 = vld [vmem:[%s3 + $0x8] sm:$0xff]
      %603 = vxpose.xlu0.b32.start [1/16] %v599, 128
      %604 = vxpose.xlu0.b32.cont [2/16] %v600, 128
      %605 = vxpose.xlu0.b32.cont [3/16] 0.0, 128
      %606 = vxpose.xlu0.b32.cont [4/16] 0.0, 128
      %607 = vxpose.xlu0.b32.cont [5/16] 0.0, 128
      %608 = vxpose.xlu0.b32.cont [6/16] 0.0, 128
      %609 = vxpose.xlu0.b32.cont [7/16] 0.0, 128
      %610 = vxpose.xlu0.b32.cont [8/16] 0.0, 128
      %611 = vxpose.xlu0.b32.cont [9/16] 0.0, 128
      %612 = vxpose.xlu0.b32.cont [10/16] 0.0, 128
      %613 = vxpose.xlu0.b32.cont [11/16] 0.0, 128
      %614 = vxpose.xlu0.b32.cont [12/16] 0.0, 128
      %615 = vxpose.xlu0.b32.cont [13/16] 0.0, 128
      %616 = vxpose.xlu0.b32.cont [14/16] 0.0, 128
      %617 = vxpose.xlu0.b32.cont [15/16] 0.0, 128
      %618 = vxpose.xlu0.b32.end [16/16] 0.0, 128
      %v619 = vpop.trf.xlu0
      %v620 = vpop.trf.xlu0
      %v621 = vpop.trf.xlu0
      %v622 = vpop.trf.xlu0
      %v623 = vpop.trf.xlu0
      %v624 = vpop.trf.xlu0
      %v625 = vpop.trf.xlu0
      %v626 = vpop.trf.xlu0
      %v627 = vpop.trf.xlu0
      %v628 = vpop.trf.xlu0
      %v629 = vpop.trf.xlu0
      %v630 = vpop.trf.xlu0
      %v631 = vpop.trf.xlu0
      %v632 = vpop.trf.xlu0
      %v633 = vpop.trf.xlu0
      %v634 = vpop.trf.xlu0
      %vm635 = vcmask 130048
      %v637 = vsel %vm635, %v619, 0
      %v640 = vsel %vm635, %v620, 0
      %v643 = vsel %vm635, %v621, 0
      %v646 = vsel %vm635, %v622, 0
      %v649 = vsel %vm635, %v623, 0
      %v652 = vsel %vm635, %v624, 0
      %v655 = vsel %vm635, %v625, 0
      %v658 = vsel %vm635, %v626, 0
      %v661 = vsel %vm635, %v627, 0
      %v664 = vsel %vm635, %v628, 0
      %v667 = vsel %vm635, %v629, 0
      %v670 = vsel %vm635, %v630, 0
      %v673 = vsel %vm635, %v631, 0
      %v676 = vsel %vm635, %v632, 0
      %v679 = vsel %vm635, %v633, 0
      %v682 = vsel %vm635, %v634, 0
      %684 = vmatpush.msra.mxu0 0.0
      %685 = vmatpush.msra.mxu0 0.0
      %686 = vmatpush.msra.mxu0 0.0
      %687 = vmatpush.msra.mxu0 0.0
      %688 = vmatpush.msra.mxu0 0.0
      %689 = vmatpush.msra.mxu0 0.0
      %690 = vmatpush.msra.mxu0 0.0
      %691 = vmatpush.msra.mxu0 0.0
      %692 = vmatpush.msra.mxu0 0.0
      %693 = vmatpush.msra.mxu0 0.0
      %694 = vmatpush.msra.mxu0 0.0
      %695 = vmatpush.msra.mxu0 0.0
      %696 = vmatpush.msra.mxu0 0.0
      %697 = vmatpush.msra.mxu0 0.0
      %698 = vmatpush.msra.mxu0 %v602
      %699 = vmatpush.msra.mxu0 %v601
      %700 = vmatmul.f32.gmra.mxu0 %v637
      %v701 = vpop.f32.mrf.mxu0
      %v702 = vadd.f32 0.0, %v701
      %703 = vmatmul.f32.gmra.mxu0 %v640
      %v704 = vpop.f32.mrf.mxu0
      %v705 = vadd.f32 0.0, %v704
      %706 = vmatmul.f32.gmra.mxu0 %v643
      %v707 = vpop.f32.mrf.mxu0
      %v708 = vadd.f32 0.0, %v707
      %709 = vmatmul.f32.gmra.mxu0 %v646
      %v710 = vpop.f32.mrf.mxu0
      %v711 = vadd.f32 0.0, %v710
      %712 = vmatmul.f32.gmra.mxu0 %v649
      %v713 = vpop.f32.mrf.mxu0
      %v714 = vadd.f32 0.0, %v713
      %715 = vmatmul.f32.gmra.mxu0 %v652
      %v716 = vpop.f32.mrf.mxu0
      %v717 = vadd.f32 0.0, %v716
      %718 = vmatmul.f32.gmra.mxu0 %v655
      %v719 = vpop.f32.mrf.mxu0
      %v720 = vadd.f32 0.0, %v719
      %721 = vmatmul.f32.gmra.mxu0 %v658
      %v722 = vpop.f32.mrf.mxu0
      %v723 = vadd.f32 0.0, %v722
      %724 = vmatmul.f32.gmra.mxu0 %v661
      %v725 = vpop.f32.mrf.mxu0
      %v726 = vadd.f32 0.0, %v725
      %727 = vmatmul.f32.gmra.mxu0 %v664
      %v728 = vpop.f32.mrf.mxu0
      %v729 = vadd.f32 0.0, %v728
      %730 = vmatmul.f32.gmra.mxu0 %v667
      %v731 = vpop.f32.mrf.mxu0
      %v732 = vadd.f32 0.0, %v731
      %733 = vmatmul.f32.gmra.mxu0 %v670
      %v734 = vpop.f32.mrf.mxu0
      %v735 = vadd.f32 0.0, %v734
      %736 = vmatmul.f32.gmra.mxu0 %v673
      %v737 = vpop.f32.mrf.mxu0
      %v738 = vadd.f32 0.0, %v737
      %739 = vmatmul.f32.gmra.mxu0 %v676
      %v740 = vpop.f32.mrf.mxu0
      %v741 = vadd.f32 0.0, %v740
      %742 = vmatmul.f32.gmra.mxu0 %v679
      %v743 = vpop.f32.mrf.mxu0
      %v744 = vadd.f32 0.0, %v743
      %745 = vmatmul.f32.gmra.mxu0 %v682
      %v746 = vpop.f32.mrf.mxu0
      %v747 = vadd.f32 0.0, %v746
      %748 = vdwg.mxu0
      %v749 = vld [vmem:[%s9] sm:$0xff]
      %v750 = vld [vmem:[%s9 + $0x8] sm:$0xff]
      %v751 = vld [vmem:[%s9 + $0x10] sm:$0xff]
      %v752 = vld [vmem:[%s9 + $0x18] sm:$0xff]
      %v753 = vld [vmem:[%s9 + $0x20] sm:$0xff]
      %v754 = vld [vmem:[%s9 + $0x28] sm:$0xff]
      %v755 = vld [vmem:[%s9 + $0x30] sm:$0xff]
      %v756 = vld [vmem:[%s9 + $0x38] sm:$0xff]
      %v757 = vld [vmem:[%s10] sm:$0x1]
      %v759 = vperm.slane %v757, 0
      %vm761 = vcmask 523264
      %v763 = vsel %vm761, %v702, 0
      %v766 = vsel %vm761, %v705, 0
      %v769 = vsel %vm761, %v708, 0
      %v772 = vsel %vm761, %v711, 0
      %v775 = vsel %vm761, %v714, 0
      %v778 = vsel %vm761, %v717, 0
      %v781 = vsel %vm761, %v720, 0
      %v784 = vsel %vm761, %v723, 0
      %v787 = vsel %vm761, %v726, 0
      %v790 = vsel %vm761, %v729, 0
      %v793 = vsel %vm761, %v732, 0
      %v796 = vsel %vm761, %v735, 0
      %v799 = vsel %vm761, %v738, 0
      %v802 = vsel %vm761, %v741, 0
      %v805 = vsel %vm761, %v744, 0
      %v808 = vsel %vm761, %v747, 0
      %810 = vmatpush.msra.mxu0 0.0
      %811 = vmatpush.msra.mxu0 0.0
      %812 = vmatpush.msra.mxu0 0.0
      %813 = vmatpush.msra.mxu0 0.0
      %814 = vmatpush.msra.mxu0 0.0
      %815 = vmatpush.msra.mxu0 0.0
      %816 = vmatpush.msra.mxu0 0.0
      %817 = vmatpush.msra.mxu0 0.0
      %818 = vmatpush.msra.mxu0 %v756
      %819 = vmatpush.msra.mxu0 %v755
      %820 = vmatpush.msra.mxu0 %v754
      %821 = vmatpush.msra.mxu0 %v753
      %822 = vmatpush.msra.mxu0 %v752
      %823 = vmatpush.msra.mxu0 %v751
      %824 = vmatpush.msra.mxu0 %v750
      %825 = vmatpush.msra.mxu0 %v749
      %826 = vmatmul.f32.gmra.mxu0 %v763
      %v827 = vpop.f32.mrf.mxu0
      %v828 = vadd.f32 %v759, %v827
      %829 = vmatmul.f32.gmra.mxu0 %v766
      %v830 = vpop.f32.mrf.mxu0
      %v831 = vadd.f32 %v759, %v830
      %832 = vmatmul.f32.gmra.mxu0 %v769
      %v833 = vpop.f32.mrf.mxu0
      %v834 = vadd.f32 %v759, %v833
      %835 = vmatmul.f32.gmra.mxu0 %v772
      %v836 = vpop.f32.mrf.mxu0
      %v837 = vadd.f32 %v759, %v836
      %838 = vmatmul.f32.gmra.mxu0 %v775
      %v839 = vpop.f32.mrf.mxu0
      %v840 = vadd.f32 %v759, %v839
      %841 = vmatmul.f32.gmra.mxu0 %v778
      %v842 = vpop.f32.mrf.mxu0
      %v843 = vadd.f32 %v759, %v842
      %844 = vmatmul.f32.gmra.mxu0 %v781
      %v845 = vpop.f32.mrf.mxu0
      %v846 = vadd.f32 %v759, %v845
      %847 = vmatmul.f32.gmra.mxu0 %v784
      %v848 = vpop.f32.mrf.mxu0
      %v849 = vadd.f32 %v759, %v848
      %850 = vmatmul.f32.gmra.mxu0 %v787
      %v851 = vpop.f32.mrf.mxu0
      %v852 = vadd.f32 %v759, %v851
      %853 = vmatmul.f32.gmra.mxu0 %v790
      %v854 = vpop.f32.mrf.mxu0
      %v855 = vadd.f32 %v759, %v854
      %856 = vmatmul.f32.gmra.mxu0 %v793
      %v857 = vpop.f32.mrf.mxu0
      %v858 = vadd.f32 %v759, %v857
      %859 = vmatmul.f32.gmra.mxu0 %v796
      %v860 = vpop.f32.mrf.mxu0
      %v861 = vadd.f32 %v759, %v860
      %862 = vmatmul.f32.gmra.mxu0 %v799
      %v863 = vpop.f32.mrf.mxu0
      %v864 = vadd.f32 %v759, %v863
      %865 = vmatmul.f32.gmra.mxu0 %v802
      %v866 = vpop.f32.mrf.mxu0
      %v867 = vadd.f32 %v759, %v866
      %868 = vmatmul.f32.gmra.mxu0 %v805
      %v869 = vpop.f32.mrf.mxu0
      %v870 = vadd.f32 %v759, %v869
      %871 = vmatmul.f32.gmra.mxu0 %v808
      %v872 = vpop.f32.mrf.mxu0
      %v873 = vadd.f32 %v759, %v872
      %874 = vdwg.mxu0
      %v875 = vmax.f32 %v828, 0.0
      %v876 = vmax.f32 %v831, 0.0
      %v877 = vmax.f32 %v834, 0.0
      %v878 = vmax.f32 %v837, 0.0
      %v879 = vmax.f32 %v840, 0.0
      %v880 = vmax.f32 %v843, 0.0
      %v881 = vmax.f32 %v846, 0.0
      %v882 = vmax.f32 %v849, 0.0
      %v883 = vmax.f32 %v852, 0.0
      %v884 = vmax.f32 %v855, 0.0
      %v885 = vmax.f32 %v858, 0.0
      %v886 = vmax.f32 %v861, 0.0
      %v887 = vmax.f32 %v864, 0.0
      %v888 = vmax.f32 %v867, 0.0
      %v889 = vmax.f32 %v870, 0.0
      %v890 = vmax.f32 %v873, 0.0
      %v891 = vmul.f32 %v875, %v533
      %v892 = vmul.f32 %v876, %v534
      %v893 = vmul.f32 %v877, %v535
      %v894 = vmul.f32 %v878, %v536
      %v895 = vmul.f32 %v879, %v537
      %v896 = vmul.f32 %v880, %v538
      %v897 = vmul.f32 %v881, %v539
      %v898 = vmul.f32 %v882, %v540
      %v899 = vmul.f32 %v883, %v541
      %v900 = vmul.f32 %v884, %v542
      %v901 = vmul.f32 %v885, %v543
      %v902 = vmul.f32 %v886, %v544
      %v903 = vmul.f32 %v887, %v545
      %v904 = vmul.f32 %v888, %v546
      %v905 = vmul.f32 %v889, %v547
      %v906 = vmul.f32 %v890, %v548
      %v907 = vmul.f32 %v891, 0.2
      %v908 = vmul.f32 %v892, 0.2
      %v909 = vmul.f32 %v893, 0.2
      %v910 = vmul.f32 %v894, 0.2
      %v911 = vmul.f32 %v895, 0.2
      %v912 = vmul.f32 %v896, 0.2
      %v913 = vmul.f32 %v897, 0.2
      %v914 = vmul.f32 %v898, 0.2
      %v915 = vmul.f32 %v899, 0.2
      %v916 = vmul.f32 %v900, 0.2
      %v917 = vmul.f32 %v901, 0.2
      %v918 = vmul.f32 %v902, 0.2
      %v919 = vmul.f32 %v903, 0.2
      %v920 = vmul.f32 %v904, 0.2
      %v921 = vmul.f32 %v905, 0.2
      %v922 = vmul.f32 %v906, 0.2
      %v923 = vmul.f32 %v702, 0.8
      %v924 = vmul.f32 %v705, 0.8
      %v925 = vmul.f32 %v708, 0.8
      %v926 = vmul.f32 %v711, 0.8
      %v927 = vmul.f32 %v714, 0.8
      %v928 = vmul.f32 %v717, 0.8
      %v929 = vmul.f32 %v720, 0.8
      %v930 = vmul.f32 %v723, 0.8
      %v931 = vmul.f32 %v726, 0.8
      %v932 = vmul.f32 %v729, 0.8
      %v933 = vmul.f32 %v732, 0.8
      %v934 = vmul.f32 %v735, 0.8
      %v935 = vmul.f32 %v738, 0.8
      %v936 = vmul.f32 %v741, 0.8
      %v937 = vmul.f32 %v744, 0.8
      %v938 = vmul.f32 %v747, 0.8
      %v939 = vadd.f32 %v907, %v923
      %v940 = vadd.f32 %v908, %v924
      %v941 = vadd.f32 %v909, %v925
      %v942 = vadd.f32 %v910, %v926
      %v943 = vadd.f32 %v911, %v927
      %v944 = vadd.f32 %v912, %v928
      %v945 = vadd.f32 %v913, %v929
      %v946 = vadd.f32 %v914, %v930
      %v947 = vadd.f32 %v915, %v931
      %v948 = vadd.f32 %v916, %v932
      %v949 = vadd.f32 %v917, %v933
      %v950 = vadd.f32 %v918, %v934
      %v951 = vadd.f32 %v919, %v935
      %v952 = vadd.f32 %v920, %v936
      %v953 = vadd.f32 %v921, %v937
      %v954 = vadd.f32 %v922, %v938
      %v955 = vmul.f32 %v891, %v891
      %v956 = vmul.f32 %v892, %v892
      %v957 = vmul.f32 %v893, %v893
      %v958 = vmul.f32 %v894, %v894
      %v959 = vmul.f32 %v895, %v895
      %v960 = vmul.f32 %v896, %v896
      %v961 = vmul.f32 %v897, %v897
      %v962 = vmul.f32 %v898, %v898
      %v963 = vmul.f32 %v899, %v899
      %v964 = vmul.f32 %v900, %v900
      %v965 = vmul.f32 %v901, %v901
      %v966 = vmul.f32 %v902, %v902
      %v967 = vmul.f32 %v903, %v903
      %v968 = vmul.f32 %v904, %v904
      %v969 = vmul.f32 %v905, %v905
      %v970 = vmul.f32 %v906, %v906
      %v971 = vsel %vm761, %v955, 0.0
      %972 = vadd.xlane.f32.xlu0 %v971
      %v973 = vpop.xlane.xlu0 %972
      %v974 = vsel %vm761, %v956, 0.0
      %975 = vadd.xlane.f32.xlu0 %v974
      %v976 = vpop.xlane.xlu0 %975
      %v977 = vsel %vm761, %v957, 0.0
      %978 = vadd.xlane.f32.xlu0 %v977
      %v979 = vpop.xlane.xlu0 %978
      %v980 = vsel %vm761, %v958, 0.0
      %981 = vadd.xlane.f32.xlu0 %v980
      %v982 = vpop.xlane.xlu0 %981
      %v983 = vsel %vm761, %v959, 0.0
      %984 = vadd.xlane.f32.xlu0 %v983
      %v985 = vpop.xlane.xlu0 %984
      %v986 = vsel %vm761, %v960, 0.0
      %987 = vadd.xlane.f32.xlu0 %v986
      %v988 = vpop.xlane.xlu0 %987
      %v989 = vsel %vm761, %v961, 0.0
      %990 = vadd.xlane.f32.xlu0 %v989
      %v991 = vpop.xlane.xlu0 %990
      %v992 = vsel %vm761, %v962, 0.0
      %993 = vadd.xlane.f32.xlu0 %v992
      %v994 = vpop.xlane.xlu0 %993
      %v995 = vsel %vm761, %v963, 0.0
      %996 = vadd.xlane.f32.xlu0 %v995
      %v997 = vpop.xlane.xlu0 %996
      %v998 = vsel %vm761, %v964, 0.0
      %999 = vadd.xlane.f32.xlu0 %v998
      %v1000 = vpop.xlane.xlu0 %999
      %v1001 = vsel %vm761, %v965, 0.0
      %1002 = vadd.xlane.f32.xlu0 %v1001
      %v1003 = vpop.xlane.xlu0 %1002
      %v1004 = vsel %vm761, %v966, 0.0
      %1005 = vadd.xlane.f32.xlu0 %v1004
      %v1006 = vpop.xlane.xlu0 %1005
      %v1007 = vsel %vm761, %v967, 0.0
      %1008 = vadd.xlane.f32.xlu0 %v1007
      %v1009 = vpop.xlane.xlu0 %1008
      %v1010 = vsel %vm761, %v968, 0.0
      %1011 = vadd.xlane.f32.xlu0 %v1010
      %v1012 = vpop.xlane.xlu0 %1011
      %v1013 = vsel %vm761, %v969, 0.0
      %1014 = vadd.xlane.f32.xlu0 %v1013
      %v1015 = vpop.xlane.xlu0 %1014
      %v1016 = vsel %vm761, %v970, 0.0
      %1017 = vadd.xlane.f32.xlu0 %v1016
      %v1018 = vpop.xlane.xlu0 %1017
      %v1019 = vrsqrt.pop %v973
      %v1020 = vmul.f32 %v1019, %v973
      %v1021 = vmul.f32 %v1020, %v1019
      %v1022 = vmul.f32 0.5, %v1021
      %v1023 = vsub.f32 1.5, %v1022
      %v1024 = vmul.f32 %v1019, %v1023
      %v1025 = vmul.f32 %v973, %v1024
      %vm1026 = vcmp.eq.f32.partialorder %v973, inf
      %v1027 = vsel %vm1026, %v973, %v1025
      %vm1028 = vcmp.eq.f32.partialorder %v973, 0.0
      %v1029 = vand.u32 %v973, 2147483648
      %v1030 = vsel %vm1028, %v1029, %v1027
      %v1031 = vrsqrt.pop %v976
      %v1032 = vmul.f32 %v1031, %v976
      %v1033 = vmul.f32 %v1032, %v1031
      %v1034 = vmul.f32 0.5, %v1033
      %v1035 = vsub.f32 1.5, %v1034
      %v1036 = vmul.f32 %v1031, %v1035
      %v1037 = vmul.f32 %v976, %v1036
      %vm1038 = vcmp.eq.f32.partialorder %v976, inf
      %v1039 = vsel %vm1038, %v976, %v1037
      %vm1040 = vcmp.eq.f32.partialorder %v976, 0.0
      %v1041 = vand.u32 %v976, 2147483648
      %v1042 = vsel %vm1040, %v1041, %v1039
      %v1043 = vrsqrt.pop %v979
      %v1044 = vmul.f32 %v1043, %v979
      %v1045 = vmul.f32 %v1044, %v1043
      %v1046 = vmul.f32 0.5, %v1045
      %v1047 = vsub.f32 1.5, %v1046
      %v1048 = vmul.f32 %v1043, %v1047
      %v1049 = vmul.f32 %v979, %v1048
      %vm1050 = vcmp.eq.f32.partialorder %v979, inf
      %v1051 = vsel %vm1050, %v979, %v1049
      %vm1052 = vcmp.eq.f32.partialorder %v979, 0.0
      %v1053 = vand.u32 %v979, 2147483648
      %v1054 = vsel %vm1052, %v1053, %v1051
      %v1055 = vrsqrt.pop %v982
      %v1056 = vmul.f32 %v1055, %v982
      %v1057 = vmul.f32 %v1056, %v1055
      %v1058 = vmul.f32 0.5, %v1057
      %v1059 = vsub.f32 1.5, %v1058
      %v1060 = vmul.f32 %v1055, %v1059
      %v1061 = vmul.f32 %v982, %v1060
      %vm1062 = vcmp.eq.f32.partialorder %v982, inf
      %v1063 = vsel %vm1062, %v982, %v1061
      %vm1064 = vcmp.eq.f32.partialorder %v982, 0.0
      %v1065 = vand.u32 %v982, 2147483648
      %v1066 = vsel %vm1064, %v1065, %v1063
      %v1067 = vrsqrt.pop %v985
      %v1068 = vmul.f32 %v1067, %v985
      %v1069 = vmul.f32 %v1068, %v1067
      %v1070 = vmul.f32 0.5, %v1069
      %v1071 = vsub.f32 1.5, %v1070
      %v1072 = vmul.f32 %v1067, %v1071
      %v1073 = vmul.f32 %v985, %v1072
      %vm1074 = vcmp.eq.f32.partialorder %v985, inf
      %v1075 = vsel %vm1074, %v985, %v1073
      %vm1076 = vcmp.eq.f32.partialorder %v985, 0.0
      %v1077 = vand.u32 %v985, 2147483648
      %v1078 = vsel %vm1076, %v1077, %v1075
      %v1079 = vrsqrt.pop %v988
      %v1080 = vmul.f32 %v1079, %v988
      %v1081 = vmul.f32 %v1080, %v1079
      %v1082 = vmul.f32 0.5, %v1081
      %v1083 = vsub.f32 1.5, %v1082
      %v1084 = vmul.f32 %v1079, %v1083
      %v1085 = vmul.f32 %v988, %v1084
      %vm1086 = vcmp.eq.f32.partialorder %v988, inf
      %v1087 = vsel %vm1086, %v988, %v1085
      %vm1088 = vcmp.eq.f32.partialorder %v988, 0.0
      %v1089 = vand.u32 %v988, 2147483648
      %v1090 = vsel %vm1088, %v1089, %v1087
      %v1091 = vrsqrt.pop %v991
      %v1092 = vmul.f32 %v1091, %v991
      %v1093 = vmul.f32 %v1092, %v1091
      %v1094 = vmul.f32 0.5, %v1093
      %v1095 = vsub.f32 1.5, %v1094
      %v1096 = vmul.f32 %v1091, %v1095
      %v1097 = vmul.f32 %v991, %v1096
      %vm1098 = vcmp.eq.f32.partialorder %v991, inf
      %v1099 = vsel %vm1098, %v991, %v1097
      %vm1100 = vcmp.eq.f32.partialorder %v991, 0.0
      %v1101 = vand.u32 %v991, 2147483648
      %v1102 = vsel %vm1100, %v1101, %v1099
      %v1103 = vrsqrt.pop %v994
      %v1104 = vmul.f32 %v1103, %v994
      %v1105 = vmul.f32 %v1104, %v1103
      %v1106 = vmul.f32 0.5, %v1105
      %v1107 = vsub.f32 1.5, %v1106
      %v1108 = vmul.f32 %v1103, %v1107
      %v1109 = vmul.f32 %v994, %v1108
      %vm1110 = vcmp.eq.f32.partialorder %v994, inf
      %v1111 = vsel %vm1110, %v994, %v1109
      %vm1112 = vcmp.eq.f32.partialorder %v994, 0.0
      %v1113 = vand.u32 %v994, 2147483648
      %v1114 = vsel %vm1112, %v1113, %v1111
      %v1115 = vrsqrt.pop %v997
      %v1116 = vmul.f32 %v1115, %v997
      %v1117 = vmul.f32 %v1116, %v1115
      %v1118 = vmul.f32 0.5, %v1117
      %v1119 = vsub.f32 1.5, %v1118
      %v1120 = vmul.f32 %v1115, %v1119
      %v1121 = vmul.f32 %v997, %v1120
      %vm1122 = vcmp.eq.f32.partialorder %v997, inf
      %v1123 = vsel %vm1122, %v997, %v1121
      %vm1124 = vcmp.eq.f32.partialorder %v997, 0.0
      %v1125 = vand.u32 %v997, 2147483648
      %v1126 = vsel %vm1124, %v1125, %v1123
      %v1127 = vrsqrt.pop %v1000
      %v1128 = vmul.f32 %v1127, %v1000
      %v1129 = vmul.f32 %v1128, %v1127
      %v1130 = vmul.f32 0.5, %v1129
      %v1131 = vsub.f32 1.5, %v1130
      %v1132 = vmul.f32 %v1127, %v1131
      %v1133 = vmul.f32 %v1000, %v1132
      %vm1134 = vcmp.eq.f32.partialorder %v1000, inf
      %v1135 = vsel %vm1134, %v1000, %v1133
      %vm1136 = vcmp.eq.f32.partialorder %v1000, 0.0
      %v1137 = vand.u32 %v1000, 2147483648
      %v1138 = vsel %vm1136, %v1137, %v1135
      %v1139 = vrsqrt.pop %v1003
      %v1140 = vmul.f32 %v1139, %v1003
      %v1141 = vmul.f32 %v1140, %v1139
      %v1142 = vmul.f32 0.5, %v1141
      %v1143 = vsub.f32 1.5, %v1142
      %v1144 = vmul.f32 %v1139, %v1143
      %v1145 = vmul.f32 %v1003, %v1144
      %vm1146 = vcmp.eq.f32.partialorder %v1003, inf
      %v1147 = vsel %vm1146, %v1003, %v1145
      %vm1148 = vcmp.eq.f32.partialorder %v1003, 0.0
      %v1149 = vand.u32 %v1003, 2147483648
      %v1150 = vsel %vm1148, %v1149, %v1147
      %v1151 = vrsqrt.pop %v1006
      %v1152 = vmul.f32 %v1151, %v1006
      %v1153 = vmul.f32 %v1152, %v1151
      %v1154 = vmul.f32 0.5, %v1153
      %v1155 = vsub.f32 1.5, %v1154
      %v1156 = vmul.f32 %v1151, %v1155
      %v1157 = vmul.f32 %v1006, %v1156
      %vm1158 = vcmp.eq.f32.partialorder %v1006, inf
      %v1159 = vsel %vm1158, %v1006, %v1157
      %vm1160 = vcmp.eq.f32.partialorder %v1006, 0.0
      %v1161 = vand.u32 %v1006, 2147483648
      %v1162 = vsel %vm1160, %v1161, %v1159
      %v1163 = vrsqrt.pop %v1009
      %v1164 = vmul.f32 %v1163, %v1009
      %v1165 = vmul.f32 %v1164, %v1163
      %v1166 = vmul.f32 0.5, %v1165
      %v1167 = vsub.f32 1.5, %v1166
      %v1168 = vmul.f32 %v1163, %v1167
      %v1169 = vmul.f32 %v1009, %v1168
      %vm1170 = vcmp.eq.f32.partialorder %v1009, inf
      %v1171 = vsel %vm1170, %v1009, %v1169
      %vm1172 = vcmp.eq.f32.partialorder %v1009, 0.0
      %v1173 = vand.u32 %v1009, 2147483648
      %v1174 = vsel %vm1172, %v1173, %v1171
      %v1175 = vrsqrt.pop %v1012
      %v1176 = vmul.f32 %v1175, %v1012
      %v1177 = vmul.f32 %v1176, %v1175
      %v1178 = vmul.f32 0.5, %v1177
      %v1179 = vsub.f32 1.5, %v1178
      %v1180 = vmul.f32 %v1175, %v1179
      %v1181 = vmul.f32 %v1012, %v1180
      %vm1182 = vcmp.eq.f32.partialorder %v1012, inf
      %v1183 = vsel %vm1182, %v1012, %v1181
      %vm1184 = vcmp.eq.f32.partialorder %v1012, 0.0
      %v1185 = vand.u32 %v1012, 2147483648
      %v1186 = vsel %vm1184, %v1185, %v1183
      %v1187 = vrsqrt.pop %v1015
      %v1188 = vmul.f32 %v1187, %v1015
      %v1189 = vmul.f32 %v1188, %v1187
      %v1190 = vmul.f32 0.5, %v1189
      %v1191 = vsub.f32 1.5, %v1190
      %v1192 = vmul.f32 %v1187, %v1191
      %v1193 = vmul.f32 %v1015, %v1192
      %vm1194 = vcmp.eq.f32.partialorder %v1015, inf
      %v1195 = vsel %vm1194, %v1015, %v1193
      %vm1196 = vcmp.eq.f32.partialorder %v1015, 0.0
      %v1197 = vand.u32 %v1015, 2147483648
      %v1198 = vsel %vm1196, %v1197, %v1195
      %v1199 = vrsqrt.pop %v1018
      %v1200 = vmul.f32 %v1199, %v1018
      %v1201 = vmul.f32 %v1200, %v1199
      %v1202 = vmul.f32 0.5, %v1201
      %v1203 = vsub.f32 1.5, %v1202
      %v1204 = vmul.f32 %v1199, %v1203
      %v1205 = vmul.f32 %v1018, %v1204
      %vm1206 = vcmp.eq.f32.partialorder %v1018, inf
      %v1207 = vsel %vm1206, %v1018, %v1205
      %vm1208 = vcmp.eq.f32.partialorder %v1018, 0.0
      %v1209 = vand.u32 %v1018, 2147483648
      %v1210 = vsel %vm1208, %v1209, %v1207
      %v1211 = vmax.f32 %v1030, 1e-12
      %v1212 = vmax.f32 %v1042, 1e-12
      %v1213 = vmax.f32 %v1054, 1e-12
      %v1214 = vmax.f32 %v1066, 1e-12
      %v1215 = vmax.f32 %v1078, 1e-12
      %v1216 = vmax.f32 %v1090, 1e-12
      %v1217 = vmax.f32 %v1102, 1e-12
      %v1218 = vmax.f32 %v1114, 1e-12
      %v1219 = vmax.f32 %v1126, 1e-12
      %v1220 = vmax.f32 %v1138, 1e-12
      %v1221 = vmax.f32 %v1150, 1e-12
      %v1222 = vmax.f32 %v1162, 1e-12
      %v1223 = vmax.f32 %v1174, 1e-12
      %v1224 = vmax.f32 %v1186, 1e-12
      %v1225 = vmax.f32 %v1198, 1e-12
      %v1226 = vmax.f32 %v1210, 1e-12
      %v1227 = vrcp.pop %v1211
      %v1228 = vmul.f32 %v1211, %v1227
      %v1229 = vsub.f32 1.0, %v1228
      %v1230 = vmul.f32 %v1227, %v1229
      %v1231 = vadd.f32 %v1227, %v1230
      %vm1232 = vweird.f32 %v1211
      %vm1233 = vweird.f32 %v1227
      %vm1234 = vmor %vm1232, %vm1233
      %v1235 = vsel %vm1234, %v1227, %v1231
      %v1236 = vand.u32 2147483647, %v1211
      %vm1237 = vcmp.eq.f32.partialorder %v1236, 8.507059e+37
      %v1238 = vand.u32 %v1211, 2147483648
      %v1239 = vor.u32 1.1754944e-38, %v1238
      %v1240 = vsel %vm1237, %v1239, %v1235
      %v1241 = vmul.f32 %v891, %v1240
      %v1242 = vrcp.pop %v1212
      %v1243 = vmul.f32 %v1212, %v1242
      %v1244 = vsub.f32 1.0, %v1243
      %v1245 = vmul.f32 %v1242, %v1244
      %v1246 = vadd.f32 %v1242, %v1245
      %vm1247 = vweird.f32 %v1212
      %vm1248 = vweird.f32 %v1242
      %vm1249 = vmor %vm1247, %vm1248
      %v1250 = vsel %vm1249, %v1242, %v1246
      %v1251 = vand.u32 2147483647, %v1212
      %vm1252 = vcmp.eq.f32.partialorder %v1251, 8.507059e+37
      %v1253 = vand.u32 %v1212, 2147483648
      %v1254 = vor.u32 1.1754944e-38, %v1253
      %v1255 = vsel %vm1252, %v1254, %v1250
      %v1256 = vmul.f32 %v892, %v1255
      %v1257 = vrcp.pop %v1213
      %v1258 = vmul.f32 %v1213, %v1257
      %v1259 = vsub.f32 1.0, %v1258
      %v1260 = vmul.f32 %v1257, %v1259
      %v1261 = vadd.f32 %v1257, %v1260
      %vm1262 = vweird.f32 %v1213
      %vm1263 = vweird.f32 %v1257
      %vm1264 = vmor %vm1262, %vm1263
      %v1265 = vsel %vm1264, %v1257, %v1261
      %v1266 = vand.u32 2147483647, %v1213
      %vm1267 = vcmp.eq.f32.partialorder %v1266, 8.507059e+37
      %v1268 = vand.u32 %v1213, 2147483648
      %v1269 = vor.u32 1.1754944e-38, %v1268
      %v1270 = vsel %vm1267, %v1269, %v1265
      %v1271 = vmul.f32 %v893, %v1270
      %v1272 = vrcp.pop %v1214
      %v1273 = vmul.f32 %v1214, %v1272
      %v1274 = vsub.f32 1.0, %v1273
      %v1275 = vmul.f32 %v1272, %v1274
      %v1276 = vadd.f32 %v1272, %v1275
      %vm1277 = vweird.f32 %v1214
      %vm1278 = vweird.f32 %v1272
      %vm1279 = vmor %vm1277, %vm1278
      %v1280 = vsel %vm1279, %v1272, %v1276
      %v1281 = vand.u32 2147483647, %v1214
      %vm1282 = vcmp.eq.f32.partialorder %v1281, 8.507059e+37
      %v1283 = vand.u32 %v1214, 2147483648
      %v1284 = vor.u32 1.1754944e-38, %v1283
      %v1285 = vsel %vm1282, %v1284, %v1280
      %v1286 = vmul.f32 %v894, %v1285
      %v1287 = vrcp.pop %v1215
      %v1288 = vmul.f32 %v1215, %v1287
      %v1289 = vsub.f32 1.0, %v1288
      %v1290 = vmul.f32 %v1287, %v1289
      %v1291 = vadd.f32 %v1287, %v1290
      %vm1292 = vweird.f32 %v1215
      %vm1293 = vweird.f32 %v1287
      %vm1294 = vmor %vm1292, %vm1293
      %v1295 = vsel %vm1294, %v1287, %v1291
      %v1296 = vand.u32 2147483647, %v1215
      %vm1297 = vcmp.eq.f32.partialorder %v1296, 8.507059e+37
      %v1298 = vand.u32 %v1215, 2147483648
      %v1299 = vor.u32 1.1754944e-38, %v1298
      %v1300 = vsel %vm1297, %v1299, %v1295
      %v1301 = vmul.f32 %v895, %v1300
      %v1302 = vrcp.pop %v1216
      %v1303 = vmul.f32 %v1216, %v1302
      %v1304 = vsub.f32 1.0, %v1303
      %v1305 = vmul.f32 %v1302, %v1304
      %v1306 = vadd.f32 %v1302, %v1305
      %vm1307 = vweird.f32 %v1216
      %vm1308 = vweird.f32 %v1302
      %vm1309 = vmor %vm1307, %vm1308
      %v1310 = vsel %vm1309, %v1302, %v1306
      %v1311 = vand.u32 2147483647, %v1216
      %vm1312 = vcmp.eq.f32.partialorder %v1311, 8.507059e+37
      %v1313 = vand.u32 %v1216, 2147483648
      %v1314 = vor.u32 1.1754944e-38, %v1313
      %v1315 = vsel %vm1312, %v1314, %v1310
      %v1316 = vmul.f32 %v896, %v1315
      %v1317 = vrcp.pop %v1217
      %v1318 = vmul.f32 %v1217, %v1317
      %v1319 = vsub.f32 1.0, %v1318
      %v1320 = vmul.f32 %v1317, %v1319
      %v1321 = vadd.f32 %v1317, %v1320
      %vm1322 = vweird.f32 %v1217
      %vm1323 = vweird.f32 %v1317
      %vm1324 = vmor %vm1322, %vm1323
      %v1325 = vsel %vm1324, %v1317, %v1321
      %v1326 = vand.u32 2147483647, %v1217
      %vm1327 = vcmp.eq.f32.partialorder %v1326, 8.507059e+37
      %v1328 = vand.u32 %v1217, 2147483648
      %v1329 = vor.u32 1.1754944e-38, %v1328
      %v1330 = vsel %vm1327, %v1329, %v1325
      %v1331 = vmul.f32 %v897, %v1330
      %v1332 = vrcp.pop %v1218
      %v1333 = vmul.f32 %v1218, %v1332
      %v1334 = vsub.f32 1.0, %v1333
      %v1335 = vmul.f32 %v1332, %v1334
      %v1336 = vadd.f32 %v1332, %v1335
      %vm1337 = vweird.f32 %v1218
      %vm1338 = vweird.f32 %v1332
      %vm1339 = vmor %vm1337, %vm1338
      %v1340 = vsel %vm1339, %v1332, %v1336
      %v1341 = vand.u32 2147483647, %v1218
      %vm1342 = vcmp.eq.f32.partialorder %v1341, 8.507059e+37
      %v1343 = vand.u32 %v1218, 2147483648
      %v1344 = vor.u32 1.1754944e-38, %v1343
      %v1345 = vsel %vm1342, %v1344, %v1340
      %v1346 = vmul.f32 %v898, %v1345
      %v1347 = vrcp.pop %v1219
      %v1348 = vmul.f32 %v1219, %v1347
      %v1349 = vsub.f32 1.0, %v1348
      %v1350 = vmul.f32 %v1347, %v1349
      %v1351 = vadd.f32 %v1347, %v1350
      %vm1352 = vweird.f32 %v1219
      %vm1353 = vweird.f32 %v1347
      %vm1354 = vmor %vm1352, %vm1353
      %v1355 = vsel %vm1354, %v1347, %v1351
      %v1356 = vand.u32 2147483647, %v1219
      %vm1357 = vcmp.eq.f32.partialorder %v1356, 8.507059e+37
      %v1358 = vand.u32 %v1219, 2147483648
      %v1359 = vor.u32 1.1754944e-38, %v1358
      %v1360 = vsel %vm1357, %v1359, %v1355
      %v1361 = vmul.f32 %v899, %v1360
      %v1362 = vrcp.pop %v1220
      %v1363 = vmul.f32 %v1220, %v1362
      %v1364 = vsub.f32 1.0, %v1363
      %v1365 = vmul.f32 %v1362, %v1364
      %v1366 = vadd.f32 %v1362, %v1365
      %vm1367 = vweird.f32 %v1220
      %vm1368 = vweird.f32 %v1362
      %vm1369 = vmor %vm1367, %vm1368
      %v1370 = vsel %vm1369, %v1362, %v1366
      %v1371 = vand.u32 2147483647, %v1220
      %vm1372 = vcmp.eq.f32.partialorder %v1371, 8.507059e+37
      %v1373 = vand.u32 %v1220, 2147483648
      %v1374 = vor.u32 1.1754944e-38, %v1373
      %v1375 = vsel %vm1372, %v1374, %v1370
      %v1376 = vmul.f32 %v900, %v1375
      %v1377 = vrcp.pop %v1221
      %v1378 = vmul.f32 %v1221, %v1377
      %v1379 = vsub.f32 1.0, %v1378
      %v1380 = vmul.f32 %v1377, %v1379
      %v1381 = vadd.f32 %v1377, %v1380
      %vm1382 = vweird.f32 %v1221
      %vm1383 = vweird.f32 %v1377
      %vm1384 = vmor %vm1382, %vm1383
      %v1385 = vsel %vm1384, %v1377, %v1381
      %v1386 = vand.u32 2147483647, %v1221
      %vm1387 = vcmp.eq.f32.partialorder %v1386, 8.507059e+37
      %v1388 = vand.u32 %v1221, 2147483648
      %v1389 = vor.u32 1.1754944e-38, %v1388
      %v1390 = vsel %vm1387, %v1389, %v1385
      %v1391 = vmul.f32 %v901, %v1390
      %v1392 = vrcp.pop %v1222
      %v1393 = vmul.f32 %v1222, %v1392
      %v1394 = vsub.f32 1.0, %v1393
      %v1395 = vmul.f32 %v1392, %v1394
      %v1396 = vadd.f32 %v1392, %v1395
      %vm1397 = vweird.f32 %v1222
      %vm1398 = vweird.f32 %v1392
      %vm1399 = vmor %vm1397, %vm1398
      %v1400 = vsel %vm1399, %v1392, %v1396
      %v1401 = vand.u32 2147483647, %v1222
      %vm1402 = vcmp.eq.f32.partialorder %v1401, 8.507059e+37
      %v1403 = vand.u32 %v1222, 2147483648
      %v1404 = vor.u32 1.1754944e-38, %v1403
      %v1405 = vsel %vm1402, %v1404, %v1400
      %v1406 = vmul.f32 %v902, %v1405
      %v1407 = vrcp.pop %v1223
      %v1408 = vmul.f32 %v1223, %v1407
      %v1409 = vsub.f32 1.0, %v1408
      %v1410 = vmul.f32 %v1407, %v1409
      %v1411 = vadd.f32 %v1407, %v1410
      %vm1412 = vweird.f32 %v1223
      %vm1413 = vweird.f32 %v1407
      %vm1414 = vmor %vm1412, %vm1413
      %v1415 = vsel %vm1414, %v1407, %v1411
      %v1416 = vand.u32 2147483647, %v1223
      %vm1417 = vcmp.eq.f32.partialorder %v1416, 8.507059e+37
      %v1418 = vand.u32 %v1223, 2147483648
      %v1419 = vor.u32 1.1754944e-38, %v1418
      %v1420 = vsel %vm1417, %v1419, %v1415
      %v1421 = vmul.f32 %v903, %v1420
      %v1422 = vrcp.pop %v1224
      %v1423 = vmul.f32 %v1224, %v1422
      %v1424 = vsub.f32 1.0, %v1423
      %v1425 = vmul.f32 %v1422, %v1424
      %v1426 = vadd.f32 %v1422, %v1425
      %vm1427 = vweird.f32 %v1224
      %vm1428 = vweird.f32 %v1422
      %vm1429 = vmor %vm1427, %vm1428
      %v1430 = vsel %vm1429, %v1422, %v1426
      %v1431 = vand.u32 2147483647, %v1224
      %vm1432 = vcmp.eq.f32.partialorder %v1431, 8.507059e+37
      %v1433 = vand.u32 %v1224, 2147483648
      %v1434 = vor.u32 1.1754944e-38, %v1433
      %v1435 = vsel %vm1432, %v1434, %v1430
      %v1436 = vmul.f32 %v904, %v1435
      %v1437 = vrcp.pop %v1225
      %v1438 = vmul.f32 %v1225, %v1437
      %v1439 = vsub.f32 1.0, %v1438
      %v1440 = vmul.f32 %v1437, %v1439
      %v1441 = vadd.f32 %v1437, %v1440
      %vm1442 = vweird.f32 %v1225
      %vm1443 = vweird.f32 %v1437
      %vm1444 = vmor %vm1442, %vm1443
      %v1445 = vsel %vm1444, %v1437, %v1441
      %v1446 = vand.u32 2147483647, %v1225
      %vm1447 = vcmp.eq.f32.partialorder %v1446, 8.507059e+37
      %v1448 = vand.u32 %v1225, 2147483648
      %v1449 = vor.u32 1.1754944e-38, %v1448
      %v1450 = vsel %vm1447, %v1449, %v1445
      %v1451 = vmul.f32 %v905, %v1450
      %v1452 = vrcp.pop %v1226
      %v1453 = vmul.f32 %v1226, %v1452
      %v1454 = vsub.f32 1.0, %v1453
      %v1455 = vmul.f32 %v1452, %v1454
      %v1456 = vadd.f32 %v1452, %v1455
      %vm1457 = vweird.f32 %v1226
      %vm1458 = vweird.f32 %v1452
      %vm1459 = vmor %vm1457, %vm1458
      %v1460 = vsel %vm1459, %v1452, %v1456
      %v1461 = vand.u32 2147483647, %v1226
      %vm1462 = vcmp.eq.f32.partialorder %v1461, 8.507059e+37
      %v1463 = vand.u32 %v1226, 2147483648
      %v1464 = vor.u32 1.1754944e-38, %v1463
      %v1465 = vsel %vm1462, %v1464, %v1460
      %v1466 = vmul.f32 %v906, %v1465
      %v1468 = vsel %vm761, %v1241, 0
      %v1471 = vsel %vm761, %v1256, 0
      %v1474 = vsel %vm761, %v1271, 0
      %v1477 = vsel %vm761, %v1286, 0
      %v1480 = vsel %vm761, %v1301, 0
      %v1483 = vsel %vm761, %v1316, 0
      %v1486 = vsel %vm761, %v1331, 0
      %v1489 = vsel %vm761, %v1346, 0
      %v1492 = vsel %vm761, %v1361, 0
      %v1495 = vsel %vm761, %v1376, 0
      %v1498 = vsel %vm761, %v1391, 0
      %v1501 = vsel %vm761, %v1406, 0
      %v1504 = vsel %vm761, %v1421, 0
      %v1507 = vsel %vm761, %v1436, 0
      %v1510 = vsel %vm761, %v1451, 0
      %v1513 = vsel %vm761, %v1466, 0
      %1515 = vmatpush.xpose.msra.mxu0 %v1513
      %1516 = vmatpush.xpose.msra.mxu0 %v1510
      %1517 = vmatpush.xpose.msra.mxu0 %v1507
      %1518 = vmatpush.xpose.msra.mxu0 %v1504
      %1519 = vmatpush.xpose.msra.mxu0 %v1501
      %1520 = vmatpush.xpose.msra.mxu0 %v1498
      %1521 = vmatpush.xpose.msra.mxu0 %v1495
      %1522 = vmatpush.xpose.msra.mxu0 %v1492
      %1523 = vmatpush.xpose.msra.mxu0 %v1489
      %1524 = vmatpush.xpose.msra.mxu0 %v1486
      %1525 = vmatpush.xpose.msra.mxu0 %v1483
      %1526 = vmatpush.xpose.msra.mxu0 %v1480
      %1527 = vmatpush.xpose.msra.mxu0 %v1477
      %1528 = vmatpush.xpose.msra.mxu0 %v1474
      %1529 = vmatpush.xpose.msra.mxu0 %v1471
      %1530 = vmatpush.xpose.msra.mxu0 %v1468
      %1531 = vmatmul.f32.gmra.mxu0 %v1468
      %v1532 = vpop.f32.mrf.mxu0
      %v1533 = vadd.f32 0.0, %v1532
      %1534 = vmatmul.f32.gmra.mxu0 %v1471
      %v1535 = vpop.f32.mrf.mxu0
      %v1536 = vadd.f32 0.0, %v1535
      %1537 = vmatmul.f32.gmra.mxu0 %v1474
      %v1538 = vpop.f32.mrf.mxu0
      %v1539 = vadd.f32 0.0, %v1538
      %1540 = vmatmul.f32.gmra.mxu0 %v1477
      %v1541 = vpop.f32.mrf.mxu0
      %v1542 = vadd.f32 0.0, %v1541
      %1543 = vmatmul.f32.gmra.mxu0 %v1480
      %v1544 = vpop.f32.mrf.mxu0
      %v1545 = vadd.f32 0.0, %v1544
      %1546 = vmatmul.f32.gmra.mxu0 %v1483
      %v1547 = vpop.f32.mrf.mxu0
      %v1548 = vadd.f32 0.0, %v1547
      %1549 = vmatmul.f32.gmra.mxu0 %v1486
      %v1550 = vpop.f32.mrf.mxu0
      %v1551 = vadd.f32 0.0, %v1550
      %1552 = vmatmul.f32.gmra.mxu0 %v1489
      %v1553 = vpop.f32.mrf.mxu0
      %v1554 = vadd.f32 0.0, %v1553
      %1555 = vmatmul.f32.gmra.mxu0 %v1492
      %v1556 = vpop.f32.mrf.mxu0
      %v1557 = vadd.f32 0.0, %v1556
      %1558 = vmatmul.f32.gmra.mxu0 %v1495
      %v1559 = vpop.f32.mrf.mxu0
      %v1560 = vadd.f32 0.0, %v1559
      %1561 = vmatmul.f32.gmra.mxu0 %v1498
      %v1562 = vpop.f32.mrf.mxu0
      %v1563 = vadd.f32 0.0, %v1562
      %1564 = vmatmul.f32.gmra.mxu0 %v1501
      %v1565 = vpop.f32.mrf.mxu0
      %v1566 = vadd.f32 0.0, %v1565
      %1567 = vmatmul.f32.gmra.mxu0 %v1504
      %v1568 = vpop.f32.mrf.mxu0
      %v1569 = vadd.f32 0.0, %v1568
      %1570 = vmatmul.f32.gmra.mxu0 %v1507
      %v1571 = vpop.f32.mrf.mxu0
      %v1572 = vadd.f32 0.0, %v1571
      %1573 = vmatmul.f32.gmra.mxu0 %v1510
      %v1574 = vpop.f32.mrf.mxu0
      %v1575 = vadd.f32 0.0, %v1574
      %1576 = vmatmul.f32.gmra.mxu0 %v1513
      %v1577 = vpop.f32.mrf.mxu0
      %v1578 = vadd.f32 0.0, %v1577
      %1579 = vdwg.mxu0
      %v1580 = vmul.f32 %v1533, %v583
      %v1581 = vmul.f32 %v1536, %v584
      %v1582 = vmul.f32 %v1539, %v585
      %v1583 = vmul.f32 %v1542, %v586
      %v1584 = vmul.f32 %v1545, %v587
      %v1585 = vmul.f32 %v1548, %v588
      %v1586 = vmul.f32 %v1551, %v589
      %v1587 = vmul.f32 %v1554, %v590
      %v1588 = vmul.f32 %v1557, %v591
      %v1589 = vmul.f32 %v1560, %v592
      %v1590 = vmul.f32 %v1563, %v593
      %v1591 = vmul.f32 %v1566, %v594
      %v1592 = vmul.f32 %v1569, %v595
      %v1593 = vmul.f32 %v1572, %v596
      %v1594 = vmul.f32 %v1575, %v597
      %v1595 = vmul.f32 %v1578, %v598
      %v1596 = vmul.f32 %v1580, %v1580
      %v1597 = vmul.f32 %v1581, %v1581
      %v1598 = vmul.f32 %v1582, %v1582
      %v1599 = vmul.f32 %v1583, %v1583
      %v1600 = vmul.f32 %v1584, %v1584
      %v1601 = vmul.f32 %v1585, %v1585
      %v1602 = vmul.f32 %v1586, %v1586
      %v1603 = vmul.f32 %v1587, %v1587
      %v1604 = vmul.f32 %v1588, %v1588
      %v1605 = vmul.f32 %v1589, %v1589
      %v1606 = vmul.f32 %v1590, %v1590
      %v1607 = vmul.f32 %v1591, %v1591
      %v1608 = vmul.f32 %v1592, %v1592
      %v1609 = vmul.f32 %v1593, %v1593
      %v1610 = vmul.f32 %v1594, %v1594
      %v1611 = vmul.f32 %v1595, %v1595
      %v1612 = vadd.f32 %v1596, %v1597
      %v1613 = vadd.f32 %v1612, %v1598
      %v1614 = vadd.f32 %v1613, %v1599
      %v1615 = vadd.f32 %v1614, %v1600
      %v1616 = vadd.f32 %v1615, %v1601
      %v1617 = vadd.f32 %v1616, %v1602
      %v1618 = vadd.f32 %v1617, %v1603
      %v1619 = vadd.f32 %v1618, %v1604
      %v1620 = vadd.f32 %v1619, %v1605
      %v1621 = vadd.f32 %v1620, %v1606
      %v1622 = vadd.f32 %v1621, %v1607
      %v1623 = vadd.f32 %v1622, %v1608
      %v1624 = vadd.f32 %v1623, %v1609
      %v1625 = vadd.f32 %v1624, %v1610
      %v1626 = vadd.f32 %v1625, %v1611
      %1627 = vadd.xlane.f32.xlu0 %v1626
      %v1628 = vpop.xlane.xlu0 %1627
      %v1629 = vrot.slane %v1628, 4
      %v1630 = vadd.f32 %v1628, %v1629
      %v1631 = vrot.slane %v1630, 2
      %v1632 = vadd.f32 %v1630, %v1631
      %v1633 = vrot.slane %v1632, 1
      %v1634 = vadd.f32 %v1632, %v1633
      %s1635 = vtos %v1634
      %s1636 = sadd.f32 %s1635, 0.0
      %v1637 = vld [vmem:[%s464] sm:$0xff]
      %v1638 = vld [vmem:[%s464 + $0x8] sm:$0xff]
      %v1639 = vld [vmem:[%s469] sm:$0xff]
      %v1640 = vld [vmem:[%s469 + $0x8] sm:$0xff]
      %v1641 = vld [vmem:[%s4] sm:$0xff]
      %v1642 = vld [vmem:[%s4 + $0x8] sm:$0xff]
      %v1644 = vsel %vm635, %v1641, 0
      %v1647 = vsel %vm635, %v1642, 0
      %1649 = vmatpush.msra.mxu0 0.0
      %1650 = vmatpush.msra.mxu0 0.0
      %1651 = vmatpush.msra.mxu0 0.0
      %1652 = vmatpush.msra.mxu0 0.0
      %1653 = vmatpush.msra.mxu0 0.0
      %1654 = vmatpush.msra.mxu0 0.0
      %1655 = vmatpush.msra.mxu0 0.0
      %1656 = vmatpush.msra.mxu0 0.0
      %1657 = vmatpush.msra.mxu0 0.0
      %1658 = vmatpush.msra.mxu0 0.0
      %1659 = vmatpush.msra.mxu0 0.0
      %1660 = vmatpush.msra.mxu0 0.0
      %1661 = vmatpush.msra.mxu0 0.0
      %1662 = vmatpush.msra.mxu0 0.0
      %1663 = vmatpush.msra.mxu0 %v1638
      %1664 = vmatpush.msra.mxu0 %v1637
      %1665 = vmatmul.f32.gmra.mxu0 %v1644
      %v1666 = vpop.f32.mrf.mxu0
      %v1667 = vadd.f32 0.0, %v1666
      %1668 = vmatmul.f32.gmra.mxu0 %v1647
      %v1669 = vpop.f32.mrf.mxu0
      %v1670 = vadd.f32 0.0, %v1669
      %1671 = vdwg.mxu0
      %vm1672 = vcmp.gt.f32.partialorder %v1667, 0.0
      %vm1673 = vcmp.gt.f32.partialorder %v1670, 0.0
      %v1674 = vmul.f32 %v1667, 0.2
      %v1675 = vmul.f32 %v1670, 0.2
      %v1676 = vsel %vm1672, %v1667, %v1674
      %v1677 = vsel %vm1673, %v1670, %v1675
      %v1678 = vld [vmem:[%s5] sm:$0xff]
      %v1679 = vld [vmem:[%s5 + $0x8] sm:$0xff]
      %v1680 = vld [vmem:[%s5 + $0x10] sm:$0xff]
      %v1681 = vld [vmem:[%s5 + $0x18] sm:$0xff]
      %v1682 = vld [vmem:[%s5 + $0x20] sm:$0xff]
      %v1683 = vld [vmem:[%s5 + $0x28] sm:$0xff]
      %v1684 = vld [vmem:[%s5 + $0x30] sm:$0xff]
      %v1685 = vld [vmem:[%s5 + $0x38] sm:$0xff]
      %v1686 = vld [vmem:[%s6] sm:$0x1]
      %v1688 = vperm.slane %v1686, 0
      %v1691 = vsel %vm761, %v1676, 0
      %v1694 = vsel %vm761, %v1677, 0
      %1696 = vmatpush.msra.mxu0 0.0
      %1697 = vmatpush.msra.mxu0 0.0
      %1698 = vmatpush.msra.mxu0 0.0
      %1699 = vmatpush.msra.mxu0 0.0
      %1700 = vmatpush.msra.mxu0 0.0
      %1701 = vmatpush.msra.mxu0 0.0
      %1702 = vmatpush.msra.mxu0 0.0
      %1703 = vmatpush.msra.mxu0 0.0
      %1704 = vmatpush.msra.mxu0 %v1685
      %1705 = vmatpush.msra.mxu0 %v1684
      %1706 = vmatpush.msra.mxu0 %v1683
      %1707 = vmatpush.msra.mxu0 %v1682
      %1708 = vmatpush.msra.mxu0 %v1681
      %1709 = vmatpush.msra.mxu0 %v1680
      %1710 = vmatpush.msra.mxu0 %v1679
      %1711 = vmatpush.msra.mxu0 %v1678
      %1712 = vmatmul.f32.gmra.mxu0 %v1691
      %v1713 = vpop.f32.mrf.mxu0
      %v1714 = vadd.f32 %v1688, %v1713
      %1715 = vmatmul.f32.gmra.mxu0 %v1694
      %v1716 = vpop.f32.mrf.mxu0
      %v1717 = vadd.f32 %v1688, %v1716
      %1718 = vdwg.mxu0
      %vm1719 = vcmp.gt.f32.partialorder %v1714, 0.0
      %vm1720 = vcmp.gt.f32.partialorder %v1717, 0.0
      %v1721 = vmul.f32 %v1714, 0.2
      %v1722 = vmul.f32 %v1717, 0.2
      %v1723 = vsel %vm1719, %v1714, %v1721
      %v1724 = vsel %vm1720, %v1717, %v1722
      %v1725 = vadd.f32 %v1637, %v1723
      %v1726 = vadd.f32 %v1638, %v1724
      %v1727 = vsel %vm635, %v1639, 0.0
      %1728 = vadd.xlane.f32.xlu0 %v1727
      %v1729 = vpop.xlane.xlu0 %1728
      %v1730 = vsel %vm635, %v1640, 0.0
      %1731 = vadd.xlane.f32.xlu0 %v1730
      %v1732 = vpop.xlane.xlu0 %1731
      %v1733 = vadd.f32 %v1729, 1e-06
      %v1734 = vadd.f32 %v1732, 1e-06
      %v1735 = vrcp.pop %v1733
      %v1736 = vrcp.pop %v1734
      %v1737 = vmul.f32 %v1735, 0.5
      %v1738 = vmul.f32 %v1736, 0.5
      %v1739 = vmul.f32 %v1737, %v1725
      %v1740 = vmul.f32 %v1738, %v1726
      %v1741 = vmul.f32 %v1725, 0.8
      %v1742 = vmul.f32 %v1726, 0.8
      %1743 = vxpose.xlu0.b32.start [1/16] %v1639, 128
      %1744 = vxpose.xlu0.b32.cont [2/16] %v1640, 128
      %1745 = vxpose.xlu0.b32.cont [3/16] 0.0, 128
      %1746 = vxpose.xlu0.b32.cont [4/16] 0.0, 128
      %1747 = vxpose.xlu0.b32.cont [5/16] 0.0, 128
      %1748 = vxpose.xlu0.b32.cont [6/16] 0.0, 128
      %1749 = vxpose.xlu0.b32.cont [7/16] 0.0, 128
      %1750 = vxpose.xlu0.b32.cont [8/16] 0.0, 128
      %1751 = vxpose.xlu0.b32.cont [9/16] 0.0, 128
      %1752 = vxpose.xlu0.b32.cont [10/16] 0.0, 128
      %1753 = vxpose.xlu0.b32.cont [11/16] 0.0, 128
      %1754 = vxpose.xlu0.b32.cont [12/16] 0.0, 128
      %1755 = vxpose.xlu0.b32.cont [13/16] 0.0, 128
      %1756 = vxpose.xlu0.b32.cont [14/16] 0.0, 128
      %1757 = vxpose.xlu0.b32.cont [15/16] 0.0, 128
      %1758 = vxpose.xlu0.b32.end [16/16] 0.0, 128
      %v1759 = vpop.trf.xlu0
      %v1760 = vpop.trf.xlu0
      %v1761 = vpop.trf.xlu0
      %v1762 = vpop.trf.xlu0
      %v1763 = vpop.trf.xlu0
      %v1764 = vpop.trf.xlu0
      %v1765 = vpop.trf.xlu0
      %v1766 = vpop.trf.xlu0
      %v1767 = vpop.trf.xlu0
      %v1768 = vpop.trf.xlu0
      %v1769 = vpop.trf.xlu0
      %v1770 = vpop.trf.xlu0
      %v1771 = vpop.trf.xlu0
      %v1772 = vpop.trf.xlu0
      %v1773 = vpop.trf.xlu0
      %v1774 = vpop.trf.xlu0
      %v1776 = vsel %vm635, %v1759, 0
      %v1779 = vsel %vm635, %v1760, 0
      %1781 = vmatpush.msra.mxu0 0.0
      %1782 = vmatpush.msra.mxu0 0.0
      %1783 = vmatpush.msra.mxu0 0.0
      %1784 = vmatpush.msra.mxu0 0.0
      %1785 = vmatpush.msra.mxu0 0.0
      %1786 = vmatpush.msra.mxu0 0.0
      %1787 = vmatpush.msra.mxu0 0.0
      %1788 = vmatpush.msra.mxu0 0.0
      %1789 = vmatpush.msra.mxu0 0.0
      %1790 = vmatpush.msra.mxu0 0.0
      %1791 = vmatpush.msra.mxu0 0.0
      %1792 = vmatpush.msra.mxu0 0.0
      %1793 = vmatpush.msra.mxu0 0.0
      %1794 = vmatpush.msra.mxu0 0.0
      %1795 = vmatpush.msra.mxu0 %v1740
      %1796 = vmatpush.msra.mxu0 %v1739
      %1797 = vmatmul.f32.gmra.mxu0 %v1776
      %v1798 = vpop.f32.mrf.mxu0
      %v1799 = vadd.f32 %v1741, %v1798
      %1800 = vmatmul.f32.gmra.mxu0 %v1779
      %v1801 = vpop.f32.mrf.mxu0
      %v1802 = vadd.f32 %v1742, %v1801
      %1803 = vdwg.mxu0
      %vm1804 = vcmp.gt.f32.partialorder %v1799, 0.0
      %vm1805 = vcmp.gt.f32.partialorder %v1802, 0.0
      %v1806 = vmul.f32 %v1799, 0.2
      %v1807 = vmul.f32 %v1802, 0.2
      %v1808 = vsel %vm1804, %v1799, %v1806
      %v1809 = vsel %vm1805, %v1802, %v1807
      %v1810 = vld [vmem:[%s7] sm:$0xff]
      %v1811 = vld [vmem:[%s7 + $0x8] sm:$0xff]
      %v1812 = vld [vmem:[%s7 + $0x10] sm:$0xff]
      %v1813 = vld [vmem:[%s7 + $0x18] sm:$0xff]
      %v1814 = vld [vmem:[%s7 + $0x20] sm:$0xff]
      %v1815 = vld [vmem:[%s7 + $0x28] sm:$0xff]
      %v1816 = vld [vmem:[%s7 + $0x30] sm:$0xff]
      %v1817 = vld [vmem:[%s7 + $0x38] sm:$0xff]
      %v1818 = vld [vmem:[%s8] sm:$0x1]
      %v1820 = vperm.slane %v1818, 0
      %v1823 = vsel %vm761, %v1808, 0
      %v1826 = vsel %vm761, %v1809, 0
      %1828 = vmatpush.msra.mxu0 0.0
      %1829 = vmatpush.msra.mxu0 0.0
      %1830 = vmatpush.msra.mxu0 0.0
      %1831 = vmatpush.msra.mxu0 0.0
      %1832 = vmatpush.msra.mxu0 0.0
      %1833 = vmatpush.msra.mxu0 0.0
      %1834 = vmatpush.msra.mxu0 0.0
      %1835 = vmatpush.msra.mxu0 0.0
      %1836 = vmatpush.msra.mxu0 %v1817
      %1837 = vmatpush.msra.mxu0 %v1816
      %1838 = vmatpush.msra.mxu0 %v1815
      %1839 = vmatpush.msra.mxu0 %v1814
      %1840 = vmatpush.msra.mxu0 %v1813
      %1841 = vmatpush.msra.mxu0 %v1812
      %1842 = vmatpush.msra.mxu0 %v1811
      %1843 = vmatpush.msra.mxu0 %v1810
      %1844 = vmatmul.f32.gmra.mxu0 %v1823
      %v1845 = vpop.f32.mrf.mxu0
      %v1846 = vadd.f32 %v1820, %v1845
      %1847 = vmatmul.f32.gmra.mxu0 %v1826
      %v1848 = vpop.f32.mrf.mxu0
      %v1849 = vadd.f32 %v1820, %v1848
      %1850 = vdwg.mxu0
      %vm1851 = vcmp.gt.f32.partialorder %v1846, 0.0
      %vm1852 = vcmp.gt.f32.partialorder %v1849, 0.0
      %v1853 = vmul.f32 %v1846, 0.2
      %v1854 = vmul.f32 %v1849, 0.2
      %v1855 = vsel %vm1851, %v1846, %v1853
      %v1856 = vsel %vm1852, %v1849, %v1854
      %1857 = vmatpush.msra.mxu0 0.0
      %1858 = vmatpush.msra.mxu0 0.0
      %1859 = vmatpush.msra.mxu0 0.0
      %1860 = vmatpush.msra.mxu0 0.0
      %1861 = vmatpush.msra.mxu0 0.0
      %1862 = vmatpush.msra.mxu0 0.0
      %1863 = vmatpush.msra.mxu0 0.0
      %1864 = vmatpush.msra.mxu0 0.0
      %1865 = vmatpush.msra.mxu0 0.0
      %1866 = vmatpush.msra.mxu0 0.0
      %1867 = vmatpush.msra.mxu0 0.0
      %1868 = vmatpush.msra.mxu0 0.0
      %1869 = vmatpush.msra.mxu0 0.0
      %1870 = vmatpush.msra.mxu0 0.0
      %1871 = vmatpush.msra.mxu0 %v1856
      %1872 = vmatpush.msra.mxu0 %v1855
      %1873 = vmatmul.f32.gmra.mxu0 %v637
      %v1874 = vpop.f32.mrf.mxu0
      %v1875 = vadd.f32 0.0, %v1874
      %1876 = vmatmul.f32.gmra.mxu0 %v640
      %v1877 = vpop.f32.mrf.mxu0
      %v1878 = vadd.f32 0.0, %v1877
      %1879 = vmatmul.f32.gmra.mxu0 %v643
      %v1880 = vpop.f32.mrf.mxu0
      %v1881 = vadd.f32 0.0, %v1880
      %1882 = vmatmul.f32.gmra.mxu0 %v646
      %v1883 = vpop.f32.mrf.mxu0
      %v1884 = vadd.f32 0.0, %v1883
      %1885 = vmatmul.f32.gmra.mxu0 %v649
      %v1886 = vpop.f32.mrf.mxu0
      %v1887 = vadd.f32 0.0, %v1886
      %1888 = vmatmul.f32.gmra.mxu0 %v652
      %v1889 = vpop.f32.mrf.mxu0
      %v1890 = vadd.f32 0.0, %v1889
      %1891 = vmatmul.f32.gmra.mxu0 %v655
      %v1892 = vpop.f32.mrf.mxu0
      %v1893 = vadd.f32 0.0, %v1892
      %1894 = vmatmul.f32.gmra.mxu0 %v658
      %v1895 = vpop.f32.mrf.mxu0
      %v1896 = vadd.f32 0.0, %v1895
      %1897 = vmatmul.f32.gmra.mxu0 %v661
      %v1898 = vpop.f32.mrf.mxu0
      %v1899 = vadd.f32 0.0, %v1898
      %1900 = vmatmul.f32.gmra.mxu0 %v664
      %v1901 = vpop.f32.mrf.mxu0
      %v1902 = vadd.f32 0.0, %v1901
      %1903 = vmatmul.f32.gmra.mxu0 %v667
      %v1904 = vpop.f32.mrf.mxu0
      %v1905 = vadd.f32 0.0, %v1904
      %1906 = vmatmul.f32.gmra.mxu0 %v670
      %v1907 = vpop.f32.mrf.mxu0
      %v1908 = vadd.f32 0.0, %v1907
      %1909 = vmatmul.f32.gmra.mxu0 %v673
      %v1910 = vpop.f32.mrf.mxu0
      %v1911 = vadd.f32 0.0, %v1910
      %1912 = vmatmul.f32.gmra.mxu0 %v676
      %v1913 = vpop.f32.mrf.mxu0
      %v1914 = vadd.f32 0.0, %v1913
      %1915 = vmatmul.f32.gmra.mxu0 %v679
      %v1916 = vpop.f32.mrf.mxu0
      %v1917 = vadd.f32 0.0, %v1916
      %1918 = vmatmul.f32.gmra.mxu0 %v682
      %v1919 = vpop.f32.mrf.mxu0
      %v1920 = vadd.f32 0.0, %v1919
      %1921 = vdwg.mxu0
      %v1922 = vmul.f32 %v1855, %v1855
      %v1923 = vmul.f32 %v1856, %v1856
      %v1924 = vsel %vm761, %v1922, 0.0
      %1925 = vadd.xlane.f32.xlu0 %v1924
      %v1926 = vpop.xlane.xlu0 %1925
      %v1927 = vsel %vm761, %v1923, 0.0
      %1928 = vadd.xlane.f32.xlu0 %v1927
      %v1929 = vpop.xlane.xlu0 %1928
      %v1930 = vrsqrt.pop %v1926
      %v1931 = vmul.f32 %v1930, %v1926
      %v1932 = vmul.f32 %v1931, %v1930
      %v1933 = vmul.f32 0.5, %v1932
      %v1934 = vsub.f32 1.5, %v1933
      %v1935 = vmul.f32 %v1930, %v1934
      %v1936 = vmul.f32 %v1926, %v1935
      %vm1937 = vcmp.eq.f32.partialorder %v1926, inf
      %v1938 = vsel %vm1937, %v1926, %v1936
      %vm1939 = vcmp.eq.f32.partialorder %v1926, 0.0
      %v1940 = vand.u32 %v1926, 2147483648
      %v1941 = vsel %vm1939, %v1940, %v1938
      %v1942 = vrsqrt.pop %v1929
      %v1943 = vmul.f32 %v1942, %v1929
      %v1944 = vmul.f32 %v1943, %v1942
      %v1945 = vmul.f32 0.5, %v1944
      %v1946 = vsub.f32 1.5, %v1945
      %v1947 = vmul.f32 %v1942, %v1946
      %v1948 = vmul.f32 %v1929, %v1947
      %vm1949 = vcmp.eq.f32.partialorder %v1929, inf
      %v1950 = vsel %vm1949, %v1929, %v1948
      %vm1951 = vcmp.eq.f32.partialorder %v1929, 0.0
      %v1952 = vand.u32 %v1929, 2147483648
      %v1953 = vsel %vm1951, %v1952, %v1950
      %v1954 = vmax.f32 %v1941, 1e-12
      %v1955 = vmax.f32 %v1953, 1e-12
      %v1956 = vrcp.pop %v1954
      %v1957 = vmul.f32 %v1954, %v1956
      %v1958 = vsub.f32 1.0, %v1957
      %v1959 = vmul.f32 %v1956, %v1958
      %v1960 = vadd.f32 %v1956, %v1959
      %vm1961 = vweird.f32 %v1954
      %vm1962 = vweird.f32 %v1956
      %vm1963 = vmor %vm1961, %vm1962
      %v1964 = vsel %vm1963, %v1956, %v1960
      %v1965 = vand.u32 2147483647, %v1954
      %vm1966 = vcmp.eq.f32.partialorder %v1965, 8.507059e+37
      %v1967 = vand.u32 %v1954, 2147483648
      %v1968 = vor.u32 1.1754944e-38, %v1967
      %v1969 = vsel %vm1966, %v1968, %v1964
      %v1970 = vmul.f32 %v1855, %v1969
      %v1971 = vrcp.pop %v1955
      %v1972 = vmul.f32 %v1955, %v1971
      %v1973 = vsub.f32 1.0, %v1972
      %v1974 = vmul.f32 %v1971, %v1973
      %v1975 = vadd.f32 %v1971, %v1974
      %vm1976 = vweird.f32 %v1955
      %vm1977 = vweird.f32 %v1971
      %vm1978 = vmor %vm1976, %vm1977
      %v1979 = vsel %vm1978, %v1971, %v1975
      %v1980 = vand.u32 2147483647, %v1955
      %vm1981 = vcmp.eq.f32.partialorder %v1980, 8.507059e+37
      %v1982 = vand.u32 %v1955, 2147483648
      %v1983 = vor.u32 1.1754944e-38, %v1982
      %v1984 = vsel %vm1981, %v1983, %v1979
      %v1985 = vmul.f32 %v1856, %v1984
      %v1986 = vmul.f32 %v1875, %v1875
      %v1987 = vmul.f32 %v1878, %v1878
      %v1988 = vmul.f32 %v1881, %v1881
      %v1989 = vmul.f32 %v1884, %v1884
      %v1990 = vmul.f32 %v1887, %v1887
      %v1991 = vmul.f32 %v1890, %v1890
      %v1992 = vmul.f32 %v1893, %v1893
      %v1993 = vmul.f32 %v1896, %v1896
      %v1994 = vmul.f32 %v1899, %v1899
      %v1995 = vmul.f32 %v1902, %v1902
      %v1996 = vmul.f32 %v1905, %v1905
      %v1997 = vmul.f32 %v1908, %v1908
      %v1998 = vmul.f32 %v1911, %v1911
      %v1999 = vmul.f32 %v1914, %v1914
      %v2000 = vmul.f32 %v1917, %v1917
      %v2001 = vmul.f32 %v1920, %v1920
      %v2002 = vsel %vm761, %v1986, 0.0
      %2003 = vadd.xlane.f32.xlu0 %v2002
      %v2004 = vpop.xlane.xlu0 %2003
      %v2005 = vsel %vm761, %v1987, 0.0
      %2006 = vadd.xlane.f32.xlu0 %v2005
      %v2007 = vpop.xlane.xlu0 %2006
      %v2008 = vsel %vm761, %v1988, 0.0
      %2009 = vadd.xlane.f32.xlu0 %v2008
      %v2010 = vpop.xlane.xlu0 %2009
      %v2011 = vsel %vm761, %v1989, 0.0
      %2012 = vadd.xlane.f32.xlu0 %v2011
      %v2013 = vpop.xlane.xlu0 %2012
      %v2014 = vsel %vm761, %v1990, 0.0
      %2015 = vadd.xlane.f32.xlu0 %v2014
      %v2016 = vpop.xlane.xlu0 %2015
      %v2017 = vsel %vm761, %v1991, 0.0
      %2018 = vadd.xlane.f32.xlu0 %v2017
      %v2019 = vpop.xlane.xlu0 %2018
      %v2020 = vsel %vm761, %v1992, 0.0
      %2021 = vadd.xlane.f32.xlu0 %v2020
      %v2022 = vpop.xlane.xlu0 %2021
      %v2023 = vsel %vm761, %v1993, 0.0
      %2024 = vadd.xlane.f32.xlu0 %v2023
      %v2025 = vpop.xlane.xlu0 %2024
      %v2026 = vsel %vm761, %v1994, 0.0
      %2027 = vadd.xlane.f32.xlu0 %v2026
      %v2028 = vpop.xlane.xlu0 %2027
      %v2029 = vsel %vm761, %v1995, 0.0
      %2030 = vadd.xlane.f32.xlu0 %v2029
      %v2031 = vpop.xlane.xlu0 %2030
      %v2032 = vsel %vm761, %v1996, 0.0
      %2033 = vadd.xlane.f32.xlu0 %v2032
      %v2034 = vpop.xlane.xlu0 %2033
      %v2035 = vsel %vm761, %v1997, 0.0
      %2036 = vadd.xlane.f32.xlu0 %v2035
      %v2037 = vpop.xlane.xlu0 %2036
      %v2038 = vsel %vm761, %v1998, 0.0
      %2039 = vadd.xlane.f32.xlu0 %v2038
      %v2040 = vpop.xlane.xlu0 %2039
      %v2041 = vsel %vm761, %v1999, 0.0
      %2042 = vadd.xlane.f32.xlu0 %v2041
      %v2043 = vpop.xlane.xlu0 %2042
      %v2044 = vsel %vm761, %v2000, 0.0
      %2045 = vadd.xlane.f32.xlu0 %v2044
      %v2046 = vpop.xlane.xlu0 %2045
      %v2047 = vsel %vm761, %v2001, 0.0
      %2048 = vadd.xlane.f32.xlu0 %v2047
      %v2049 = vpop.xlane.xlu0 %2048
      %v2050 = vrsqrt.pop %v2004
      %v2051 = vmul.f32 %v2050, %v2004
      %v2052 = vmul.f32 %v2051, %v2050
      %v2053 = vmul.f32 0.5, %v2052
      %v2054 = vsub.f32 1.5, %v2053
      %v2055 = vmul.f32 %v2050, %v2054
      %v2056 = vmul.f32 %v2004, %v2055
      %vm2057 = vcmp.eq.f32.partialorder %v2004, inf
      %v2058 = vsel %vm2057, %v2004, %v2056
      %vm2059 = vcmp.eq.f32.partialorder %v2004, 0.0
      %v2060 = vand.u32 %v2004, 2147483648
      %v2061 = vsel %vm2059, %v2060, %v2058
      %v2062 = vrsqrt.pop %v2007
      %v2063 = vmul.f32 %v2062, %v2007
      %v2064 = vmul.f32 %v2063, %v2062
      %v2065 = vmul.f32 0.5, %v2064
      %v2066 = vsub.f32 1.5, %v2065
      %v2067 = vmul.f32 %v2062, %v2066
      %v2068 = vmul.f32 %v2007, %v2067
      %vm2069 = vcmp.eq.f32.partialorder %v2007, inf
      %v2070 = vsel %vm2069, %v2007, %v2068
      %vm2071 = vcmp.eq.f32.partialorder %v2007, 0.0
      %v2072 = vand.u32 %v2007, 2147483648
      %v2073 = vsel %vm2071, %v2072, %v2070
      %v2074 = vrsqrt.pop %v2010
      %v2075 = vmul.f32 %v2074, %v2010
      %v2076 = vmul.f32 %v2075, %v2074
      %v2077 = vmul.f32 0.5, %v2076
      %v2078 = vsub.f32 1.5, %v2077
      %v2079 = vmul.f32 %v2074, %v2078
      %v2080 = vmul.f32 %v2010, %v2079
      %vm2081 = vcmp.eq.f32.partialorder %v2010, inf
      %v2082 = vsel %vm2081, %v2010, %v2080
      %vm2083 = vcmp.eq.f32.partialorder %v2010, 0.0
      %v2084 = vand.u32 %v2010, 2147483648
      %v2085 = vsel %vm2083, %v2084, %v2082
      %v2086 = vrsqrt.pop %v2013
      %v2087 = vmul.f32 %v2086, %v2013
      %v2088 = vmul.f32 %v2087, %v2086
      %v2089 = vmul.f32 0.5, %v2088
      %v2090 = vsub.f32 1.5, %v2089
      %v2091 = vmul.f32 %v2086, %v2090
      %v2092 = vmul.f32 %v2013, %v2091
      %vm2093 = vcmp.eq.f32.partialorder %v2013, inf
      %v2094 = vsel %vm2093, %v2013, %v2092
      %vm2095 = vcmp.eq.f32.partialorder %v2013, 0.0
      %v2096 = vand.u32 %v2013, 2147483648
      %v2097 = vsel %vm2095, %v2096, %v2094
      %v2098 = vrsqrt.pop %v2016
      %v2099 = vmul.f32 %v2098, %v2016
      %v2100 = vmul.f32 %v2099, %v2098
      %v2101 = vmul.f32 0.5, %v2100
      %v2102 = vsub.f32 1.5, %v2101
      %v2103 = vmul.f32 %v2098, %v2102
      %v2104 = vmul.f32 %v2016, %v2103
      %vm2105 = vcmp.eq.f32.partialorder %v2016, inf
      %v2106 = vsel %vm2105, %v2016, %v2104
      %vm2107 = vcmp.eq.f32.partialorder %v2016, 0.0
      %v2108 = vand.u32 %v2016, 2147483648
      %v2109 = vsel %vm2107, %v2108, %v2106
      %v2110 = vrsqrt.pop %v2019
      %v2111 = vmul.f32 %v2110, %v2019
      %v2112 = vmul.f32 %v2111, %v2110
      %v2113 = vmul.f32 0.5, %v2112
      %v2114 = vsub.f32 1.5, %v2113
      %v2115 = vmul.f32 %v2110, %v2114
      %v2116 = vmul.f32 %v2019, %v2115
      %vm2117 = vcmp.eq.f32.partialorder %v2019, inf
      %v2118 = vsel %vm2117, %v2019, %v2116
      %vm2119 = vcmp.eq.f32.partialorder %v2019, 0.0
      %v2120 = vand.u32 %v2019, 2147483648
      %v2121 = vsel %vm2119, %v2120, %v2118
      %v2122 = vrsqrt.pop %v2022
      %v2123 = vmul.f32 %v2122, %v2022
      %v2124 = vmul.f32 %v2123, %v2122
      %v2125 = vmul.f32 0.5, %v2124
      %v2126 = vsub.f32 1.5, %v2125
      %v2127 = vmul.f32 %v2122, %v2126
      %v2128 = vmul.f32 %v2022, %v2127
      %vm2129 = vcmp.eq.f32.partialorder %v2022, inf
      %v2130 = vsel %vm2129, %v2022, %v2128
      %vm2131 = vcmp.eq.f32.partialorder %v2022, 0.0
      %v2132 = vand.u32 %v2022, 2147483648
      %v2133 = vsel %vm2131, %v2132, %v2130
      %v2134 = vrsqrt.pop %v2025
      %v2135 = vmul.f32 %v2134, %v2025
      %v2136 = vmul.f32 %v2135, %v2134
      %v2137 = vmul.f32 0.5, %v2136
      %v2138 = vsub.f32 1.5, %v2137
      %v2139 = vmul.f32 %v2134, %v2138
      %v2140 = vmul.f32 %v2025, %v2139
      %vm2141 = vcmp.eq.f32.partialorder %v2025, inf
      %v2142 = vsel %vm2141, %v2025, %v2140
      %vm2143 = vcmp.eq.f32.partialorder %v2025, 0.0
      %v2144 = vand.u32 %v2025, 2147483648
      %v2145 = vsel %vm2143, %v2144, %v2142
      %v2146 = vrsqrt.pop %v2028
      %v2147 = vmul.f32 %v2146, %v2028
      %v2148 = vmul.f32 %v2147, %v2146
      %v2149 = vmul.f32 0.5, %v2148
      %v2150 = vsub.f32 1.5, %v2149
      %v2151 = vmul.f32 %v2146, %v2150
      %v2152 = vmul.f32 %v2028, %v2151
      %vm2153 = vcmp.eq.f32.partialorder %v2028, inf
      %v2154 = vsel %vm2153, %v2028, %v2152
      %vm2155 = vcmp.eq.f32.partialorder %v2028, 0.0
      %v2156 = vand.u32 %v2028, 2147483648
      %v2157 = vsel %vm2155, %v2156, %v2154
      %v2158 = vrsqrt.pop %v2031
      %v2159 = vmul.f32 %v2158, %v2031
      %v2160 = vmul.f32 %v2159, %v2158
      %v2161 = vmul.f32 0.5, %v2160
      %v2162 = vsub.f32 1.5, %v2161
      %v2163 = vmul.f32 %v2158, %v2162
      %v2164 = vmul.f32 %v2031, %v2163
      %vm2165 = vcmp.eq.f32.partialorder %v2031, inf
      %v2166 = vsel %vm2165, %v2031, %v2164
      %vm2167 = vcmp.eq.f32.partialorder %v2031, 0.0
      %v2168 = vand.u32 %v2031, 2147483648
      %v2169 = vsel %vm2167, %v2168, %v2166
      %v2170 = vrsqrt.pop %v2034
      %v2171 = vmul.f32 %v2170, %v2034
      %v2172 = vmul.f32 %v2171, %v2170
      %v2173 = vmul.f32 0.5, %v2172
      %v2174 = vsub.f32 1.5, %v2173
      %v2175 = vmul.f32 %v2170, %v2174
      %v2176 = vmul.f32 %v2034, %v2175
      %vm2177 = vcmp.eq.f32.partialorder %v2034, inf
      %v2178 = vsel %vm2177, %v2034, %v2176
      %vm2179 = vcmp.eq.f32.partialorder %v2034, 0.0
      %v2180 = vand.u32 %v2034, 2147483648
      %v2181 = vsel %vm2179, %v2180, %v2178
      %v2182 = vrsqrt.pop %v2037
      %v2183 = vmul.f32 %v2182, %v2037
      %v2184 = vmul.f32 %v2183, %v2182
      %v2185 = vmul.f32 0.5, %v2184
      %v2186 = vsub.f32 1.5, %v2185
      %v2187 = vmul.f32 %v2182, %v2186
      %v2188 = vmul.f32 %v2037, %v2187
      %vm2189 = vcmp.eq.f32.partialorder %v2037, inf
      %v2190 = vsel %vm2189, %v2037, %v2188
      %vm2191 = vcmp.eq.f32.partialorder %v2037, 0.0
      %v2192 = vand.u32 %v2037, 2147483648
      %v2193 = vsel %vm2191, %v2192, %v2190
      %v2194 = vrsqrt.pop %v2040
      %v2195 = vmul.f32 %v2194, %v2040
      %v2196 = vmul.f32 %v2195, %v2194
      %v2197 = vmul.f32 0.5, %v2196
      %v2198 = vsub.f32 1.5, %v2197
      %v2199 = vmul.f32 %v2194, %v2198
      %v2200 = vmul.f32 %v2040, %v2199
      %vm2201 = vcmp.eq.f32.partialorder %v2040, inf
      %v2202 = vsel %vm2201, %v2040, %v2200
      %vm2203 = vcmp.eq.f32.partialorder %v2040, 0.0
      %v2204 = vand.u32 %v2040, 2147483648
      %v2205 = vsel %vm2203, %v2204, %v2202
      %v2206 = vrsqrt.pop %v2043
      %v2207 = vmul.f32 %v2206, %v2043
      %v2208 = vmul.f32 %v2207, %v2206
      %v2209 = vmul.f32 0.5, %v2208
      %v2210 = vsub.f32 1.5, %v2209
      %v2211 = vmul.f32 %v2206, %v2210
      %v2212 = vmul.f32 %v2043, %v2211
      %vm2213 = vcmp.eq.f32.partialorder %v2043, inf
      %v2214 = vsel %vm2213, %v2043, %v2212
      %vm2215 = vcmp.eq.f32.partialorder %v2043, 0.0
      %v2216 = vand.u32 %v2043, 2147483648
      %v2217 = vsel %vm2215, %v2216, %v2214
      %v2218 = vrsqrt.pop %v2046
      %v2219 = vmul.f32 %v2218, %v2046
      %v2220 = vmul.f32 %v2219, %v2218
      %v2221 = vmul.f32 0.5, %v2220
      %v2222 = vsub.f32 1.5, %v2221
      %v2223 = vmul.f32 %v2218, %v2222
      %v2224 = vmul.f32 %v2046, %v2223
      %vm2225 = vcmp.eq.f32.partialorder %v2046, inf
      %v2226 = vsel %vm2225, %v2046, %v2224
      %vm2227 = vcmp.eq.f32.partialorder %v2046, 0.0
      %v2228 = vand.u32 %v2046, 2147483648
      %v2229 = vsel %vm2227, %v2228, %v2226
      %v2230 = vrsqrt.pop %v2049
      %v2231 = vmul.f32 %v2230, %v2049
      %v2232 = vmul.f32 %v2231, %v2230
      %v2233 = vmul.f32 0.5, %v2232
      %v2234 = vsub.f32 1.5, %v2233
      %v2235 = vmul.f32 %v2230, %v2234
      %v2236 = vmul.f32 %v2049, %v2235
      %vm2237 = vcmp.eq.f32.partialorder %v2049, inf
      %v2238 = vsel %vm2237, %v2049, %v2236
      %vm2239 = vcmp.eq.f32.partialorder %v2049, 0.0
      %v2240 = vand.u32 %v2049, 2147483648
      %v2241 = vsel %vm2239, %v2240, %v2238
      %v2242 = vmax.f32 %v2061, 1e-12
      %v2243 = vmax.f32 %v2073, 1e-12
      %v2244 = vmax.f32 %v2085, 1e-12
      %v2245 = vmax.f32 %v2097, 1e-12
      %v2246 = vmax.f32 %v2109, 1e-12
      %v2247 = vmax.f32 %v2121, 1e-12
      %v2248 = vmax.f32 %v2133, 1e-12
      %v2249 = vmax.f32 %v2145, 1e-12
      %v2250 = vmax.f32 %v2157, 1e-12
      %v2251 = vmax.f32 %v2169, 1e-12
      %v2252 = vmax.f32 %v2181, 1e-12
      %v2253 = vmax.f32 %v2193, 1e-12
      %v2254 = vmax.f32 %v2205, 1e-12
      %v2255 = vmax.f32 %v2217, 1e-12
      %v2256 = vmax.f32 %v2229, 1e-12
      %v2257 = vmax.f32 %v2241, 1e-12
      %v2258 = vrcp.pop %v2242
      %v2259 = vmul.f32 %v2242, %v2258
      %v2260 = vsub.f32 1.0, %v2259
      %v2261 = vmul.f32 %v2258, %v2260
      %v2262 = vadd.f32 %v2258, %v2261
      %vm2263 = vweird.f32 %v2242
      %vm2264 = vweird.f32 %v2258
      %vm2265 = vmor %vm2263, %vm2264
      %v2266 = vsel %vm2265, %v2258, %v2262
      %v2267 = vand.u32 2147483647, %v2242
      %vm2268 = vcmp.eq.f32.partialorder %v2267, 8.507059e+37
      %v2269 = vand.u32 %v2242, 2147483648
      %v2270 = vor.u32 1.1754944e-38, %v2269
      %v2271 = vsel %vm2268, %v2270, %v2266
      %v2272 = vmul.f32 %v1875, %v2271
      %v2273 = vrcp.pop %v2243
      %v2274 = vmul.f32 %v2243, %v2273
      %v2275 = vsub.f32 1.0, %v2274
      %v2276 = vmul.f32 %v2273, %v2275
      %v2277 = vadd.f32 %v2273, %v2276
      %vm2278 = vweird.f32 %v2243
      %vm2279 = vweird.f32 %v2273
      %vm2280 = vmor %vm2278, %vm2279
      %v2281 = vsel %vm2280, %v2273, %v2277
      %v2282 = vand.u32 2147483647, %v2243
      %vm2283 = vcmp.eq.f32.partialorder %v2282, 8.507059e+37
      %v2284 = vand.u32 %v2243, 2147483648
      %v2285 = vor.u32 1.1754944e-38, %v2284
      %v2286 = vsel %vm2283, %v2285, %v2281
      %v2287 = vmul.f32 %v1878, %v2286
      %v2288 = vrcp.pop %v2244
      %v2289 = vmul.f32 %v2244, %v2288
      %v2290 = vsub.f32 1.0, %v2289
      %v2291 = vmul.f32 %v2288, %v2290
      %v2292 = vadd.f32 %v2288, %v2291
      %vm2293 = vweird.f32 %v2244
      %vm2294 = vweird.f32 %v2288
      %vm2295 = vmor %vm2293, %vm2294
      %v2296 = vsel %vm2295, %v2288, %v2292
      %v2297 = vand.u32 2147483647, %v2244
      %vm2298 = vcmp.eq.f32.partialorder %v2297, 8.507059e+37
      %v2299 = vand.u32 %v2244, 2147483648
      %v2300 = vor.u32 1.1754944e-38, %v2299
      %v2301 = vsel %vm2298, %v2300, %v2296
      %v2302 = vmul.f32 %v1881, %v2301
      %v2303 = vrcp.pop %v2245
      %v2304 = vmul.f32 %v2245, %v2303
      %v2305 = vsub.f32 1.0, %v2304
      %v2306 = vmul.f32 %v2303, %v2305
      %v2307 = vadd.f32 %v2303, %v2306
      %vm2308 = vweird.f32 %v2245
      %vm2309 = vweird.f32 %v2303
      %vm2310 = vmor %vm2308, %vm2309
      %v2311 = vsel %vm2310, %v2303, %v2307
      %v2312 = vand.u32 2147483647, %v2245
      %vm2313 = vcmp.eq.f32.partialorder %v2312, 8.507059e+37
      %v2314 = vand.u32 %v2245, 2147483648
      %v2315 = vor.u32 1.1754944e-38, %v2314
      %v2316 = vsel %vm2313, %v2315, %v2311
      %v2317 = vmul.f32 %v1884, %v2316
      %v2318 = vrcp.pop %v2246
      %v2319 = vmul.f32 %v2246, %v2318
      %v2320 = vsub.f32 1.0, %v2319
      %v2321 = vmul.f32 %v2318, %v2320
      %v2322 = vadd.f32 %v2318, %v2321
      %vm2323 = vweird.f32 %v2246
      %vm2324 = vweird.f32 %v2318
      %vm2325 = vmor %vm2323, %vm2324
      %v2326 = vsel %vm2325, %v2318, %v2322
      %v2327 = vand.u32 2147483647, %v2246
      %vm2328 = vcmp.eq.f32.partialorder %v2327, 8.507059e+37
      %v2329 = vand.u32 %v2246, 2147483648
      %v2330 = vor.u32 1.1754944e-38, %v2329
      %v2331 = vsel %vm2328, %v2330, %v2326
      %v2332 = vmul.f32 %v1887, %v2331
      %v2333 = vrcp.pop %v2247
      %v2334 = vmul.f32 %v2247, %v2333
      %v2335 = vsub.f32 1.0, %v2334
      %v2336 = vmul.f32 %v2333, %v2335
      %v2337 = vadd.f32 %v2333, %v2336
      %vm2338 = vweird.f32 %v2247
      %vm2339 = vweird.f32 %v2333
      %vm2340 = vmor %vm2338, %vm2339
      %v2341 = vsel %vm2340, %v2333, %v2337
      %v2342 = vand.u32 2147483647, %v2247
      %vm2343 = vcmp.eq.f32.partialorder %v2342, 8.507059e+37
      %v2344 = vand.u32 %v2247, 2147483648
      %v2345 = vor.u32 1.1754944e-38, %v2344
      %v2346 = vsel %vm2343, %v2345, %v2341
      %v2347 = vmul.f32 %v1890, %v2346
      %v2348 = vrcp.pop %v2248
      %v2349 = vmul.f32 %v2248, %v2348
      %v2350 = vsub.f32 1.0, %v2349
      %v2351 = vmul.f32 %v2348, %v2350
      %v2352 = vadd.f32 %v2348, %v2351
      %vm2353 = vweird.f32 %v2248
      %vm2354 = vweird.f32 %v2348
      %vm2355 = vmor %vm2353, %vm2354
      %v2356 = vsel %vm2355, %v2348, %v2352
      %v2357 = vand.u32 2147483647, %v2248
      %vm2358 = vcmp.eq.f32.partialorder %v2357, 8.507059e+37
      %v2359 = vand.u32 %v2248, 2147483648
      %v2360 = vor.u32 1.1754944e-38, %v2359
      %v2361 = vsel %vm2358, %v2360, %v2356
      %v2362 = vmul.f32 %v1893, %v2361
      %v2363 = vrcp.pop %v2249
      %v2364 = vmul.f32 %v2249, %v2363
      %v2365 = vsub.f32 1.0, %v2364
      %v2366 = vmul.f32 %v2363, %v2365
      %v2367 = vadd.f32 %v2363, %v2366
      %vm2368 = vweird.f32 %v2249
      %vm2369 = vweird.f32 %v2363
      %vm2370 = vmor %vm2368, %vm2369
      %v2371 = vsel %vm2370, %v2363, %v2367
      %v2372 = vand.u32 2147483647, %v2249
      %vm2373 = vcmp.eq.f32.partialorder %v2372, 8.507059e+37
      %v2374 = vand.u32 %v2249, 2147483648
      %v2375 = vor.u32 1.1754944e-38, %v2374
      %v2376 = vsel %vm2373, %v2375, %v2371
      %v2377 = vmul.f32 %v1896, %v2376
      %v2378 = vrcp.pop %v2250
      %v2379 = vmul.f32 %v2250, %v2378
      %v2380 = vsub.f32 1.0, %v2379
      %v2381 = vmul.f32 %v2378, %v2380
      %v2382 = vadd.f32 %v2378, %v2381
      %vm2383 = vweird.f32 %v2250
      %vm2384 = vweird.f32 %v2378
      %vm2385 = vmor %vm2383, %vm2384
      %v2386 = vsel %vm2385, %v2378, %v2382
      %v2387 = vand.u32 2147483647, %v2250
      %vm2388 = vcmp.eq.f32.partialorder %v2387, 8.507059e+37
      %v2389 = vand.u32 %v2250, 2147483648
      %v2390 = vor.u32 1.1754944e-38, %v2389
      %v2391 = vsel %vm2388, %v2390, %v2386
      %v2392 = vmul.f32 %v1899, %v2391
      %v2393 = vrcp.pop %v2251
      %v2394 = vmul.f32 %v2251, %v2393
      %v2395 = vsub.f32 1.0, %v2394
      %v2396 = vmul.f32 %v2393, %v2395
      %v2397 = vadd.f32 %v2393, %v2396
      %vm2398 = vweird.f32 %v2251
      %vm2399 = vweird.f32 %v2393
      %vm2400 = vmor %vm2398, %vm2399
      %v2401 = vsel %vm2400, %v2393, %v2397
      %v2402 = vand.u32 2147483647, %v2251
      %vm2403 = vcmp.eq.f32.partialorder %v2402, 8.507059e+37
      %v2404 = vand.u32 %v2251, 2147483648
      %v2405 = vor.u32 1.1754944e-38, %v2404
      %v2406 = vsel %vm2403, %v2405, %v2401
      %v2407 = vmul.f32 %v1902, %v2406
      %v2408 = vrcp.pop %v2252
      %v2409 = vmul.f32 %v2252, %v2408
      %v2410 = vsub.f32 1.0, %v2409
      %v2411 = vmul.f32 %v2408, %v2410
      %v2412 = vadd.f32 %v2408, %v2411
      %vm2413 = vweird.f32 %v2252
      %vm2414 = vweird.f32 %v2408
      %vm2415 = vmor %vm2413, %vm2414
      %v2416 = vsel %vm2415, %v2408, %v2412
      %v2417 = vand.u32 2147483647, %v2252
      %vm2418 = vcmp.eq.f32.partialorder %v2417, 8.507059e+37
      %v2419 = vand.u32 %v2252, 2147483648
      %v2420 = vor.u32 1.1754944e-38, %v2419
      %v2421 = vsel %vm2418, %v2420, %v2416
      %v2422 = vmul.f32 %v1905, %v2421
      %v2423 = vrcp.pop %v2253
      %v2424 = vmul.f32 %v2253, %v2423
      %v2425 = vsub.f32 1.0, %v2424
      %v2426 = vmul.f32 %v2423, %v2425
      %v2427 = vadd.f32 %v2423, %v2426
      %vm2428 = vweird.f32 %v2253
      %vm2429 = vweird.f32 %v2423
      %vm2430 = vmor %vm2428, %vm2429
      %v2431 = vsel %vm2430, %v2423, %v2427
      %v2432 = vand.u32 2147483647, %v2253
      %vm2433 = vcmp.eq.f32.partialorder %v2432, 8.507059e+37
      %v2434 = vand.u32 %v2253, 2147483648
      %v2435 = vor.u32 1.1754944e-38, %v2434
      %v2436 = vsel %vm2433, %v2435, %v2431
      %v2437 = vmul.f32 %v1908, %v2436
      %v2438 = vrcp.pop %v2254
      %v2439 = vmul.f32 %v2254, %v2438
      %v2440 = vsub.f32 1.0, %v2439
      %v2441 = vmul.f32 %v2438, %v2440
      %v2442 = vadd.f32 %v2438, %v2441
      %vm2443 = vweird.f32 %v2254
      %vm2444 = vweird.f32 %v2438
      %vm2445 = vmor %vm2443, %vm2444
      %v2446 = vsel %vm2445, %v2438, %v2442
      %v2447 = vand.u32 2147483647, %v2254
      %vm2448 = vcmp.eq.f32.partialorder %v2447, 8.507059e+37
      %v2449 = vand.u32 %v2254, 2147483648
      %v2450 = vor.u32 1.1754944e-38, %v2449
      %v2451 = vsel %vm2448, %v2450, %v2446
      %v2452 = vmul.f32 %v1911, %v2451
      %v2453 = vrcp.pop %v2255
      %v2454 = vmul.f32 %v2255, %v2453
      %v2455 = vsub.f32 1.0, %v2454
      %v2456 = vmul.f32 %v2453, %v2455
      %v2457 = vadd.f32 %v2453, %v2456
      %vm2458 = vweird.f32 %v2255
      %vm2459 = vweird.f32 %v2453
      %vm2460 = vmor %vm2458, %vm2459
      %v2461 = vsel %vm2460, %v2453, %v2457
      %v2462 = vand.u32 2147483647, %v2255
      %vm2463 = vcmp.eq.f32.partialorder %v2462, 8.507059e+37
      %v2464 = vand.u32 %v2255, 2147483648
      %v2465 = vor.u32 1.1754944e-38, %v2464
      %v2466 = vsel %vm2463, %v2465, %v2461
      %v2467 = vmul.f32 %v1914, %v2466
      %v2468 = vrcp.pop %v2256
      %v2469 = vmul.f32 %v2256, %v2468
      %v2470 = vsub.f32 1.0, %v2469
      %v2471 = vmul.f32 %v2468, %v2470
      %v2472 = vadd.f32 %v2468, %v2471
      %vm2473 = vweird.f32 %v2256
      %vm2474 = vweird.f32 %v2468
      %vm2475 = vmor %vm2473, %vm2474
      %v2476 = vsel %vm2475, %v2468, %v2472
      %v2477 = vand.u32 2147483647, %v2256
      %vm2478 = vcmp.eq.f32.partialorder %v2477, 8.507059e+37
      %v2479 = vand.u32 %v2256, 2147483648
      %v2480 = vor.u32 1.1754944e-38, %v2479
      %v2481 = vsel %vm2478, %v2480, %v2476
      %v2482 = vmul.f32 %v1917, %v2481
      %v2483 = vrcp.pop %v2257
      %v2484 = vmul.f32 %v2257, %v2483
      %v2485 = vsub.f32 1.0, %v2484
      %v2486 = vmul.f32 %v2483, %v2485
      %v2487 = vadd.f32 %v2483, %v2486
      %vm2488 = vweird.f32 %v2257
      %vm2489 = vweird.f32 %v2483
      %vm2490 = vmor %vm2488, %vm2489
      %v2491 = vsel %vm2490, %v2483, %v2487
      %v2492 = vand.u32 2147483647, %v2257
      %vm2493 = vcmp.eq.f32.partialorder %v2492, 8.507059e+37
      %v2494 = vand.u32 %v2257, 2147483648
      %v2495 = vor.u32 1.1754944e-38, %v2494
      %v2496 = vsel %vm2493, %v2495, %v2491
      %v2497 = vmul.f32 %v1920, %v2496
      %v2499 = vsel %vm761, %v1970, 0
      %v2502 = vsel %vm761, %v1985, 0
      %v2505 = vsel %vm761, %v2272, 0
      %v2508 = vsel %vm761, %v2287, 0
      %v2511 = vsel %vm761, %v2302, 0
      %v2514 = vsel %vm761, %v2317, 0
      %v2517 = vsel %vm761, %v2332, 0
      %v2520 = vsel %vm761, %v2347, 0
      %v2523 = vsel %vm761, %v2362, 0
      %v2526 = vsel %vm761, %v2377, 0
      %v2529 = vsel %vm761, %v2392, 0
      %v2532 = vsel %vm761, %v2407, 0
      %v2535 = vsel %vm761, %v2422, 0
      %v2538 = vsel %vm761, %v2437, 0
      %v2541 = vsel %vm761, %v2452, 0
      %v2544 = vsel %vm761, %v2467, 0
      %v2547 = vsel %vm761, %v2482, 0
      %v2550 = vsel %vm761, %v2497, 0
      %2552 = vmatpush.xpose.msra.mxu0 %v2550
      %2553 = vmatpush.xpose.msra.mxu0 %v2547
      %2554 = vmatpush.xpose.msra.mxu0 %v2544
      %2555 = vmatpush.xpose.msra.mxu0 %v2541
      %2556 = vmatpush.xpose.msra.mxu0 %v2538
      %2557 = vmatpush.xpose.msra.mxu0 %v2535
      %2558 = vmatpush.xpose.msra.mxu0 %v2532
      %2559 = vmatpush.xpose.msra.mxu0 %v2529
      %2560 = vmatpush.xpose.msra.mxu0 %v2526
      %2561 = vmatpush.xpose.msra.mxu0 %v2523
      %2562 = vmatpush.xpose.msra.mxu0 %v2520
      %2563 = vmatpush.xpose.msra.mxu0 %v2517
      %2564 = vmatpush.xpose.msra.mxu0 %v2514
      %2565 = vmatpush.xpose.msra.mxu0 %v2511
      %2566 = vmatpush.xpose.msra.mxu0 %v2508
      %2567 = vmatpush.xpose.msra.mxu0 %v2505
      %2568 = vmatmul.f32.gmra.mxu0 %v2499
      %v2569 = vpop.f32.mrf.mxu0
      %v2570 = vadd.f32 0.0, %v2569
      %2571 = vmatmul.f32.gmra.mxu0 %v2502
      %v2572 = vpop.f32.mrf.mxu0
      %v2573 = vadd.f32 0.0, %v2572
      %2574 = vdwg.mxu0
      %2575 = vst [vmem:[%s474] sm:$0xff] %v2570
      %2576 = vst [vmem:[%s474 + $0x8] sm:$0xff] %v2573
      %v2578 = vsel %vm761, %v1855, 0
      %v2581 = vsel %vm761, %v1856, 0
      %v2584 = vsel %vm761, %v939, 0
      %v2587 = vsel %vm761, %v940, 0
      %v2590 = vsel %vm761, %v941, 0
      %v2593 = vsel %vm761, %v942, 0
      %v2596 = vsel %vm761, %v943, 0
      %v2599 = vsel %vm761, %v944, 0
      %v2602 = vsel %vm761, %v945, 0
      %v2605 = vsel %vm761, %v946, 0
      %v2608 = vsel %vm761, %v947, 0
      %v2611 = vsel %vm761, %v948, 0
      %v2614 = vsel %vm761, %v949, 0
      %v2617 = vsel %vm761, %v950, 0
      %v2620 = vsel %vm761, %v951, 0
      %v2623 = vsel %vm761, %v952, 0
      %v2626 = vsel %vm761, %v953, 0
      %v2629 = vsel %vm761, %v954, 0
      %2631 = vmatpush.xpose.msra.mxu0 %v2629
      %2632 = vmatpush.xpose.msra.mxu0 %v2626
      %2633 = vmatpush.xpose.msra.mxu0 %v2623
      %2634 = vmatpush.xpose.msra.mxu0 %v2620
      %2635 = vmatpush.xpose.msra.mxu0 %v2617
      %2636 = vmatpush.xpose.msra.mxu0 %v2614
      %2637 = vmatpush.xpose.msra.mxu0 %v2611
      %2638 = vmatpush.xpose.msra.mxu0 %v2608
      %2639 = vmatpush.xpose.msra.mxu0 %v2605
      %2640 = vmatpush.xpose.msra.mxu0 %v2602
      %2641 = vmatpush.xpose.msra.mxu0 %v2599
      %2642 = vmatpush.xpose.msra.mxu0 %v2596
      %2643 = vmatpush.xpose.msra.mxu0 %v2593
      %2644 = vmatpush.xpose.msra.mxu0 %v2590
      %2645 = vmatpush.xpose.msra.mxu0 %v2587
      %2646 = vmatpush.xpose.msra.mxu0 %v2584
      %2647 = vmatmul.f32.gmra.mxu0 %v2578
      %v2648 = vpop.f32.mrf.mxu0
      %v2649 = vadd.f32 0.0, %v2648
      %2650 = vmatmul.f32.gmra.mxu0 %v2581
      %v2651 = vpop.f32.mrf.mxu0
      %v2652 = vadd.f32 0.0, %v2651
      %2653 = vdwg.mxu0
      %2654 = vst [vmem:[%s479] sm:$0xff] %v2649
      %2655 = vst [vmem:[%s479 + $0x8] sm:$0xff] %v2652
      %s2656 = scalar_lea.vmem %s2, 16
      %v2657 = vld [vmem:[%s2656] sm:$0xff]
      %v2658 = vld [vmem:[%s2656 + $0x8] sm:$0xff]
      %s2659 = scalar_lea.vmem %s3, 16
      %v2660 = vld [vmem:[%s2659] sm:$0xff]
      %v2661 = vld [vmem:[%s2659 + $0x8] sm:$0xff]
      %2662 = vxpose.xlu0.b32.start [1/16] %v2657, 128
      %2663 = vxpose.xlu0.b32.cont [2/16] %v2658, 128
      %2664 = vxpose.xlu0.b32.cont [3/16] 0.0, 128
      %2665 = vxpose.xlu0.b32.cont [4/16] 0.0, 128
      %2666 = vxpose.xlu0.b32.cont [5/16] 0.0, 128
      %2667 = vxpose.xlu0.b32.cont [6/16] 0.0, 128
      %2668 = vxpose.xlu0.b32.cont [7/16] 0.0, 128
      %2669 = vxpose.xlu0.b32.cont [8/16] 0.0, 128
      %2670 = vxpose.xlu0.b32.cont [9/16] 0.0, 128
      %2671 = vxpose.xlu0.b32.cont [10/16] 0.0, 128
      %2672 = vxpose.xlu0.b32.cont [11/16] 0.0, 128
      %2673 = vxpose.xlu0.b32.cont [12/16] 0.0, 128
      %2674 = vxpose.xlu0.b32.cont [13/16] 0.0, 128
      %2675 = vxpose.xlu0.b32.cont [14/16] 0.0, 128
      %2676 = vxpose.xlu0.b32.cont [15/16] 0.0, 128
      %2677 = vxpose.xlu0.b32.end [16/16] 0.0, 128
      %v2678 = vpop.trf.xlu0
      %v2679 = vpop.trf.xlu0
      %v2680 = vpop.trf.xlu0
      %v2681 = vpop.trf.xlu0
      %v2682 = vpop.trf.xlu0
      %v2683 = vpop.trf.xlu0
      %v2684 = vpop.trf.xlu0
      %v2685 = vpop.trf.xlu0
      %v2686 = vpop.trf.xlu0
      %v2687 = vpop.trf.xlu0
      %v2688 = vpop.trf.xlu0
      %v2689 = vpop.trf.xlu0
      %v2690 = vpop.trf.xlu0
      %v2691 = vpop.trf.xlu0
      %v2692 = vpop.trf.xlu0
      %v2693 = vpop.trf.xlu0
      %v2695 = vsel %vm635, %v2678, 0
      %v2698 = vsel %vm635, %v2679, 0
      %v2701 = vsel %vm635, %v2680, 0
      %v2704 = vsel %vm635, %v2681, 0
      %v2707 = vsel %vm635, %v2682, 0
      %v2710 = vsel %vm635, %v2683, 0
      %v2713 = vsel %vm635, %v2684, 0
      %v2716 = vsel %vm635, %v2685, 0
      %v2719 = vsel %vm635, %v2686, 0
      %v2722 = vsel %vm635, %v2687, 0
      %v2725 = vsel %vm635, %v2688, 0
      %v2728 = vsel %vm635, %v2689, 0
      %v2731 = vsel %vm635, %v2690, 0
      %v2734 = vsel %vm635, %v2691, 0
      %v2737 = vsel %vm635, %v2692, 0
      %v2740 = vsel %vm635, %v2693, 0
      %2742 = vmatpush.msra.mxu0 0.0
      %2743 = vmatpush.msra.mxu0 0.0
      %2744 = vmatpush.msra.mxu0 0.0
      %2745 = vmatpush.msra.mxu0 0.0
      %2746 = vmatpush.msra.mxu0 0.0
      %2747 = vmatpush.msra.mxu0 0.0
      %2748 = vmatpush.msra.mxu0 0.0
      %2749 = vmatpush.msra.mxu0 0.0
      %2750 = vmatpush.msra.mxu0 0.0
      %2751 = vmatpush.msra.mxu0 0.0
      %2752 = vmatpush.msra.mxu0 0.0
      %2753 = vmatpush.msra.mxu0 0.0
      %2754 = vmatpush.msra.mxu0 0.0
      %2755 = vmatpush.msra.mxu0 0.0
      %2756 = vmatpush.msra.mxu0 %v2661
      %2757 = vmatpush.msra.mxu0 %v2660
      %2758 = vmatmul.f32.gmra.mxu0 %v2695
      %v2759 = vpop.f32.mrf.mxu0
      %v2760 = vadd.f32 0.0, %v2759
      %2761 = vmatmul.f32.gmra.mxu0 %v2698
      %v2762 = vpop.f32.mrf.mxu0
      %v2763 = vadd.f32 0.0, %v2762
      %2764 = vmatmul.f32.gmra.mxu0 %v2701
      %v2765 = vpop.f32.mrf.mxu0
      %v2766 = vadd.f32 0.0, %v2765
      %2767 = vmatmul.f32.gmra.mxu0 %v2704
      %v2768 = vpop.f32.mrf.mxu0
      %v2769 = vadd.f32 0.0, %v2768
      %2770 = vmatmul.f32.gmra.mxu0 %v2707
      %v2771 = vpop.f32.mrf.mxu0
      %v2772 = vadd.f32 0.0, %v2771
      %2773 = vmatmul.f32.gmra.mxu0 %v2710
      %v2774 = vpop.f32.mrf.mxu0
      %v2775 = vadd.f32 0.0, %v2774
      %2776 = vmatmul.f32.gmra.mxu0 %v2713
      %v2777 = vpop.f32.mrf.mxu0
      %v2778 = vadd.f32 0.0, %v2777
      %2779 = vmatmul.f32.gmra.mxu0 %v2716
      %v2780 = vpop.f32.mrf.mxu0
      %v2781 = vadd.f32 0.0, %v2780
      %2782 = vmatmul.f32.gmra.mxu0 %v2719
      %v2783 = vpop.f32.mrf.mxu0
      %v2784 = vadd.f32 0.0, %v2783
      %2785 = vmatmul.f32.gmra.mxu0 %v2722
      %v2786 = vpop.f32.mrf.mxu0
      %v2787 = vadd.f32 0.0, %v2786
      %2788 = vmatmul.f32.gmra.mxu0 %v2725
      %v2789 = vpop.f32.mrf.mxu0
      %v2790 = vadd.f32 0.0, %v2789
      %2791 = vmatmul.f32.gmra.mxu0 %v2728
      %v2792 = vpop.f32.mrf.mxu0
      %v2793 = vadd.f32 0.0, %v2792
      %2794 = vmatmul.f32.gmra.mxu0 %v2731
      %v2795 = vpop.f32.mrf.mxu0
      %v2796 = vadd.f32 0.0, %v2795
      %2797 = vmatmul.f32.gmra.mxu0 %v2734
      %v2798 = vpop.f32.mrf.mxu0
      %v2799 = vadd.f32 0.0, %v2798
      %2800 = vmatmul.f32.gmra.mxu0 %v2737
      %v2801 = vpop.f32.mrf.mxu0
      %v2802 = vadd.f32 0.0, %v2801
      %2803 = vmatmul.f32.gmra.mxu0 %v2740
      %v2804 = vpop.f32.mrf.mxu0
      %v2805 = vadd.f32 0.0, %v2804
      %2806 = vdwg.mxu0
      %v2807 = vld [vmem:[%s9] sm:$0xff]
      %v2808 = vld [vmem:[%s9 + $0x8] sm:$0xff]
      %v2809 = vld [vmem:[%s9 + $0x10] sm:$0xff]
      %v2810 = vld [vmem:[%s9 + $0x18] sm:$0xff]
      %v2811 = vld [vmem:[%s9 + $0x20] sm:$0xff]
      %v2812 = vld [vmem:[%s9 + $0x28] sm:$0xff]
      %v2813 = vld [vmem:[%s9 + $0x30] sm:$0xff]
      %v2814 = vld [vmem:[%s9 + $0x38] sm:$0xff]
      %v2815 = vld [vmem:[%s10] sm:$0x1]
      %v2817 = vperm.slane %v2815, 0
      %v2820 = vsel %vm761, %v2760, 0
      %v2823 = vsel %vm761, %v2763, 0
      %v2826 = vsel %vm761, %v2766, 0
      %v2829 = vsel %vm761, %v2769, 0
      %v2832 = vsel %vm761, %v2772, 0
      %v2835 = vsel %vm761, %v2775, 0
      %v2838 = vsel %vm761, %v2778, 0
      %v2841 = vsel %vm761, %v2781, 0
      %v2844 = vsel %vm761, %v2784, 0
      %v2847 = vsel %vm761, %v2787, 0
      %v2850 = vsel %vm761, %v2790, 0
      %v2853 = vsel %vm761, %v2793, 0
      %v2856 = vsel %vm761, %v2796, 0
      %v2859 = vsel %vm761, %v2799, 0
      %v2862 = vsel %vm761, %v2802, 0
      %v2865 = vsel %vm761, %v2805, 0
      %2867 = vmatpush.msra.mxu0 0.0
      %2868 = vmatpush.msra.mxu0 0.0
      %2869 = vmatpush.msra.mxu0 0.0
      %2870 = vmatpush.msra.mxu0 0.0
      %2871 = vmatpush.msra.mxu0 0.0
      %2872 = vmatpush.msra.mxu0 0.0
      %2873 = vmatpush.msra.mxu0 0.0
      %2874 = vmatpush.msra.mxu0 0.0
      %2875 = vmatpush.msra.mxu0 %v2814
      %2876 = vmatpush.msra.mxu0 %v2813
      %2877 = vmatpush.msra.mxu0 %v2812
      %2878 = vmatpush.msra.mxu0 %v2811
      %2879 = vmatpush.msra.mxu0 %v2810
      %2880 = vmatpush.msra.mxu0 %v2809
      %2881 = vmatpush.msra.mxu0 %v2808
      %2882 = vmatpush.msra.mxu0 %v2807
      %2883 = vmatmul.f32.gmra.mxu0 %v2820
      %v2884 = vpop.f32.mrf.mxu0
      %v2885 = vadd.f32 %v2817, %v2884
      %2886 = vmatmul.f32.gmra.mxu0 %v2823
      %v2887 = vpop.f32.mrf.mxu0
      %v2888 = vadd.f32 %v2817, %v2887
      %2889 = vmatmul.f32.gmra.mxu0 %v2826
      %v2890 = vpop.f32.mrf.mxu0
      %v2891 = vadd.f32 %v2817, %v2890
      %2892 = vmatmul.f32.gmra.mxu0 %v2829
      %v2893 = vpop.f32.mrf.mxu0
      %v2894 = vadd.f32 %v2817, %v2893
      %2895 = vmatmul.f32.gmra.mxu0 %v2832
      %v2896 = vpop.f32.mrf.mxu0
      %v2897 = vadd.f32 %v2817, %v2896
      %2898 = vmatmul.f32.gmra.mxu0 %v2835
      %v2899 = vpop.f32.mrf.mxu0
      %v2900 = vadd.f32 %v2817, %v2899
      %2901 = vmatmul.f32.gmra.mxu0 %v2838
      %v2902 = vpop.f32.mrf.mxu0
      %v2903 = vadd.f32 %v2817, %v2902
      %2904 = vmatmul.f32.gmra.mxu0 %v2841
      %v2905 = vpop.f32.mrf.mxu0
      %v2906 = vadd.f32 %v2817, %v2905
      %2907 = vmatmul.f32.gmra.mxu0 %v2844
      %v2908 = vpop.f32.mrf.mxu0
      %v2909 = vadd.f32 %v2817, %v2908
      %2910 = vmatmul.f32.gmra.mxu0 %v2847
      %v2911 = vpop.f32.mrf.mxu0
      %v2912 = vadd.f32 %v2817, %v2911
      %2913 = vmatmul.f32.gmra.mxu0 %v2850
      %v2914 = vpop.f32.mrf.mxu0
      %v2915 = vadd.f32 %v2817, %v2914
      %2916 = vmatmul.f32.gmra.mxu0 %v2853
      %v2917 = vpop.f32.mrf.mxu0
      %v2918 = vadd.f32 %v2817, %v2917
      %2919 = vmatmul.f32.gmra.mxu0 %v2856
      %v2920 = vpop.f32.mrf.mxu0
      %v2921 = vadd.f32 %v2817, %v2920
      %2922 = vmatmul.f32.gmra.mxu0 %v2859
      %v2923 = vpop.f32.mrf.mxu0
      %v2924 = vadd.f32 %v2817, %v2923
      %2925 = vmatmul.f32.gmra.mxu0 %v2862
      %v2926 = vpop.f32.mrf.mxu0
      %v2927 = vadd.f32 %v2817, %v2926
      %2928 = vmatmul.f32.gmra.mxu0 %v2865
      %v2929 = vpop.f32.mrf.mxu0
      %v2930 = vadd.f32 %v2817, %v2929
      %2931 = vdwg.mxu0
      %v2932 = vmax.f32 %v2885, 0.0
      %v2933 = vmax.f32 %v2888, 0.0
      %v2934 = vmax.f32 %v2891, 0.0
      %v2935 = vmax.f32 %v2894, 0.0
      %v2936 = vmax.f32 %v2897, 0.0
      %v2937 = vmax.f32 %v2900, 0.0
      %v2938 = vmax.f32 %v2903, 0.0
      %v2939 = vmax.f32 %v2906, 0.0
      %v2940 = vmax.f32 %v2909, 0.0
      %v2941 = vmax.f32 %v2912, 0.0
      %v2942 = vmax.f32 %v2915, 0.0
      %v2943 = vmax.f32 %v2918, 0.0
      %v2944 = vmax.f32 %v2921, 0.0
      %v2945 = vmax.f32 %v2924, 0.0
      %v2946 = vmax.f32 %v2927, 0.0
      %v2947 = vmax.f32 %v2930, 0.0
      %v2948 = vmul.f32 %v2932, %v533
      %v2949 = vmul.f32 %v2933, %v534
      %v2950 = vmul.f32 %v2934, %v535
      %v2951 = vmul.f32 %v2935, %v536
      %v2952 = vmul.f32 %v2936, %v537
      %v2953 = vmul.f32 %v2937, %v538
      %v2954 = vmul.f32 %v2938, %v539
      %v2955 = vmul.f32 %v2939, %v540
      %v2956 = vmul.f32 %v2940, %v541
      %v2957 = vmul.f32 %v2941, %v542
      %v2958 = vmul.f32 %v2942, %v543
      %v2959 = vmul.f32 %v2943, %v544
      %v2960 = vmul.f32 %v2944, %v545
      %v2961 = vmul.f32 %v2945, %v546
      %v2962 = vmul.f32 %v2946, %v547
      %v2963 = vmul.f32 %v2947, %v548
      %v2964 = vmul.f32 %v2948, 0.2
      %v2965 = vmul.f32 %v2949, 0.2
      %v2966 = vmul.f32 %v2950, 0.2
      %v2967 = vmul.f32 %v2951, 0.2
      %v2968 = vmul.f32 %v2952, 0.2
      %v2969 = vmul.f32 %v2953, 0.2
      %v2970 = vmul.f32 %v2954, 0.2
      %v2971 = vmul.f32 %v2955, 0.2
      %v2972 = vmul.f32 %v2956, 0.2
      %v2973 = vmul.f32 %v2957, 0.2
      %v2974 = vmul.f32 %v2958, 0.2
      %v2975 = vmul.f32 %v2959, 0.2
      %v2976 = vmul.f32 %v2960, 0.2
      %v2977 = vmul.f32 %v2961, 0.2
      %v2978 = vmul.f32 %v2962, 0.2
      %v2979 = vmul.f32 %v2963, 0.2
      %v2980 = vmul.f32 %v2760, 0.8
      %v2981 = vmul.f32 %v2763, 0.8
      %v2982 = vmul.f32 %v2766, 0.8
      %v2983 = vmul.f32 %v2769, 0.8
      %v2984 = vmul.f32 %v2772, 0.8
      %v2985 = vmul.f32 %v2775, 0.8
      %v2986 = vmul.f32 %v2778, 0.8
      %v2987 = vmul.f32 %v2781, 0.8
      %v2988 = vmul.f32 %v2784, 0.8
      %v2989 = vmul.f32 %v2787, 0.8
      %v2990 = vmul.f32 %v2790, 0.8
      %v2991 = vmul.f32 %v2793, 0.8
      %v2992 = vmul.f32 %v2796, 0.8
      %v2993 = vmul.f32 %v2799, 0.8
      %v2994 = vmul.f32 %v2802, 0.8
      %v2995 = vmul.f32 %v2805, 0.8
      %v2996 = vadd.f32 %v2964, %v2980
      %v2997 = vadd.f32 %v2965, %v2981
      %v2998 = vadd.f32 %v2966, %v2982
      %v2999 = vadd.f32 %v2967, %v2983
      %v3000 = vadd.f32 %v2968, %v2984
      %v3001 = vadd.f32 %v2969, %v2985
      %v3002 = vadd.f32 %v2970, %v2986
      %v3003 = vadd.f32 %v2971, %v2987
      %v3004 = vadd.f32 %v2972, %v2988
      %v3005 = vadd.f32 %v2973, %v2989
      %v3006 = vadd.f32 %v2974, %v2990
      %v3007 = vadd.f32 %v2975, %v2991
      %v3008 = vadd.f32 %v2976, %v2992
      %v3009 = vadd.f32 %v2977, %v2993
      %v3010 = vadd.f32 %v2978, %v2994
      %v3011 = vadd.f32 %v2979, %v2995
      %v3012 = vmul.f32 %v2948, %v2948
      %v3013 = vmul.f32 %v2949, %v2949
      %v3014 = vmul.f32 %v2950, %v2950
      %v3015 = vmul.f32 %v2951, %v2951
      %v3016 = vmul.f32 %v2952, %v2952
      %v3017 = vmul.f32 %v2953, %v2953
      %v3018 = vmul.f32 %v2954, %v2954
      %v3019 = vmul.f32 %v2955, %v2955
      %v3020 = vmul.f32 %v2956, %v2956
      %v3021 = vmul.f32 %v2957, %v2957
      %v3022 = vmul.f32 %v2958, %v2958
      %v3023 = vmul.f32 %v2959, %v2959
      %v3024 = vmul.f32 %v2960, %v2960
      %v3025 = vmul.f32 %v2961, %v2961
      %v3026 = vmul.f32 %v2962, %v2962
      %v3027 = vmul.f32 %v2963, %v2963
      %v3028 = vsel %vm761, %v3012, 0.0
      %3029 = vadd.xlane.f32.xlu0 %v3028
      %v3030 = vpop.xlane.xlu0 %3029
      %v3031 = vsel %vm761, %v3013, 0.0
      %3032 = vadd.xlane.f32.xlu0 %v3031
      %v3033 = vpop.xlane.xlu0 %3032
      %v3034 = vsel %vm761, %v3014, 0.0
      %3035 = vadd.xlane.f32.xlu0 %v3034
      %v3036 = vpop.xlane.xlu0 %3035
      %v3037 = vsel %vm761, %v3015, 0.0
      %3038 = vadd.xlane.f32.xlu0 %v3037
      %v3039 = vpop.xlane.xlu0 %3038
      %v3040 = vsel %vm761, %v3016, 0.0
      %3041 = vadd.xlane.f32.xlu0 %v3040
      %v3042 = vpop.xlane.xlu0 %3041
      %v3043 = vsel %vm761, %v3017, 0.0
      %3044 = vadd.xlane.f32.xlu0 %v3043
      %v3045 = vpop.xlane.xlu0 %3044
      %v3046 = vsel %vm761, %v3018, 0.0
      %3047 = vadd.xlane.f32.xlu0 %v3046
      %v3048 = vpop.xlane.xlu0 %3047
      %v3049 = vsel %vm761, %v3019, 0.0
      %3050 = vadd.xlane.f32.xlu0 %v3049
      %v3051 = vpop.xlane.xlu0 %3050
      %v3052 = vsel %vm761, %v3020, 0.0
      %3053 = vadd.xlane.f32.xlu0 %v3052
      %v3054 = vpop.xlane.xlu0 %3053
      %v3055 = vsel %vm761, %v3021, 0.0
      %3056 = vadd.xlane.f32.xlu0 %v3055
      %v3057 = vpop.xlane.xlu0 %3056
      %v3058 = vsel %vm761, %v3022, 0.0
      %3059 = vadd.xlane.f32.xlu0 %v3058
      %v3060 = vpop.xlane.xlu0 %3059
      %v3061 = vsel %vm761, %v3023, 0.0
      %3062 = vadd.xlane.f32.xlu0 %v3061
      %v3063 = vpop.xlane.xlu0 %3062
      %v3064 = vsel %vm761, %v3024, 0.0
      %3065 = vadd.xlane.f32.xlu0 %v3064
      %v3066 = vpop.xlane.xlu0 %3065
      %v3067 = vsel %vm761, %v3025, 0.0
      %3068 = vadd.xlane.f32.xlu0 %v3067
      %v3069 = vpop.xlane.xlu0 %3068
      %v3070 = vsel %vm761, %v3026, 0.0
      %3071 = vadd.xlane.f32.xlu0 %v3070
      %v3072 = vpop.xlane.xlu0 %3071
      %v3073 = vsel %vm761, %v3027, 0.0
      %3074 = vadd.xlane.f32.xlu0 %v3073
      %v3075 = vpop.xlane.xlu0 %3074
      %v3076 = vrsqrt.pop %v3030
      %v3077 = vmul.f32 %v3076, %v3030
      %v3078 = vmul.f32 %v3077, %v3076
      %v3079 = vmul.f32 0.5, %v3078
      %v3080 = vsub.f32 1.5, %v3079
      %v3081 = vmul.f32 %v3076, %v3080
      %v3082 = vmul.f32 %v3030, %v3081
      %vm3083 = vcmp.eq.f32.partialorder %v3030, inf
      %v3084 = vsel %vm3083, %v3030, %v3082
      %vm3085 = vcmp.eq.f32.partialorder %v3030, 0.0
      %v3086 = vand.u32 %v3030, 2147483648
      %v3087 = vsel %vm3085, %v3086, %v3084
      %v3088 = vrsqrt.pop %v3033
      %v3089 = vmul.f32 %v3088, %v3033
      %v3090 = vmul.f32 %v3089, %v3088
      %v3091 = vmul.f32 0.5, %v3090
      %v3092 = vsub.f32 1.5, %v3091
      %v3093 = vmul.f32 %v3088, %v3092
      %v3094 = vmul.f32 %v3033, %v3093
      %vm3095 = vcmp.eq.f32.partialorder %v3033, inf
      %v3096 = vsel %vm3095, %v3033, %v3094
      %vm3097 = vcmp.eq.f32.partialorder %v3033, 0.0
      %v3098 = vand.u32 %v3033, 2147483648
      %v3099 = vsel %vm3097, %v3098, %v3096
      %v3100 = vrsqrt.pop %v3036
      %v3101 = vmul.f32 %v3100, %v3036
      %v3102 = vmul.f32 %v3101, %v3100
      %v3103 = vmul.f32 0.5, %v3102
      %v3104 = vsub.f32 1.5, %v3103
      %v3105 = vmul.f32 %v3100, %v3104
      %v3106 = vmul.f32 %v3036, %v3105
      %vm3107 = vcmp.eq.f32.partialorder %v3036, inf
      %v3108 = vsel %vm3107, %v3036, %v3106
      %vm3109 = vcmp.eq.f32.partialorder %v3036, 0.0
      %v3110 = vand.u32 %v3036, 2147483648
      %v3111 = vsel %vm3109, %v3110, %v3108
      %v3112 = vrsqrt.pop %v3039
      %v3113 = vmul.f32 %v3112, %v3039
      %v3114 = vmul.f32 %v3113, %v3112
      %v3115 = vmul.f32 0.5, %v3114
      %v3116 = vsub.f32 1.5, %v3115
      %v3117 = vmul.f32 %v3112, %v3116
      %v3118 = vmul.f32 %v3039, %v3117
      %vm3119 = vcmp.eq.f32.partialorder %v3039, inf
      %v3120 = vsel %vm3119, %v3039, %v3118
      %vm3121 = vcmp.eq.f32.partialorder %v3039, 0.0
      %v3122 = vand.u32 %v3039, 2147483648
      %v3123 = vsel %vm3121, %v3122, %v3120
      %v3124 = vrsqrt.pop %v3042
      %v3125 = vmul.f32 %v3124, %v3042
      %v3126 = vmul.f32 %v3125, %v3124
      %v3127 = vmul.f32 0.5, %v3126
      %v3128 = vsub.f32 1.5, %v3127
      %v3129 = vmul.f32 %v3124, %v3128
      %v3130 = vmul.f32 %v3042, %v3129
      %vm3131 = vcmp.eq.f32.partialorder %v3042, inf
      %v3132 = vsel %vm3131, %v3042, %v3130
      %vm3133 = vcmp.eq.f32.partialorder %v3042, 0.0
      %v3134 = vand.u32 %v3042, 2147483648
      %v3135 = vsel %vm3133, %v3134, %v3132
      %v3136 = vrsqrt.pop %v3045
      %v3137 = vmul.f32 %v3136, %v3045
      %v3138 = vmul.f32 %v3137, %v3136
      %v3139 = vmul.f32 0.5, %v3138
      %v3140 = vsub.f32 1.5, %v3139
      %v3141 = vmul.f32 %v3136, %v3140
      %v3142 = vmul.f32 %v3045, %v3141
      %vm3143 = vcmp.eq.f32.partialorder %v3045, inf
      %v3144 = vsel %vm3143, %v3045, %v3142
      %vm3145 = vcmp.eq.f32.partialorder %v3045, 0.0
      %v3146 = vand.u32 %v3045, 2147483648
      %v3147 = vsel %vm3145, %v3146, %v3144
      %v3148 = vrsqrt.pop %v3048
      %v3149 = vmul.f32 %v3148, %v3048
      %v3150 = vmul.f32 %v3149, %v3148
      %v3151 = vmul.f32 0.5, %v3150
      %v3152 = vsub.f32 1.5, %v3151
      %v3153 = vmul.f32 %v3148, %v3152
      %v3154 = vmul.f32 %v3048, %v3153
      %vm3155 = vcmp.eq.f32.partialorder %v3048, inf
      %v3156 = vsel %vm3155, %v3048, %v3154
      %vm3157 = vcmp.eq.f32.partialorder %v3048, 0.0
      %v3158 = vand.u32 %v3048, 2147483648
      %v3159 = vsel %vm3157, %v3158, %v3156
      %v3160 = vrsqrt.pop %v3051
      %v3161 = vmul.f32 %v3160, %v3051
      %v3162 = vmul.f32 %v3161, %v3160
      %v3163 = vmul.f32 0.5, %v3162
      %v3164 = vsub.f32 1.5, %v3163
      %v3165 = vmul.f32 %v3160, %v3164
      %v3166 = vmul.f32 %v3051, %v3165
      %vm3167 = vcmp.eq.f32.partialorder %v3051, inf
      %v3168 = vsel %vm3167, %v3051, %v3166
      %vm3169 = vcmp.eq.f32.partialorder %v3051, 0.0
      %v3170 = vand.u32 %v3051, 2147483648
      %v3171 = vsel %vm3169, %v3170, %v3168
      %v3172 = vrsqrt.pop %v3054
      %v3173 = vmul.f32 %v3172, %v3054
      %v3174 = vmul.f32 %v3173, %v3172
      %v3175 = vmul.f32 0.5, %v3174
      %v3176 = vsub.f32 1.5, %v3175
      %v3177 = vmul.f32 %v3172, %v3176
      %v3178 = vmul.f32 %v3054, %v3177
      %vm3179 = vcmp.eq.f32.partialorder %v3054, inf
      %v3180 = vsel %vm3179, %v3054, %v3178
      %vm3181 = vcmp.eq.f32.partialorder %v3054, 0.0
      %v3182 = vand.u32 %v3054, 2147483648
      %v3183 = vsel %vm3181, %v3182, %v3180
      %v3184 = vrsqrt.pop %v3057
      %v3185 = vmul.f32 %v3184, %v3057
      %v3186 = vmul.f32 %v3185, %v3184
      %v3187 = vmul.f32 0.5, %v3186
      %v3188 = vsub.f32 1.5, %v3187
      %v3189 = vmul.f32 %v3184, %v3188
      %v3190 = vmul.f32 %v3057, %v3189
      %vm3191 = vcmp.eq.f32.partialorder %v3057, inf
      %v3192 = vsel %vm3191, %v3057, %v3190
      %vm3193 = vcmp.eq.f32.partialorder %v3057, 0.0
      %v3194 = vand.u32 %v3057, 2147483648
      %v3195 = vsel %vm3193, %v3194, %v3192
      %v3196 = vrsqrt.pop %v3060
      %v3197 = vmul.f32 %v3196, %v3060
      %v3198 = vmul.f32 %v3197, %v3196
      %v3199 = vmul.f32 0.5, %v3198
      %v3200 = vsub.f32 1.5, %v3199
      %v3201 = vmul.f32 %v3196, %v3200
      %v3202 = vmul.f32 %v3060, %v3201
      %vm3203 = vcmp.eq.f32.partialorder %v3060, inf
      %v3204 = vsel %vm3203, %v3060, %v3202
      %vm3205 = vcmp.eq.f32.partialorder %v3060, 0.0
      %v3206 = vand.u32 %v3060, 2147483648
      %v3207 = vsel %vm3205, %v3206, %v3204
      %v3208 = vrsqrt.pop %v3063
      %v3209 = vmul.f32 %v3208, %v3063
      %v3210 = vmul.f32 %v3209, %v3208
      %v3211 = vmul.f32 0.5, %v3210
      %v3212 = vsub.f32 1.5, %v3211
      %v3213 = vmul.f32 %v3208, %v3212
      %v3214 = vmul.f32 %v3063, %v3213
      %vm3215 = vcmp.eq.f32.partialorder %v3063, inf
      %v3216 = vsel %vm3215, %v3063, %v3214
      %vm3217 = vcmp.eq.f32.partialorder %v3063, 0.0
      %v3218 = vand.u32 %v3063, 2147483648
      %v3219 = vsel %vm3217, %v3218, %v3216
      %v3220 = vrsqrt.pop %v3066
      %v3221 = vmul.f32 %v3220, %v3066
      %v3222 = vmul.f32 %v3221, %v3220
      %v3223 = vmul.f32 0.5, %v3222
      %v3224 = vsub.f32 1.5, %v3223
      %v3225 = vmul.f32 %v3220, %v3224
      %v3226 = vmul.f32 %v3066, %v3225
      %vm3227 = vcmp.eq.f32.partialorder %v3066, inf
      %v3228 = vsel %vm3227, %v3066, %v3226
      %vm3229 = vcmp.eq.f32.partialorder %v3066, 0.0
      %v3230 = vand.u32 %v3066, 2147483648
      %v3231 = vsel %vm3229, %v3230, %v3228
      %v3232 = vrsqrt.pop %v3069
      %v3233 = vmul.f32 %v3232, %v3069
      %v3234 = vmul.f32 %v3233, %v3232
      %v3235 = vmul.f32 0.5, %v3234
      %v3236 = vsub.f32 1.5, %v3235
      %v3237 = vmul.f32 %v3232, %v3236
      %v3238 = vmul.f32 %v3069, %v3237
      %vm3239 = vcmp.eq.f32.partialorder %v3069, inf
      %v3240 = vsel %vm3239, %v3069, %v3238
      %vm3241 = vcmp.eq.f32.partialorder %v3069, 0.0
      %v3242 = vand.u32 %v3069, 2147483648
      %v3243 = vsel %vm3241, %v3242, %v3240
      %v3244 = vrsqrt.pop %v3072
      %v3245 = vmul.f32 %v3244, %v3072
      %v3246 = vmul.f32 %v3245, %v3244
      %v3247 = vmul.f32 0.5, %v3246
      %v3248 = vsub.f32 1.5, %v3247
      %v3249 = vmul.f32 %v3244, %v3248
      %v3250 = vmul.f32 %v3072, %v3249
      %vm3251 = vcmp.eq.f32.partialorder %v3072, inf
      %v3252 = vsel %vm3251, %v3072, %v3250
      %vm3253 = vcmp.eq.f32.partialorder %v3072, 0.0
      %v3254 = vand.u32 %v3072, 2147483648
      %v3255 = vsel %vm3253, %v3254, %v3252
      %v3256 = vrsqrt.pop %v3075
      %v3257 = vmul.f32 %v3256, %v3075
      %v3258 = vmul.f32 %v3257, %v3256
      %v3259 = vmul.f32 0.5, %v3258
      %v3260 = vsub.f32 1.5, %v3259
      %v3261 = vmul.f32 %v3256, %v3260
      %v3262 = vmul.f32 %v3075, %v3261
      %vm3263 = vcmp.eq.f32.partialorder %v3075, inf
      %v3264 = vsel %vm3263, %v3075, %v3262
      %vm3265 = vcmp.eq.f32.partialorder %v3075, 0.0
      %v3266 = vand.u32 %v3075, 2147483648
      %v3267 = vsel %vm3265, %v3266, %v3264
      %v3268 = vmax.f32 %v3087, 1e-12
      %v3269 = vmax.f32 %v3099, 1e-12
      %v3270 = vmax.f32 %v3111, 1e-12
      %v3271 = vmax.f32 %v3123, 1e-12
      %v3272 = vmax.f32 %v3135, 1e-12
      %v3273 = vmax.f32 %v3147, 1e-12
      %v3274 = vmax.f32 %v3159, 1e-12
      %v3275 = vmax.f32 %v3171, 1e-12
      %v3276 = vmax.f32 %v3183, 1e-12
      %v3277 = vmax.f32 %v3195, 1e-12
      %v3278 = vmax.f32 %v3207, 1e-12
      %v3279 = vmax.f32 %v3219, 1e-12
      %v3280 = vmax.f32 %v3231, 1e-12
      %v3281 = vmax.f32 %v3243, 1e-12
      %v3282 = vmax.f32 %v3255, 1e-12
      %v3283 = vmax.f32 %v3267, 1e-12
      %v3284 = vrcp.pop %v3268
      %v3285 = vmul.f32 %v3268, %v3284
      %v3286 = vsub.f32 1.0, %v3285
      %v3287 = vmul.f32 %v3284, %v3286
      %v3288 = vadd.f32 %v3284, %v3287
      %vm3289 = vweird.f32 %v3268
      %vm3290 = vweird.f32 %v3284
      %vm3291 = vmor %vm3289, %vm3290
      %v3292 = vsel %vm3291, %v3284, %v3288
      %v3293 = vand.u32 2147483647, %v3268
      %vm3294 = vcmp.eq.f32.partialorder %v3293, 8.507059e+37
      %v3295 = vand.u32 %v3268, 2147483648
      %v3296 = vor.u32 1.1754944e-38, %v3295
      %v3297 = vsel %vm3294, %v3296, %v3292
      %v3298 = vmul.f32 %v2948, %v3297
      %v3299 = vrcp.pop %v3269
      %v3300 = vmul.f32 %v3269, %v3299
      %v3301 = vsub.f32 1.0, %v3300
      %v3302 = vmul.f32 %v3299, %v3301
      %v3303 = vadd.f32 %v3299, %v3302
      %vm3304 = vweird.f32 %v3269
      %vm3305 = vweird.f32 %v3299
      %vm3306 = vmor %vm3304, %vm3305
      %v3307 = vsel %vm3306, %v3299, %v3303
      %v3308 = vand.u32 2147483647, %v3269
      %vm3309 = vcmp.eq.f32.partialorder %v3308, 8.507059e+37
      %v3310 = vand.u32 %v3269, 2147483648
      %v3311 = vor.u32 1.1754944e-38, %v3310
      %v3312 = vsel %vm3309, %v3311, %v3307
      %v3313 = vmul.f32 %v2949, %v3312
      %v3314 = vrcp.pop %v3270
      %v3315 = vmul.f32 %v3270, %v3314
      %v3316 = vsub.f32 1.0, %v3315
      %v3317 = vmul.f32 %v3314, %v3316
      %v3318 = vadd.f32 %v3314, %v3317
      %vm3319 = vweird.f32 %v3270
      %vm3320 = vweird.f32 %v3314
      %vm3321 = vmor %vm3319, %vm3320
      %v3322 = vsel %vm3321, %v3314, %v3318
      %v3323 = vand.u32 2147483647, %v3270
      %vm3324 = vcmp.eq.f32.partialorder %v3323, 8.507059e+37
      %v3325 = vand.u32 %v3270, 2147483648
      %v3326 = vor.u32 1.1754944e-38, %v3325
      %v3327 = vsel %vm3324, %v3326, %v3322
      %v3328 = vmul.f32 %v2950, %v3327
      %v3329 = vrcp.pop %v3271
      %v3330 = vmul.f32 %v3271, %v3329
      %v3331 = vsub.f32 1.0, %v3330
      %v3332 = vmul.f32 %v3329, %v3331
      %v3333 = vadd.f32 %v3329, %v3332
      %vm3334 = vweird.f32 %v3271
      %vm3335 = vweird.f32 %v3329
      %vm3336 = vmor %vm3334, %vm3335
      %v3337 = vsel %vm3336, %v3329, %v3333
      %v3338 = vand.u32 2147483647, %v3271
      %vm3339 = vcmp.eq.f32.partialorder %v3338, 8.507059e+37
      %v3340 = vand.u32 %v3271, 2147483648
      %v3341 = vor.u32 1.1754944e-38, %v3340
      %v3342 = vsel %vm3339, %v3341, %v3337
      %v3343 = vmul.f32 %v2951, %v3342
      %v3344 = vrcp.pop %v3272
      %v3345 = vmul.f32 %v3272, %v3344
      %v3346 = vsub.f32 1.0, %v3345
      %v3347 = vmul.f32 %v3344, %v3346
      %v3348 = vadd.f32 %v3344, %v3347
      %vm3349 = vweird.f32 %v3272
      %vm3350 = vweird.f32 %v3344
      %vm3351 = vmor %vm3349, %vm3350
      %v3352 = vsel %vm3351, %v3344, %v3348
      %v3353 = vand.u32 2147483647, %v3272
      %vm3354 = vcmp.eq.f32.partialorder %v3353, 8.507059e+37
      %v3355 = vand.u32 %v3272, 2147483648
      %v3356 = vor.u32 1.1754944e-38, %v3355
      %v3357 = vsel %vm3354, %v3356, %v3352
      %v3358 = vmul.f32 %v2952, %v3357
      %v3359 = vrcp.pop %v3273
      %v3360 = vmul.f32 %v3273, %v3359
      %v3361 = vsub.f32 1.0, %v3360
      %v3362 = vmul.f32 %v3359, %v3361
      %v3363 = vadd.f32 %v3359, %v3362
      %vm3364 = vweird.f32 %v3273
      %vm3365 = vweird.f32 %v3359
      %vm3366 = vmor %vm3364, %vm3365
      %v3367 = vsel %vm3366, %v3359, %v3363
      %v3368 = vand.u32 2147483647, %v3273
      %vm3369 = vcmp.eq.f32.partialorder %v3368, 8.507059e+37
      %v3370 = vand.u32 %v3273, 2147483648
      %v3371 = vor.u32 1.1754944e-38, %v3370
      %v3372 = vsel %vm3369, %v3371, %v3367
      %v3373 = vmul.f32 %v2953, %v3372
      %v3374 = vrcp.pop %v3274
      %v3375 = vmul.f32 %v3274, %v3374
      %v3376 = vsub.f32 1.0, %v3375
      %v3377 = vmul.f32 %v3374, %v3376
      %v3378 = vadd.f32 %v3374, %v3377
      %vm3379 = vweird.f32 %v3274
      %vm3380 = vweird.f32 %v3374
      %vm3381 = vmor %vm3379, %vm3380
      %v3382 = vsel %vm3381, %v3374, %v3378
      %v3383 = vand.u32 2147483647, %v3274
      %vm3384 = vcmp.eq.f32.partialorder %v3383, 8.507059e+37
      %v3385 = vand.u32 %v3274, 2147483648
      %v3386 = vor.u32 1.1754944e-38, %v3385
      %v3387 = vsel %vm3384, %v3386, %v3382
      %v3388 = vmul.f32 %v2954, %v3387
      %v3389 = vrcp.pop %v3275
      %v3390 = vmul.f32 %v3275, %v3389
      %v3391 = vsub.f32 1.0, %v3390
      %v3392 = vmul.f32 %v3389, %v3391
      %v3393 = vadd.f32 %v3389, %v3392
      %vm3394 = vweird.f32 %v3275
      %vm3395 = vweird.f32 %v3389
      %vm3396 = vmor %vm3394, %vm3395
      %v3397 = vsel %vm3396, %v3389, %v3393
      %v3398 = vand.u32 2147483647, %v3275
      %vm3399 = vcmp.eq.f32.partialorder %v3398, 8.507059e+37
      %v3400 = vand.u32 %v3275, 2147483648
      %v3401 = vor.u32 1.1754944e-38, %v3400
      %v3402 = vsel %vm3399, %v3401, %v3397
      %v3403 = vmul.f32 %v2955, %v3402
      %v3404 = vrcp.pop %v3276
      %v3405 = vmul.f32 %v3276, %v3404
      %v3406 = vsub.f32 1.0, %v3405
      %v3407 = vmul.f32 %v3404, %v3406
      %v3408 = vadd.f32 %v3404, %v3407
      %vm3409 = vweird.f32 %v3276
      %vm3410 = vweird.f32 %v3404
      %vm3411 = vmor %vm3409, %vm3410
      %v3412 = vsel %vm3411, %v3404, %v3408
      %v3413 = vand.u32 2147483647, %v3276
      %vm3414 = vcmp.eq.f32.partialorder %v3413, 8.507059e+37
      %v3415 = vand.u32 %v3276, 2147483648
      %v3416 = vor.u32 1.1754944e-38, %v3415
      %v3417 = vsel %vm3414, %v3416, %v3412
      %v3418 = vmul.f32 %v2956, %v3417
      %v3419 = vrcp.pop %v3277
      %v3420 = vmul.f32 %v3277, %v3419
      %v3421 = vsub.f32 1.0, %v3420
      %v3422 = vmul.f32 %v3419, %v3421
      %v3423 = vadd.f32 %v3419, %v3422
      %vm3424 = vweird.f32 %v3277
      %vm3425 = vweird.f32 %v3419
      %vm3426 = vmor %vm3424, %vm3425
      %v3427 = vsel %vm3426, %v3419, %v3423
      %v3428 = vand.u32 2147483647, %v3277
      %vm3429 = vcmp.eq.f32.partialorder %v3428, 8.507059e+37
      %v3430 = vand.u32 %v3277, 2147483648
      %v3431 = vor.u32 1.1754944e-38, %v3430
      %v3432 = vsel %vm3429, %v3431, %v3427
      %v3433 = vmul.f32 %v2957, %v3432
      %v3434 = vrcp.pop %v3278
      %v3435 = vmul.f32 %v3278, %v3434
      %v3436 = vsub.f32 1.0, %v3435
      %v3437 = vmul.f32 %v3434, %v3436
      %v3438 = vadd.f32 %v3434, %v3437
      %vm3439 = vweird.f32 %v3278
      %vm3440 = vweird.f32 %v3434
      %vm3441 = vmor %vm3439, %vm3440
      %v3442 = vsel %vm3441, %v3434, %v3438
      %v3443 = vand.u32 2147483647, %v3278
      %vm3444 = vcmp.eq.f32.partialorder %v3443, 8.507059e+37
      %v3445 = vand.u32 %v3278, 2147483648
      %v3446 = vor.u32 1.1754944e-38, %v3445
      %v3447 = vsel %vm3444, %v3446, %v3442
      %v3448 = vmul.f32 %v2958, %v3447
      %v3449 = vrcp.pop %v3279
      %v3450 = vmul.f32 %v3279, %v3449
      %v3451 = vsub.f32 1.0, %v3450
      %v3452 = vmul.f32 %v3449, %v3451
      %v3453 = vadd.f32 %v3449, %v3452
      %vm3454 = vweird.f32 %v3279
      %vm3455 = vweird.f32 %v3449
      %vm3456 = vmor %vm3454, %vm3455
      %v3457 = vsel %vm3456, %v3449, %v3453
      %v3458 = vand.u32 2147483647, %v3279
      %vm3459 = vcmp.eq.f32.partialorder %v3458, 8.507059e+37
      %v3460 = vand.u32 %v3279, 2147483648
      %v3461 = vor.u32 1.1754944e-38, %v3460
      %v3462 = vsel %vm3459, %v3461, %v3457
      %v3463 = vmul.f32 %v2959, %v3462
      %v3464 = vrcp.pop %v3280
      %v3465 = vmul.f32 %v3280, %v3464
      %v3466 = vsub.f32 1.0, %v3465
      %v3467 = vmul.f32 %v3464, %v3466
      %v3468 = vadd.f32 %v3464, %v3467
      %vm3469 = vweird.f32 %v3280
      %vm3470 = vweird.f32 %v3464
      %vm3471 = vmor %vm3469, %vm3470
      %v3472 = vsel %vm3471, %v3464, %v3468
      %v3473 = vand.u32 2147483647, %v3280
      %vm3474 = vcmp.eq.f32.partialorder %v3473, 8.507059e+37
      %v3475 = vand.u32 %v3280, 2147483648
      %v3476 = vor.u32 1.1754944e-38, %v3475
      %v3477 = vsel %vm3474, %v3476, %v3472
      %v3478 = vmul.f32 %v2960, %v3477
      %v3479 = vrcp.pop %v3281
      %v3480 = vmul.f32 %v3281, %v3479
      %v3481 = vsub.f32 1.0, %v3480
      %v3482 = vmul.f32 %v3479, %v3481
      %v3483 = vadd.f32 %v3479, %v3482
      %vm3484 = vweird.f32 %v3281
      %vm3485 = vweird.f32 %v3479
      %vm3486 = vmor %vm3484, %vm3485
      %v3487 = vsel %vm3486, %v3479, %v3483
      %v3488 = vand.u32 2147483647, %v3281
      %vm3489 = vcmp.eq.f32.partialorder %v3488, 8.507059e+37
      %v3490 = vand.u32 %v3281, 2147483648
      %v3491 = vor.u32 1.1754944e-38, %v3490
      %v3492 = vsel %vm3489, %v3491, %v3487
      %v3493 = vmul.f32 %v2961, %v3492
      %v3494 = vrcp.pop %v3282
      %v3495 = vmul.f32 %v3282, %v3494
      %v3496 = vsub.f32 1.0, %v3495
      %v3497 = vmul.f32 %v3494, %v3496
      %v3498 = vadd.f32 %v3494, %v3497
      %vm3499 = vweird.f32 %v3282
      %vm3500 = vweird.f32 %v3494
      %vm3501 = vmor %vm3499, %vm3500
      %v3502 = vsel %vm3501, %v3494, %v3498
      %v3503 = vand.u32 2147483647, %v3282
      %vm3504 = vcmp.eq.f32.partialorder %v3503, 8.507059e+37
      %v3505 = vand.u32 %v3282, 2147483648
      %v3506 = vor.u32 1.1754944e-38, %v3505
      %v3507 = vsel %vm3504, %v3506, %v3502
      %v3508 = vmul.f32 %v2962, %v3507
      %v3509 = vrcp.pop %v3283
      %v3510 = vmul.f32 %v3283, %v3509
      %v3511 = vsub.f32 1.0, %v3510
      %v3512 = vmul.f32 %v3509, %v3511
      %v3513 = vadd.f32 %v3509, %v3512
      %vm3514 = vweird.f32 %v3283
      %vm3515 = vweird.f32 %v3509
      %vm3516 = vmor %vm3514, %vm3515
      %v3517 = vsel %vm3516, %v3509, %v3513
      %v3518 = vand.u32 2147483647, %v3283
      %vm3519 = vcmp.eq.f32.partialorder %v3518, 8.507059e+37
      %v3520 = vand.u32 %v3283, 2147483648
      %v3521 = vor.u32 1.1754944e-38, %v3520
      %v3522 = vsel %vm3519, %v3521, %v3517
      %v3523 = vmul.f32 %v2963, %v3522
      %v3525 = vsel %vm761, %v3298, 0
      %v3528 = vsel %vm761, %v3313, 0
      %v3531 = vsel %vm761, %v3328, 0
      %v3534 = vsel %vm761, %v3343, 0
      %v3537 = vsel %vm761, %v3358, 0
      %v3540 = vsel %vm761, %v3373, 0
      %v3543 = vsel %vm761, %v3388, 0
      %v3546 = vsel %vm761, %v3403, 0
      %v3549 = vsel %vm761, %v3418, 0
      %v3552 = vsel %vm761, %v3433, 0
      %v3555 = vsel %vm761, %v3448, 0
      %v3558 = vsel %vm761, %v3463, 0
      %v3561 = vsel %vm761, %v3478, 0
      %v3564 = vsel %vm761, %v3493, 0
      %v3567 = vsel %vm761, %v3508, 0
      %v3570 = vsel %vm761, %v3523, 0
      %3572 = vmatpush.xpose.msra.mxu0 %v3570
      %3573 = vmatpush.xpose.msra.mxu0 %v3567
      %3574 = vmatpush.xpose.msra.mxu0 %v3564
      %3575 = vmatpush.xpose.msra.mxu0 %v3561
      %3576 = vmatpush.xpose.msra.mxu0 %v3558
      %3577 = vmatpush.xpose.msra.mxu0 %v3555
      %3578 = vmatpush.xpose.msra.mxu0 %v3552
      %3579 = vmatpush.xpose.msra.mxu0 %v3549
      %3580 = vmatpush.xpose.msra.mxu0 %v3546
      %3581 = vmatpush.xpose.msra.mxu0 %v3543
      %3582 = vmatpush.xpose.msra.mxu0 %v3540
      %3583 = vmatpush.xpose.msra.mxu0 %v3537
      %3584 = vmatpush.xpose.msra.mxu0 %v3534
      %3585 = vmatpush.xpose.msra.mxu0 %v3531
      %3586 = vmatpush.xpose.msra.mxu0 %v3528
      %3587 = vmatpush.xpose.msra.mxu0 %v3525
      %3588 = vmatmul.f32.gmra.mxu0 %v3525
      %v3589 = vpop.f32.mrf.mxu0
      %v3590 = vadd.f32 0.0, %v3589
      %3591 = vmatmul.f32.gmra.mxu0 %v3528
      %v3592 = vpop.f32.mrf.mxu0
      %v3593 = vadd.f32 0.0, %v3592
      %3594 = vmatmul.f32.gmra.mxu0 %v3531
      %v3595 = vpop.f32.mrf.mxu0
      %v3596 = vadd.f32 0.0, %v3595
      %3597 = vmatmul.f32.gmra.mxu0 %v3534
      %v3598 = vpop.f32.mrf.mxu0
      %v3599 = vadd.f32 0.0, %v3598
      %3600 = vmatmul.f32.gmra.mxu0 %v3537
      %v3601 = vpop.f32.mrf.mxu0
      %v3602 = vadd.f32 0.0, %v3601
      %3603 = vmatmul.f32.gmra.mxu0 %v3540
      %v3604 = vpop.f32.mrf.mxu0
      %v3605 = vadd.f32 0.0, %v3604
      %3606 = vmatmul.f32.gmra.mxu0 %v3543
      %v3607 = vpop.f32.mrf.mxu0
      %v3608 = vadd.f32 0.0, %v3607
      %3609 = vmatmul.f32.gmra.mxu0 %v3546
      %v3610 = vpop.f32.mrf.mxu0
      %v3611 = vadd.f32 0.0, %v3610
      %3612 = vmatmul.f32.gmra.mxu0 %v3549
      %v3613 = vpop.f32.mrf.mxu0
      %v3614 = vadd.f32 0.0, %v3613
      %3615 = vmatmul.f32.gmra.mxu0 %v3552
      %v3616 = vpop.f32.mrf.mxu0
      %v3617 = vadd.f32 0.0, %v3616
      %3618 = vmatmul.f32.gmra.mxu0 %v3555
      %v3619 = vpop.f32.mrf.mxu0
      %v3620 = vadd.f32 0.0, %v3619
      %3621 = vmatmul.f32.gmra.mxu0 %v3558
      %v3622 = vpop.f32.mrf.mxu0
      %v3623 = vadd.f32 0.0, %v3622
      %3624 = vmatmul.f32.gmra.mxu0 %v3561
      %v3625 = vpop.f32.mrf.mxu0
      %v3626 = vadd.f32 0.0, %v3625
      %3627 = vmatmul.f32.gmra.mxu0 %v3564
      %v3628 = vpop.f32.mrf.mxu0
      %v3629 = vadd.f32 0.0, %v3628
      %3630 = vmatmul.f32.gmra.mxu0 %v3567
      %v3631 = vpop.f32.mrf.mxu0
      %v3632 = vadd.f32 0.0, %v3631
      %3633 = vmatmul.f32.gmra.mxu0 %v3570
      %v3634 = vpop.f32.mrf.mxu0
      %v3635 = vadd.f32 0.0, %v3634
      %3636 = vdwg.mxu0
      %v3637 = vmul.f32 %v3590, %v583
      %v3638 = vmul.f32 %v3593, %v584
      %v3639 = vmul.f32 %v3596, %v585
      %v3640 = vmul.f32 %v3599, %v586
      %v3641 = vmul.f32 %v3602, %v587
      %v3642 = vmul.f32 %v3605, %v588
      %v3643 = vmul.f32 %v3608, %v589
      %v3644 = vmul.f32 %v3611, %v590
      %v3645 = vmul.f32 %v3614, %v591
      %v3646 = vmul.f32 %v3617, %v592
      %v3647 = vmul.f32 %v3620, %v593
      %v3648 = vmul.f32 %v3623, %v594
      %v3649 = vmul.f32 %v3626, %v595
      %v3650 = vmul.f32 %v3629, %v596
      %v3651 = vmul.f32 %v3632, %v597
      %v3652 = vmul.f32 %v3635, %v598
      %v3653 = vmul.f32 %v3637, %v3637
      %v3654 = vmul.f32 %v3638, %v3638
      %v3655 = vmul.f32 %v3639, %v3639
      %v3656 = vmul.f32 %v3640, %v3640
      %v3657 = vmul.f32 %v3641, %v3641
      %v3658 = vmul.f32 %v3642, %v3642
      %v3659 = vmul.f32 %v3643, %v3643
      %v3660 = vmul.f32 %v3644, %v3644
      %v3661 = vmul.f32 %v3645, %v3645
      %v3662 = vmul.f32 %v3646, %v3646
      %v3663 = vmul.f32 %v3647, %v3647
      %v3664 = vmul.f32 %v3648, %v3648
      %v3665 = vmul.f32 %v3649, %v3649
      %v3666 = vmul.f32 %v3650, %v3650
      %v3667 = vmul.f32 %v3651, %v3651
      %v3668 = vmul.f32 %v3652, %v3652
      %v3669 = vadd.f32 %v3653, %v3654
      %v3670 = vadd.f32 %v3669, %v3655
      %v3671 = vadd.f32 %v3670, %v3656
      %v3672 = vadd.f32 %v3671, %v3657
      %v3673 = vadd.f32 %v3672, %v3658
      %v3674 = vadd.f32 %v3673, %v3659
      %v3675 = vadd.f32 %v3674, %v3660
      %v3676 = vadd.f32 %v3675, %v3661
      %v3677 = vadd.f32 %v3676, %v3662
      %v3678 = vadd.f32 %v3677, %v3663
      %v3679 = vadd.f32 %v3678, %v3664
      %v3680 = vadd.f32 %v3679, %v3665
      %v3681 = vadd.f32 %v3680, %v3666
      %v3682 = vadd.f32 %v3681, %v3667
      %v3683 = vadd.f32 %v3682, %v3668
      %3684 = vadd.xlane.f32.xlu0 %v3683
      %v3685 = vpop.xlane.xlu0 %3684
      %v3686 = vrot.slane %v3685, 4
      %v3687 = vadd.f32 %v3685, %v3686
      %v3688 = vrot.slane %v3687, 2
      %v3689 = vadd.f32 %v3687, %v3688
      %v3690 = vrot.slane %v3689, 1
      %v3691 = vadd.f32 %v3689, %v3690
      %s3692 = vtos %v3691
      %s3693 = sadd.f32 %s1636, %s3692
      %s3694 = scalar_lea.vmem %s464, 16
      %v3695 = vld [vmem:[%s3694] sm:$0xff]
      %v3696 = vld [vmem:[%s3694 + $0x8] sm:$0xff]
      %s3697 = scalar_lea.vmem %s469, 16
      %v3698 = vld [vmem:[%s3697] sm:$0xff]
      %v3699 = vld [vmem:[%s3697 + $0x8] sm:$0xff]
      %v3700 = vld [vmem:[%s4] sm:$0xff]
      %v3701 = vld [vmem:[%s4 + $0x8] sm:$0xff]
      %v3703 = vsel %vm635, %v3700, 0
      %v3706 = vsel %vm635, %v3701, 0
      %3708 = vmatpush.msra.mxu0 0.0
      %3709 = vmatpush.msra.mxu0 0.0
      %3710 = vmatpush.msra.mxu0 0.0
      %3711 = vmatpush.msra.mxu0 0.0
      %3712 = vmatpush.msra.mxu0 0.0
      %3713 = vmatpush.msra.mxu0 0.0
      %3714 = vmatpush.msra.mxu0 0.0
      %3715 = vmatpush.msra.mxu0 0.0
      %3716 = vmatpush.msra.mxu0 0.0
      %3717 = vmatpush.msra.mxu0 0.0
      %3718 = vmatpush.msra.mxu0 0.0
      %3719 = vmatpush.msra.mxu0 0.0
      %3720 = vmatpush.msra.mxu0 0.0
      %3721 = vmatpush.msra.mxu0 0.0
      %3722 = vmatpush.msra.mxu0 %v3696
      %3723 = vmatpush.msra.mxu0 %v3695
      %3724 = vmatmul.f32.gmra.mxu0 %v3703
      %v3725 = vpop.f32.mrf.mxu0
      %v3726 = vadd.f32 0.0, %v3725
      %3727 = vmatmul.f32.gmra.mxu0 %v3706
      %v3728 = vpop.f32.mrf.mxu0
      %v3729 = vadd.f32 0.0, %v3728
      %3730 = vdwg.mxu0
      %vm3731 = vcmp.gt.f32.partialorder %v3726, 0.0
      %vm3732 = vcmp.gt.f32.partialorder %v3729, 0.0
      %v3733 = vmul.f32 %v3726, 0.2
      %v3734 = vmul.f32 %v3729, 0.2
      %v3735 = vsel %vm3731, %v3726, %v3733
      %v3736 = vsel %vm3732, %v3729, %v3734
      %v3737 = vld [vmem:[%s5] sm:$0xff]
      %v3738 = vld [vmem:[%s5 + $0x8] sm:$0xff]
      %v3739 = vld [vmem:[%s5 + $0x10] sm:$0xff]
      %v3740 = vld [vmem:[%s5 + $0x18] sm:$0xff]
      %v3741 = vld [vmem:[%s5 + $0x20] sm:$0xff]
      %v3742 = vld [vmem:[%s5 + $0x28] sm:$0xff]
      %v3743 = vld [vmem:[%s5 + $0x30] sm:$0xff]
      %v3744 = vld [vmem:[%s5 + $0x38] sm:$0xff]
      %v3745 = vld [vmem:[%s6] sm:$0x1]
      %v3747 = vperm.slane %v3745, 0
      %v3750 = vsel %vm761, %v3735, 0
      %v3753 = vsel %vm761, %v3736, 0
      %3755 = vmatpush.msra.mxu0 0.0
      %3756 = vmatpush.msra.mxu0 0.0
      %3757 = vmatpush.msra.mxu0 0.0
      %3758 = vmatpush.msra.mxu0 0.0
      %3759 = vmatpush.msra.mxu0 0.0
      %3760 = vmatpush.msra.mxu0 0.0
      %3761 = vmatpush.msra.mxu0 0.0
      %3762 = vmatpush.msra.mxu0 0.0
      %3763 = vmatpush.msra.mxu0 %v3744
      %3764 = vmatpush.msra.mxu0 %v3743
      %3765 = vmatpush.msra.mxu0 %v3742
      %3766 = vmatpush.msra.mxu0 %v3741
      %3767 = vmatpush.msra.mxu0 %v3740
      %3768 = vmatpush.msra.mxu0 %v3739
      %3769 = vmatpush.msra.mxu0 %v3738
      %3770 = vmatpush.msra.mxu0 %v3737
      %3771 = vmatmul.f32.gmra.mxu0 %v3750
      %v3772 = vpop.f32.mrf.mxu0
      %v3773 = vadd.f32 %v3747, %v3772
      %3774 = vmatmul.f32.gmra.mxu0 %v3753
      %v3775 = vpop.f32.mrf.mxu0
      %v3776 = vadd.f32 %v3747, %v3775
      %3777 = vdwg.mxu0
      %vm3778 = vcmp.gt.f32.partialorder %v3773, 0.0
      %vm3779 = vcmp.gt.f32.partialorder %v3776, 0.0
      %v3780 = vmul.f32 %v3773, 0.2
      %v3781 = vmul.f32 %v3776, 0.2
      %v3782 = vsel %vm3778, %v3773, %v3780
      %v3783 = vsel %vm3779, %v3776, %v3781
      %v3784 = vadd.f32 %v3695, %v3782
      %v3785 = vadd.f32 %v3696, %v3783
      %v3786 = vsel %vm635, %v3698, 0.0
      %3787 = vadd.xlane.f32.xlu0 %v3786
      %v3788 = vpop.xlane.xlu0 %3787
      %v3789 = vsel %vm635, %v3699, 0.0
      %3790 = vadd.xlane.f32.xlu0 %v3789
      %v3791 = vpop.xlane.xlu0 %3790
      %v3792 = vadd.f32 %v3788, 1e-06
      %v3793 = vadd.f32 %v3791, 1e-06
      %v3794 = vrcp.pop %v3792
      %v3795 = vrcp.pop %v3793
      %v3796 = vmul.f32 %v3794, 0.5
      %v3797 = vmul.f32 %v3795, 0.5
      %v3798 = vmul.f32 %v3796, %v3784
      %v3799 = vmul.f32 %v3797, %v3785
      %v3800 = vmul.f32 %v3784, 0.8
      %v3801 = vmul.f32 %v3785, 0.8
      %3802 = vxpose.xlu0.b32.start [1/16] %v3698, 128
      %3803 = vxpose.xlu0.b32.cont [2/16] %v3699, 128
      %3804 = vxpose.xlu0.b32.cont [3/16] 0.0, 128
      %3805 = vxpose.xlu0.b32.cont [4/16] 0.0, 128
      %3806 = vxpose.xlu0.b32.cont [5/16] 0.0, 128
      %3807 = vxpose.xlu0.b32.cont [6/16] 0.0, 128
      %3808 = vxpose.xlu0.b32.cont [7/16] 0.0, 128
      %3809 = vxpose.xlu0.b32.cont [8/16] 0.0, 128
      %3810 = vxpose.xlu0.b32.cont [9/16] 0.0, 128
      %3811 = vxpose.xlu0.b32.cont [10/16] 0.0, 128
      %3812 = vxpose.xlu0.b32.cont [11/16] 0.0, 128
      %3813 = vxpose.xlu0.b32.cont [12/16] 0.0, 128
      %3814 = vxpose.xlu0.b32.cont [13/16] 0.0, 128
      %3815 = vxpose.xlu0.b32.cont [14/16] 0.0, 128
      %3816 = vxpose.xlu0.b32.cont [15/16] 0.0, 128
      %3817 = vxpose.xlu0.b32.end [16/16] 0.0, 128
      %v3818 = vpop.trf.xlu0
      %v3819 = vpop.trf.xlu0
      %v3820 = vpop.trf.xlu0
      %v3821 = vpop.trf.xlu0
      %v3822 = vpop.trf.xlu0
      %v3823 = vpop.trf.xlu0
      %v3824 = vpop.trf.xlu0
      %v3825 = vpop.trf.xlu0
      %v3826 = vpop.trf.xlu0
      %v3827 = vpop.trf.xlu0
      %v3828 = vpop.trf.xlu0
      %v3829 = vpop.trf.xlu0
      %v3830 = vpop.trf.xlu0
      %v3831 = vpop.trf.xlu0
      %v3832 = vpop.trf.xlu0
      %v3833 = vpop.trf.xlu0
      %v3835 = vsel %vm635, %v3818, 0
      %v3838 = vsel %vm635, %v3819, 0
      %3840 = vmatpush.msra.mxu0 0.0
      %3841 = vmatpush.msra.mxu0 0.0
      %3842 = vmatpush.msra.mxu0 0.0
      %3843 = vmatpush.msra.mxu0 0.0
      %3844 = vmatpush.msra.mxu0 0.0
      %3845 = vmatpush.msra.mxu0 0.0
      %3846 = vmatpush.msra.mxu0 0.0
      %3847 = vmatpush.msra.mxu0 0.0
      %3848 = vmatpush.msra.mxu0 0.0
      %3849 = vmatpush.msra.mxu0 0.0
      %3850 = vmatpush.msra.mxu0 0.0
      %3851 = vmatpush.msra.mxu0 0.0
      %3852 = vmatpush.msra.mxu0 0.0
      %3853 = vmatpush.msra.mxu0 0.0
      %3854 = vmatpush.msra.mxu0 %v3799
      %3855 = vmatpush.msra.mxu0 %v3798
      %3856 = vmatmul.f32.gmra.mxu0 %v3835
      %v3857 = vpop.f32.mrf.mxu0
      %v3858 = vadd.f32 %v3800, %v3857
      %3859 = vmatmul.f32.gmra.mxu0 %v3838
      %v3860 = vpop.f32.mrf.mxu0
      %v3861 = vadd.f32 %v3801, %v3860
      %3862 = vdwg.mxu0
      %vm3863 = vcmp.gt.f32.partialorder %v3858, 0.0
      %vm3864 = vcmp.gt.f32.partialorder %v3861, 0.0
      %v3865 = vmul.f32 %v3858, 0.2
      %v3866 = vmul.f32 %v3861, 0.2
      %v3867 = vsel %vm3863, %v3858, %v3865
      %v3868 = vsel %vm3864, %v3861, %v3866
      %v3869 = vld [vmem:[%s7] sm:$0xff]
      %v3870 = vld [vmem:[%s7 + $0x8] sm:$0xff]
      %v3871 = vld [vmem:[%s7 + $0x10] sm:$0xff]
      %v3872 = vld [vmem:[%s7 + $0x18] sm:$0xff]
      %v3873 = vld [vmem:[%s7 + $0x20] sm:$0xff]
      %v3874 = vld [vmem:[%s7 + $0x28] sm:$0xff]
      %v3875 = vld [vmem:[%s7 + $0x30] sm:$0xff]
      %v3876 = vld [vmem:[%s7 + $0x38] sm:$0xff]
      %v3877 = vld [vmem:[%s8] sm:$0x1]
      %v3879 = vperm.slane %v3877, 0
      %v3882 = vsel %vm761, %v3867, 0
      %v3885 = vsel %vm761, %v3868, 0
      %3887 = vmatpush.msra.mxu0 0.0
      %3888 = vmatpush.msra.mxu0 0.0
      %3889 = vmatpush.msra.mxu0 0.0
      %3890 = vmatpush.msra.mxu0 0.0
      %3891 = vmatpush.msra.mxu0 0.0
      %3892 = vmatpush.msra.mxu0 0.0
      %3893 = vmatpush.msra.mxu0 0.0
      %3894 = vmatpush.msra.mxu0 0.0
      %3895 = vmatpush.msra.mxu0 %v3876
      %3896 = vmatpush.msra.mxu0 %v3875
      %3897 = vmatpush.msra.mxu0 %v3874
      %3898 = vmatpush.msra.mxu0 %v3873
      %3899 = vmatpush.msra.mxu0 %v3872
      %3900 = vmatpush.msra.mxu0 %v3871
      %3901 = vmatpush.msra.mxu0 %v3870
      %3902 = vmatpush.msra.mxu0 %v3869
      %3903 = vmatmul.f32.gmra.mxu0 %v3882
      %v3904 = vpop.f32.mrf.mxu0
      %v3905 = vadd.f32 %v3879, %v3904
      %3906 = vmatmul.f32.gmra.mxu0 %v3885
      %v3907 = vpop.f32.mrf.mxu0
      %v3908 = vadd.f32 %v3879, %v3907
      %3909 = vdwg.mxu0
      %vm3910 = vcmp.gt.f32.partialorder %v3905, 0.0
      %vm3911 = vcmp.gt.f32.partialorder %v3908, 0.0
      %v3912 = vmul.f32 %v3905, 0.2
      %v3913 = vmul.f32 %v3908, 0.2
      %v3914 = vsel %vm3910, %v3905, %v3912
      %v3915 = vsel %vm3911, %v3908, %v3913
      %3916 = vmatpush.msra.mxu0 0.0
      %3917 = vmatpush.msra.mxu0 0.0
      %3918 = vmatpush.msra.mxu0 0.0
      %3919 = vmatpush.msra.mxu0 0.0
      %3920 = vmatpush.msra.mxu0 0.0
      %3921 = vmatpush.msra.mxu0 0.0
      %3922 = vmatpush.msra.mxu0 0.0
      %3923 = vmatpush.msra.mxu0 0.0
      %3924 = vmatpush.msra.mxu0 0.0
      %3925 = vmatpush.msra.mxu0 0.0
      %3926 = vmatpush.msra.mxu0 0.0
      %3927 = vmatpush.msra.mxu0 0.0
      %3928 = vmatpush.msra.mxu0 0.0
      %3929 = vmatpush.msra.mxu0 0.0
      %3930 = vmatpush.msra.mxu0 %v3915
      %3931 = vmatpush.msra.mxu0 %v3914
      %3932 = vmatmul.f32.gmra.mxu0 %v2695
      %v3933 = vpop.f32.mrf.mxu0
      %v3934 = vadd.f32 0.0, %v3933
      %3935 = vmatmul.f32.gmra.mxu0 %v2698
      %v3936 = vpop.f32.mrf.mxu0
      %v3937 = vadd.f32 0.0, %v3936
      %3938 = vmatmul.f32.gmra.mxu0 %v2701
      %v3939 = vpop.f32.mrf.mxu0
      %v3940 = vadd.f32 0.0, %v3939
      %3941 = vmatmul.f32.gmra.mxu0 %v2704
      %v3942 = vpop.f32.mrf.mxu0
      %v3943 = vadd.f32 0.0, %v3942
      %3944 = vmatmul.f32.gmra.mxu0 %v2707
      %v3945 = vpop.f32.mrf.mxu0
      %v3946 = vadd.f32 0.0, %v3945
      %3947 = vmatmul.f32.gmra.mxu0 %v2710
      %v3948 = vpop.f32.mrf.mxu0
      %v3949 = vadd.f32 0.0, %v3948
      %3950 = vmatmul.f32.gmra.mxu0 %v2713
      %v3951 = vpop.f32.mrf.mxu0
      %v3952 = vadd.f32 0.0, %v3951
      %3953 = vmatmul.f32.gmra.mxu0 %v2716
      %v3954 = vpop.f32.mrf.mxu0
      %v3955 = vadd.f32 0.0, %v3954
      %3956 = vmatmul.f32.gmra.mxu0 %v2719
      %v3957 = vpop.f32.mrf.mxu0
      %v3958 = vadd.f32 0.0, %v3957
      %3959 = vmatmul.f32.gmra.mxu0 %v2722
      %v3960 = vpop.f32.mrf.mxu0
      %v3961 = vadd.f32 0.0, %v3960
      %3962 = vmatmul.f32.gmra.mxu0 %v2725
      %v3963 = vpop.f32.mrf.mxu0
      %v3964 = vadd.f32 0.0, %v3963
      %3965 = vmatmul.f32.gmra.mxu0 %v2728
      %v3966 = vpop.f32.mrf.mxu0
      %v3967 = vadd.f32 0.0, %v3966
      %3968 = vmatmul.f32.gmra.mxu0 %v2731
      %v3969 = vpop.f32.mrf.mxu0
      %v3970 = vadd.f32 0.0, %v3969
      %3971 = vmatmul.f32.gmra.mxu0 %v2734
      %v3972 = vpop.f32.mrf.mxu0
      %v3973 = vadd.f32 0.0, %v3972
      %3974 = vmatmul.f32.gmra.mxu0 %v2737
      %v3975 = vpop.f32.mrf.mxu0
      %v3976 = vadd.f32 0.0, %v3975
      %3977 = vmatmul.f32.gmra.mxu0 %v2740
      %v3978 = vpop.f32.mrf.mxu0
      %v3979 = vadd.f32 0.0, %v3978
      %3980 = vdwg.mxu0
      %v3981 = vmul.f32 %v3914, %v3914
      %v3982 = vmul.f32 %v3915, %v3915
      %v3983 = vsel %vm761, %v3981, 0.0
      %3984 = vadd.xlane.f32.xlu0 %v3983
      %v3985 = vpop.xlane.xlu0 %3984
      %v3986 = vsel %vm761, %v3982, 0.0
      %3987 = vadd.xlane.f32.xlu0 %v3986
      %v3988 = vpop.xlane.xlu0 %3987
      %v3989 = vrsqrt.pop %v3985
      %v3990 = vmul.f32 %v3989, %v3985
      %v3991 = vmul.f32 %v3990, %v3989
      %v3992 = vmul.f32 0.5, %v3991
      %v3993 = vsub.f32 1.5, %v3992
      %v3994 = vmul.f32 %v3989, %v3993
      %v3995 = vmul.f32 %v3985, %v3994
      %vm3996 = vcmp.eq.f32.partialorder %v3985, inf
      %v3997 = vsel %vm3996, %v3985, %v3995
      %vm3998 = vcmp.eq.f32.partialorder %v3985, 0.0
      %v3999 = vand.u32 %v3985, 2147483648
      %v4000 = vsel %vm3998, %v3999, %v3997
      %v4001 = vrsqrt.pop %v3988
      %v4002 = vmul.f32 %v4001, %v3988
      %v4003 = vmul.f32 %v4002, %v4001
      %v4004 = vmul.f32 0.5, %v4003
      %v4005 = vsub.f32 1.5, %v4004
      %v4006 = vmul.f32 %v4001, %v4005
      %v4007 = vmul.f32 %v3988, %v4006
      %vm4008 = vcmp.eq.f32.partialorder %v3988, inf
      %v4009 = vsel %vm4008, %v3988, %v4007
      %vm4010 = vcmp.eq.f32.partialorder %v3988, 0.0
      %v4011 = vand.u32 %v3988, 2147483648
      %v4012 = vsel %vm4010, %v4011, %v4009
      %v4013 = vmax.f32 %v4000, 1e-12
      %v4014 = vmax.f32 %v4012, 1e-12
      %v4015 = vrcp.pop %v4013
      %v4016 = vmul.f32 %v4013, %v4015
      %v4017 = vsub.f32 1.0, %v4016
      %v4018 = vmul.f32 %v4015, %v4017
      %v4019 = vadd.f32 %v4015, %v4018
      %vm4020 = vweird.f32 %v4013
      %vm4021 = vweird.f32 %v4015
      %vm4022 = vmor %vm4020, %vm4021
      %v4023 = vsel %vm4022, %v4015, %v4019
      %v4024 = vand.u32 2147483647, %v4013
      %vm4025 = vcmp.eq.f32.partialorder %v4024, 8.507059e+37
      %v4026 = vand.u32 %v4013, 2147483648
      %v4027 = vor.u32 1.1754944e-38, %v4026
      %v4028 = vsel %vm4025, %v4027, %v4023
      %v4029 = vmul.f32 %v3914, %v4028
      %v4030 = vrcp.pop %v4014
      %v4031 = vmul.f32 %v4014, %v4030
      %v4032 = vsub.f32 1.0, %v4031
      %v4033 = vmul.f32 %v4030, %v4032
      %v4034 = vadd.f32 %v4030, %v4033
      %vm4035 = vweird.f32 %v4014
      %vm4036 = vweird.f32 %v4030
      %vm4037 = vmor %vm4035, %vm4036
      %v4038 = vsel %vm4037, %v4030, %v4034
      %v4039 = vand.u32 2147483647, %v4014
      %vm4040 = vcmp.eq.f32.partialorder %v4039, 8.507059e+37
      %v4041 = vand.u32 %v4014, 2147483648
      %v4042 = vor.u32 1.1754944e-38, %v4041
      %v4043 = vsel %vm4040, %v4042, %v4038
      %v4044 = vmul.f32 %v3915, %v4043
      %v4045 = vmul.f32 %v3934, %v3934
      %v4046 = vmul.f32 %v3937, %v3937
      %v4047 = vmul.f32 %v3940, %v3940
      %v4048 = vmul.f32 %v3943, %v3943
      %v4049 = vmul.f32 %v3946, %v3946
      %v4050 = vmul.f32 %v3949, %v3949
      %v4051 = vmul.f32 %v3952, %v3952
      %v4052 = vmul.f32 %v3955, %v3955
      %v4053 = vmul.f32 %v3958, %v3958
      %v4054 = vmul.f32 %v3961, %v3961
      %v4055 = vmul.f32 %v3964, %v3964
      %v4056 = vmul.f32 %v3967, %v3967
      %v4057 = vmul.f32 %v3970, %v3970
      %v4058 = vmul.f32 %v3973, %v3973
      %v4059 = vmul.f32 %v3976, %v3976
      %v4060 = vmul.f32 %v3979, %v3979
      %v4061 = vsel %vm761, %v4045, 0.0
      %4062 = vadd.xlane.f32.xlu0 %v4061
      %v4063 = vpop.xlane.xlu0 %4062
      %v4064 = vsel %vm761, %v4046, 0.0
      %4065 = vadd.xlane.f32.xlu0 %v4064
      %v4066 = vpop.xlane.xlu0 %4065
      %v4067 = vsel %vm761, %v4047, 0.0
      %4068 = vadd.xlane.f32.xlu0 %v4067
      %v4069 = vpop.xlane.xlu0 %4068
      %v4070 = vsel %vm761, %v4048, 0.0
      %4071 = vadd.xlane.f32.xlu0 %v4070
      %v4072 = vpop.xlane.xlu0 %4071
      %v4073 = vsel %vm761, %v4049, 0.0
      %4074 = vadd.xlane.f32.xlu0 %v4073
      %v4075 = vpop.xlane.xlu0 %4074
      %v4076 = vsel %vm761, %v4050, 0.0
      %4077 = vadd.xlane.f32.xlu0 %v4076
      %v4078 = vpop.xlane.xlu0 %4077
      %v4079 = vsel %vm761, %v4051, 0.0
      %4080 = vadd.xlane.f32.xlu0 %v4079
      %v4081 = vpop.xlane.xlu0 %4080
      %v4082 = vsel %vm761, %v4052, 0.0
      %4083 = vadd.xlane.f32.xlu0 %v4082
      %v4084 = vpop.xlane.xlu0 %4083
      %v4085 = vsel %vm761, %v4053, 0.0
      %4086 = vadd.xlane.f32.xlu0 %v4085
      %v4087 = vpop.xlane.xlu0 %4086
      %v4088 = vsel %vm761, %v4054, 0.0
      %4089 = vadd.xlane.f32.xlu0 %v4088
      %v4090 = vpop.xlane.xlu0 %4089
      %v4091 = vsel %vm761, %v4055, 0.0
      %4092 = vadd.xlane.f32.xlu0 %v4091
      %v4093 = vpop.xlane.xlu0 %4092
      %v4094 = vsel %vm761, %v4056, 0.0
      %4095 = vadd.xlane.f32.xlu0 %v4094
      %v4096 = vpop.xlane.xlu0 %4095
      %v4097 = vsel %vm761, %v4057, 0.0
      %4098 = vadd.xlane.f32.xlu0 %v4097
      %v4099 = vpop.xlane.xlu0 %4098
      %v4100 = vsel %vm761, %v4058, 0.0
      %4101 = vadd.xlane.f32.xlu0 %v4100
      %v4102 = vpop.xlane.xlu0 %4101
      %v4103 = vsel %vm761, %v4059, 0.0
      %4104 = vadd.xlane.f32.xlu0 %v4103
      %v4105 = vpop.xlane.xlu0 %4104
      %v4106 = vsel %vm761, %v4060, 0.0
      %4107 = vadd.xlane.f32.xlu0 %v4106
      %v4108 = vpop.xlane.xlu0 %4107
      %v4109 = vrsqrt.pop %v4063
      %v4110 = vmul.f32 %v4109, %v4063
      %v4111 = vmul.f32 %v4110, %v4109
      %v4112 = vmul.f32 0.5, %v4111
      %v4113 = vsub.f32 1.5, %v4112
      %v4114 = vmul.f32 %v4109, %v4113
      %v4115 = vmul.f32 %v4063, %v4114
      %vm4116 = vcmp.eq.f32.partialorder %v4063, inf
      %v4117 = vsel %vm4116, %v4063, %v4115
      %vm4118 = vcmp.eq.f32.partialorder %v4063, 0.0
      %v4119 = vand.u32 %v4063, 2147483648
      %v4120 = vsel %vm4118, %v4119, %v4117
      %v4121 = vrsqrt.pop %v4066
      %v4122 = vmul.f32 %v4121, %v4066
      %v4123 = vmul.f32 %v4122, %v4121
      %v4124 = vmul.f32 0.5, %v4123
      %v4125 = vsub.f32 1.5, %v4124
      %v4126 = vmul.f32 %v4121, %v4125
      %v4127 = vmul.f32 %v4066, %v4126
      %vm4128 = vcmp.eq.f32.partialorder %v4066, inf
      %v4129 = vsel %vm4128, %v4066, %v4127
      %vm4130 = vcmp.eq.f32.partialorder %v4066, 0.0
      %v4131 = vand.u32 %v4066, 2147483648
      %v4132 = vsel %vm4130, %v4131, %v4129
      %v4133 = vrsqrt.pop %v4069
      %v4134 = vmul.f32 %v4133, %v4069
      %v4135 = vmul.f32 %v4134, %v4133
      %v4136 = vmul.f32 0.5, %v4135
      %v4137 = vsub.f32 1.5, %v4136
      %v4138 = vmul.f32 %v4133, %v4137
      %v4139 = vmul.f32 %v4069, %v4138
      %vm4140 = vcmp.eq.f32.partialorder %v4069, inf
      %v4141 = vsel %vm4140, %v4069, %v4139
      %vm4142 = vcmp.eq.f32.partialorder %v4069, 0.0
      %v4143 = vand.u32 %v4069, 2147483648
      %v4144 = vsel %vm4142, %v4143, %v4141
      %v4145 = vrsqrt.pop %v4072
      %v4146 = vmul.f32 %v4145, %v4072
      %v4147 = vmul.f32 %v4146, %v4145
      %v4148 = vmul.f32 0.5, %v4147
      %v4149 = vsub.f32 1.5, %v4148
      %v4150 = vmul.f32 %v4145, %v4149
      %v4151 = vmul.f32 %v4072, %v4150
      %vm4152 = vcmp.eq.f32.partialorder %v4072, inf
      %v4153 = vsel %vm4152, %v4072, %v4151
      %vm4154 = vcmp.eq.f32.partialorder %v4072, 0.0
      %v4155 = vand.u32 %v4072, 2147483648
      %v4156 = vsel %vm4154, %v4155, %v4153
      %v4157 = vrsqrt.pop %v4075
      %v4158 = vmul.f32 %v4157, %v4075
      %v4159 = vmul.f32 %v4158, %v4157
      %v4160 = vmul.f32 0.5, %v4159
      %v4161 = vsub.f32 1.5, %v4160
      %v4162 = vmul.f32 %v4157, %v4161
      %v4163 = vmul.f32 %v4075, %v4162
      %vm4164 = vcmp.eq.f32.partialorder %v4075, inf
      %v4165 = vsel %vm4164, %v4075, %v4163
      %vm4166 = vcmp.eq.f32.partialorder %v4075, 0.0
      %v4167 = vand.u32 %v4075, 2147483648
      %v4168 = vsel %vm4166, %v4167, %v4165
      %v4169 = vrsqrt.pop %v4078
      %v4170 = vmul.f32 %v4169, %v4078
      %v4171 = vmul.f32 %v4170, %v4169
      %v4172 = vmul.f32 0.5, %v4171
      %v4173 = vsub.f32 1.5, %v4172
      %v4174 = vmul.f32 %v4169, %v4173
      %v4175 = vmul.f32 %v4078, %v4174
      %vm4176 = vcmp.eq.f32.partialorder %v4078, inf
      %v4177 = vsel %vm4176, %v4078, %v4175
      %vm4178 = vcmp.eq.f32.partialorder %v4078, 0.0
      %v4179 = vand.u32 %v4078, 2147483648
      %v4180 = vsel %vm4178, %v4179, %v4177
      %v4181 = vrsqrt.pop %v4081
      %v4182 = vmul.f32 %v4181, %v4081
      %v4183 = vmul.f32 %v4182, %v4181
      %v4184 = vmul.f32 0.5, %v4183
      %v4185 = vsub.f32 1.5, %v4184
      %v4186 = vmul.f32 %v4181, %v4185
      %v4187 = vmul.f32 %v4081, %v4186
      %vm4188 = vcmp.eq.f32.partialorder %v4081, inf
      %v4189 = vsel %vm4188, %v4081, %v4187
      %vm4190 = vcmp.eq.f32.partialorder %v4081, 0.0
      %v4191 = vand.u32 %v4081, 2147483648
      %v4192 = vsel %vm4190, %v4191, %v4189
      %v4193 = vrsqrt.pop %v4084
      %v4194 = vmul.f32 %v4193, %v4084
      %v4195 = vmul.f32 %v4194, %v4193
      %v4196 = vmul.f32 0.5, %v4195
      %v4197 = vsub.f32 1.5, %v4196
      %v4198 = vmul.f32 %v4193, %v4197
      %v4199 = vmul.f32 %v4084, %v4198
      %vm4200 = vcmp.eq.f32.partialorder %v4084, inf
      %v4201 = vsel %vm4200, %v4084, %v4199
      %vm4202 = vcmp.eq.f32.partialorder %v4084, 0.0
      %v4203 = vand.u32 %v4084, 2147483648
      %v4204 = vsel %vm4202, %v4203, %v4201
      %v4205 = vrsqrt.pop %v4087
      %v4206 = vmul.f32 %v4205, %v4087
      %v4207 = vmul.f32 %v4206, %v4205
      %v4208 = vmul.f32 0.5, %v4207
      %v4209 = vsub.f32 1.5, %v4208
      %v4210 = vmul.f32 %v4205, %v4209
      %v4211 = vmul.f32 %v4087, %v4210
      %vm4212 = vcmp.eq.f32.partialorder %v4087, inf
      %v4213 = vsel %vm4212, %v4087, %v4211
      %vm4214 = vcmp.eq.f32.partialorder %v4087, 0.0
      %v4215 = vand.u32 %v4087, 2147483648
      %v4216 = vsel %vm4214, %v4215, %v4213
      %v4217 = vrsqrt.pop %v4090
      %v4218 = vmul.f32 %v4217, %v4090
      %v4219 = vmul.f32 %v4218, %v4217
      %v4220 = vmul.f32 0.5, %v4219
      %v4221 = vsub.f32 1.5, %v4220
      %v4222 = vmul.f32 %v4217, %v4221
      %v4223 = vmul.f32 %v4090, %v4222
      %vm4224 = vcmp.eq.f32.partialorder %v4090, inf
      %v4225 = vsel %vm4224, %v4090, %v4223
      %vm4226 = vcmp.eq.f32.partialorder %v4090, 0.0
      %v4227 = vand.u32 %v4090, 2147483648
      %v4228 = vsel %vm4226, %v4227, %v4225
      %v4229 = vrsqrt.pop %v4093
      %v4230 = vmul.f32 %v4229, %v4093
      %v4231 = vmul.f32 %v4230, %v4229
      %v4232 = vmul.f32 0.5, %v4231
      %v4233 = vsub.f32 1.5, %v4232
      %v4234 = vmul.f32 %v4229, %v4233
      %v4235 = vmul.f32 %v4093, %v4234
      %vm4236 = vcmp.eq.f32.partialorder %v4093, inf
      %v4237 = vsel %vm4236, %v4093, %v4235
      %vm4238 = vcmp.eq.f32.partialorder %v4093, 0.0
      %v4239 = vand.u32 %v4093, 2147483648
      %v4240 = vsel %vm4238, %v4239, %v4237
      %v4241 = vrsqrt.pop %v4096
      %v4242 = vmul.f32 %v4241, %v4096
      %v4243 = vmul.f32 %v4242, %v4241
      %v4244 = vmul.f32 0.5, %v4243
      %v4245 = vsub.f32 1.5, %v4244
      %v4246 = vmul.f32 %v4241, %v4245
      %v4247 = vmul.f32 %v4096, %v4246
      %vm4248 = vcmp.eq.f32.partialorder %v4096, inf
      %v4249 = vsel %vm4248, %v4096, %v4247
      %vm4250 = vcmp.eq.f32.partialorder %v4096, 0.0
      %v4251 = vand.u32 %v4096, 2147483648
      %v4252 = vsel %vm4250, %v4251, %v4249
      %v4253 = vrsqrt.pop %v4099
      %v4254 = vmul.f32 %v4253, %v4099
      %v4255 = vmul.f32 %v4254, %v4253
      %v4256 = vmul.f32 0.5, %v4255
      %v4257 = vsub.f32 1.5, %v4256
      %v4258 = vmul.f32 %v4253, %v4257
      %v4259 = vmul.f32 %v4099, %v4258
      %vm4260 = vcmp.eq.f32.partialorder %v4099, inf
      %v4261 = vsel %vm4260, %v4099, %v4259
      %vm4262 = vcmp.eq.f32.partialorder %v4099, 0.0
      %v4263 = vand.u32 %v4099, 2147483648
      %v4264 = vsel %vm4262, %v4263, %v4261
      %v4265 = vrsqrt.pop %v4102
      %v4266 = vmul.f32 %v4265, %v4102
      %v4267 = vmul.f32 %v4266, %v4265
      %v4268 = vmul.f32 0.5, %v4267
      %v4269 = vsub.f32 1.5, %v4268
      %v4270 = vmul.f32 %v4265, %v4269
      %v4271 = vmul.f32 %v4102, %v4270
      %vm4272 = vcmp.eq.f32.partialorder %v4102, inf
      %v4273 = vsel %vm4272, %v4102, %v4271
      %vm4274 = vcmp.eq.f32.partialorder %v4102, 0.0
      %v4275 = vand.u32 %v4102, 2147483648
      %v4276 = vsel %vm4274, %v4275, %v4273
      %v4277 = vrsqrt.pop %v4105
      %v4278 = vmul.f32 %v4277, %v4105
      %v4279 = vmul.f32 %v4278, %v4277
      %v4280 = vmul.f32 0.5, %v4279
      %v4281 = vsub.f32 1.5, %v4280
      %v4282 = vmul.f32 %v4277, %v4281
      %v4283 = vmul.f32 %v4105, %v4282
      %vm4284 = vcmp.eq.f32.partialorder %v4105, inf
      %v4285 = vsel %vm4284, %v4105, %v4283
      %vm4286 = vcmp.eq.f32.partialorder %v4105, 0.0
      %v4287 = vand.u32 %v4105, 2147483648
      %v4288 = vsel %vm4286, %v4287, %v4285
      %v4289 = vrsqrt.pop %v4108
      %v4290 = vmul.f32 %v4289, %v4108
      %v4291 = vmul.f32 %v4290, %v4289
      %v4292 = vmul.f32 0.5, %v4291
      %v4293 = vsub.f32 1.5, %v4292
      %v4294 = vmul.f32 %v4289, %v4293
      %v4295 = vmul.f32 %v4108, %v4294
      %vm4296 = vcmp.eq.f32.partialorder %v4108, inf
      %v4297 = vsel %vm4296, %v4108, %v4295
      %vm4298 = vcmp.eq.f32.partialorder %v4108, 0.0
      %v4299 = vand.u32 %v4108, 2147483648
      %v4300 = vsel %vm4298, %v4299, %v4297
      %v4301 = vmax.f32 %v4120, 1e-12
      %v4302 = vmax.f32 %v4132, 1e-12
      %v4303 = vmax.f32 %v4144, 1e-12
      %v4304 = vmax.f32 %v4156, 1e-12
      %v4305 = vmax.f32 %v4168, 1e-12
      %v4306 = vmax.f32 %v4180, 1e-12
      %v4307 = vmax.f32 %v4192, 1e-12
      %v4308 = vmax.f32 %v4204, 1e-12
      %v4309 = vmax.f32 %v4216, 1e-12
      %v4310 = vmax.f32 %v4228, 1e-12
      %v4311 = vmax.f32 %v4240, 1e-12
      %v4312 = vmax.f32 %v4252, 1e-12
      %v4313 = vmax.f32 %v4264, 1e-12
      %v4314 = vmax.f32 %v4276, 1e-12
      %v4315 = vmax.f32 %v4288, 1e-12
      %v4316 = vmax.f32 %v4300, 1e-12
      %v4317 = vrcp.pop %v4301
      %v4318 = vmul.f32 %v4301, %v4317
      %v4319 = vsub.f32 1.0, %v4318
      %v4320 = vmul.f32 %v4317, %v4319
      %v4321 = vadd.f32 %v4317, %v4320
      %vm4322 = vweird.f32 %v4301
      %vm4323 = vweird.f32 %v4317
      %vm4324 = vmor %vm4322, %vm4323
      %v4325 = vsel %vm4324, %v4317, %v4321
      %v4326 = vand.u32 2147483647, %v4301
      %vm4327 = vcmp.eq.f32.partialorder %v4326, 8.507059e+37
      %v4328 = vand.u32 %v4301, 2147483648
      %v4329 = vor.u32 1.1754944e-38, %v4328
      %v4330 = vsel %vm4327, %v4329, %v4325
      %v4331 = vmul.f32 %v3934, %v4330
      %v4332 = vrcp.pop %v4302
      %v4333 = vmul.f32 %v4302, %v4332
      %v4334 = vsub.f32 1.0, %v4333
      %v4335 = vmul.f32 %v4332, %v4334
      %v4336 = vadd.f32 %v4332, %v4335
      %vm4337 = vweird.f32 %v4302
      %vm4338 = vweird.f32 %v4332
      %vm4339 = vmor %vm4337, %vm4338
      %v4340 = vsel %vm4339, %v4332, %v4336
      %v4341 = vand.u32 2147483647, %v4302
      %vm4342 = vcmp.eq.f32.partialorder %v4341, 8.507059e+37
      %v4343 = vand.u32 %v4302, 2147483648
      %v4344 = vor.u32 1.1754944e-38, %v4343
      %v4345 = vsel %vm4342, %v4344, %v4340
      %v4346 = vmul.f32 %v3937, %v4345
      %v4347 = vrcp.pop %v4303
      %v4348 = vmul.f32 %v4303, %v4347
      %v4349 = vsub.f32 1.0, %v4348
      %v4350 = vmul.f32 %v4347, %v4349
      %v4351 = vadd.f32 %v4347, %v4350
      %vm4352 = vweird.f32 %v4303
      %vm4353 = vweird.f32 %v4347
      %vm4354 = vmor %vm4352, %vm4353
      %v4355 = vsel %vm4354, %v4347, %v4351
      %v4356 = vand.u32 2147483647, %v4303
      %vm4357 = vcmp.eq.f32.partialorder %v4356, 8.507059e+37
      %v4358 = vand.u32 %v4303, 2147483648
      %v4359 = vor.u32 1.1754944e-38, %v4358
      %v4360 = vsel %vm4357, %v4359, %v4355
      %v4361 = vmul.f32 %v3940, %v4360
      %v4362 = vrcp.pop %v4304
      %v4363 = vmul.f32 %v4304, %v4362
      %v4364 = vsub.f32 1.0, %v4363
      %v4365 = vmul.f32 %v4362, %v4364
      %v4366 = vadd.f32 %v4362, %v4365
      %vm4367 = vweird.f32 %v4304
      %vm4368 = vweird.f32 %v4362
      %vm4369 = vmor %vm4367, %vm4368
      %v4370 = vsel %vm4369, %v4362, %v4366
      %v4371 = vand.u32 2147483647, %v4304
      %vm4372 = vcmp.eq.f32.partialorder %v4371, 8.507059e+37
      %v4373 = vand.u32 %v4304, 2147483648
      %v4374 = vor.u32 1.1754944e-38, %v4373
      %v4375 = vsel %vm4372, %v4374, %v4370
      %v4376 = vmul.f32 %v3943, %v4375
      %v4377 = vrcp.pop %v4305
      %v4378 = vmul.f32 %v4305, %v4377
      %v4379 = vsub.f32 1.0, %v4378
      %v4380 = vmul.f32 %v4377, %v4379
      %v4381 = vadd.f32 %v4377, %v4380
      %vm4382 = vweird.f32 %v4305
      %vm4383 = vweird.f32 %v4377
      %vm4384 = vmor %vm4382, %vm4383
      %v4385 = vsel %vm4384, %v4377, %v4381
      %v4386 = vand.u32 2147483647, %v4305
      %vm4387 = vcmp.eq.f32.partialorder %v4386, 8.507059e+37
      %v4388 = vand.u32 %v4305, 2147483648
      %v4389 = vor.u32 1.1754944e-38, %v4388
      %v4390 = vsel %vm4387, %v4389, %v4385
      %v4391 = vmul.f32 %v3946, %v4390
      %v4392 = vrcp.pop %v4306
      %v4393 = vmul.f32 %v4306, %v4392
      %v4394 = vsub.f32 1.0, %v4393
      %v4395 = vmul.f32 %v4392, %v4394
      %v4396 = vadd.f32 %v4392, %v4395
      %vm4397 = vweird.f32 %v4306
      %vm4398 = vweird.f32 %v4392
      %vm4399 = vmor %vm4397, %vm4398
      %v4400 = vsel %vm4399, %v4392, %v4396
      %v4401 = vand.u32 2147483647, %v4306
      %vm4402 = vcmp.eq.f32.partialorder %v4401, 8.507059e+37
      %v4403 = vand.u32 %v4306, 2147483648
      %v4404 = vor.u32 1.1754944e-38, %v4403
      %v4405 = vsel %vm4402, %v4404, %v4400
      %v4406 = vmul.f32 %v3949, %v4405
      %v4407 = vrcp.pop %v4307
      %v4408 = vmul.f32 %v4307, %v4407
      %v4409 = vsub.f32 1.0, %v4408
      %v4410 = vmul.f32 %v4407, %v4409
      %v4411 = vadd.f32 %v4407, %v4410
      %vm4412 = vweird.f32 %v4307
      %vm4413 = vweird.f32 %v4407
      %vm4414 = vmor %vm4412, %vm4413
      %v4415 = vsel %vm4414, %v4407, %v4411
      %v4416 = vand.u32 2147483647, %v4307
      %vm4417 = vcmp.eq.f32.partialorder %v4416, 8.507059e+37
      %v4418 = vand.u32 %v4307, 2147483648
      %v4419 = vor.u32 1.1754944e-38, %v4418
      %v4420 = vsel %vm4417, %v4419, %v4415
      %v4421 = vmul.f32 %v3952, %v4420
      %v4422 = vrcp.pop %v4308
      %v4423 = vmul.f32 %v4308, %v4422
      %v4424 = vsub.f32 1.0, %v4423
      %v4425 = vmul.f32 %v4422, %v4424
      %v4426 = vadd.f32 %v4422, %v4425
      %vm4427 = vweird.f32 %v4308
      %vm4428 = vweird.f32 %v4422
      %vm4429 = vmor %vm4427, %vm4428
      %v4430 = vsel %vm4429, %v4422, %v4426
      %v4431 = vand.u32 2147483647, %v4308
      %vm4432 = vcmp.eq.f32.partialorder %v4431, 8.507059e+37
      %v4433 = vand.u32 %v4308, 2147483648
      %v4434 = vor.u32 1.1754944e-38, %v4433
      %v4435 = vsel %vm4432, %v4434, %v4430
      %v4436 = vmul.f32 %v3955, %v4435
      %v4437 = vrcp.pop %v4309
      %v4438 = vmul.f32 %v4309, %v4437
      %v4439 = vsub.f32 1.0, %v4438
      %v4440 = vmul.f32 %v4437, %v4439
      %v4441 = vadd.f32 %v4437, %v4440
      %vm4442 = vweird.f32 %v4309
      %vm4443 = vweird.f32 %v4437
      %vm4444 = vmor %vm4442, %vm4443
      %v4445 = vsel %vm4444, %v4437, %v4441
      %v4446 = vand.u32 2147483647, %v4309
      %vm4447 = vcmp.eq.f32.partialorder %v4446, 8.507059e+37
      %v4448 = vand.u32 %v4309, 2147483648
      %v4449 = vor.u32 1.1754944e-38, %v4448
      %v4450 = vsel %vm4447, %v4449, %v4445
      %v4451 = vmul.f32 %v3958, %v4450
      %v4452 = vrcp.pop %v4310
      %v4453 = vmul.f32 %v4310, %v4452
      %v4454 = vsub.f32 1.0, %v4453
      %v4455 = vmul.f32 %v4452, %v4454
      %v4456 = vadd.f32 %v4452, %v4455
      %vm4457 = vweird.f32 %v4310
      %vm4458 = vweird.f32 %v4452
      %vm4459 = vmor %vm4457, %vm4458
      %v4460 = vsel %vm4459, %v4452, %v4456
      %v4461 = vand.u32 2147483647, %v4310
      %vm4462 = vcmp.eq.f32.partialorder %v4461, 8.507059e+37
      %v4463 = vand.u32 %v4310, 2147483648
      %v4464 = vor.u32 1.1754944e-38, %v4463
      %v4465 = vsel %vm4462, %v4464, %v4460
      %v4466 = vmul.f32 %v3961, %v4465
      %v4467 = vrcp.pop %v4311
      %v4468 = vmul.f32 %v4311, %v4467
      %v4469 = vsub.f32 1.0, %v4468
      %v4470 = vmul.f32 %v4467, %v4469
      %v4471 = vadd.f32 %v4467, %v4470
      %vm4472 = vweird.f32 %v4311
      %vm4473 = vweird.f32 %v4467
      %vm4474 = vmor %vm4472, %vm4473
      %v4475 = vsel %vm4474, %v4467, %v4471
      %v4476 = vand.u32 2147483647, %v4311
      %vm4477 = vcmp.eq.f32.partialorder %v4476, 8.507059e+37
      %v4478 = vand.u32 %v4311, 2147483648
      %v4479 = vor.u32 1.1754944e-38, %v4478
      %v4480 = vsel %vm4477, %v4479, %v4475
      %v4481 = vmul.f32 %v3964, %v4480
      %v4482 = vrcp.pop %v4312
      %v4483 = vmul.f32 %v4312, %v4482
      %v4484 = vsub.f32 1.0, %v4483
      %v4485 = vmul.f32 %v4482, %v4484
      %v4486 = vadd.f32 %v4482, %v4485
      %vm4487 = vweird.f32 %v4312
      %vm4488 = vweird.f32 %v4482
      %vm4489 = vmor %vm4487, %vm4488
      %v4490 = vsel %vm4489, %v4482, %v4486
      %v4491 = vand.u32 2147483647, %v4312
      %vm4492 = vcmp.eq.f32.partialorder %v4491, 8.507059e+37
      %v4493 = vand.u32 %v4312, 2147483648
      %v4494 = vor.u32 1.1754944e-38, %v4493
      %v4495 = vsel %vm4492, %v4494, %v4490
      %v4496 = vmul.f32 %v3967, %v4495
      %v4497 = vrcp.pop %v4313
      %v4498 = vmul.f32 %v4313, %v4497
      %v4499 = vsub.f32 1.0, %v4498
      %v4500 = vmul.f32 %v4497, %v4499
      %v4501 = vadd.f32 %v4497, %v4500
      %vm4502 = vweird.f32 %v4313
      %vm4503 = vweird.f32 %v4497
      %vm4504 = vmor %vm4502, %vm4503
      %v4505 = vsel %vm4504, %v4497, %v4501
      %v4506 = vand.u32 2147483647, %v4313
      %vm4507 = vcmp.eq.f32.partialorder %v4506, 8.507059e+37
      %v4508 = vand.u32 %v4313, 2147483648
      %v4509 = vor.u32 1.1754944e-38, %v4508
      %v4510 = vsel %vm4507, %v4509, %v4505
      %v4511 = vmul.f32 %v3970, %v4510
      %v4512 = vrcp.pop %v4314
      %v4513 = vmul.f32 %v4314, %v4512
      %v4514 = vsub.f32 1.0, %v4513
      %v4515 = vmul.f32 %v4512, %v4514
      %v4516 = vadd.f32 %v4512, %v4515
      %vm4517 = vweird.f32 %v4314
      %vm4518 = vweird.f32 %v4512
      %vm4519 = vmor %vm4517, %vm4518
      %v4520 = vsel %vm4519, %v4512, %v4516
      %v4521 = vand.u32 2147483647, %v4314
      %vm4522 = vcmp.eq.f32.partialorder %v4521, 8.507059e+37
      %v4523 = vand.u32 %v4314, 2147483648
      %v4524 = vor.u32 1.1754944e-38, %v4523
      %v4525 = vsel %vm4522, %v4524, %v4520
      %v4526 = vmul.f32 %v3973, %v4525
      %v4527 = vrcp.pop %v4315
      %v4528 = vmul.f32 %v4315, %v4527
      %v4529 = vsub.f32 1.0, %v4528
      %v4530 = vmul.f32 %v4527, %v4529
      %v4531 = vadd.f32 %v4527, %v4530
      %vm4532 = vweird.f32 %v4315
      %vm4533 = vweird.f32 %v4527
      %vm4534 = vmor %vm4532, %vm4533
      %v4535 = vsel %vm4534, %v4527, %v4531
      %v4536 = vand.u32 2147483647, %v4315
      %vm4537 = vcmp.eq.f32.partialorder %v4536, 8.507059e+37
      %v4538 = vand.u32 %v4315, 2147483648
      %v4539 = vor.u32 1.1754944e-38, %v4538
      %v4540 = vsel %vm4537, %v4539, %v4535
      %v4541 = vmul.f32 %v3976, %v4540
      %v4542 = vrcp.pop %v4316
      %v4543 = vmul.f32 %v4316, %v4542
      %v4544 = vsub.f32 1.0, %v4543
      %v4545 = vmul.f32 %v4542, %v4544
      %v4546 = vadd.f32 %v4542, %v4545
      %vm4547 = vweird.f32 %v4316
      %vm4548 = vweird.f32 %v4542
      %vm4549 = vmor %vm4547, %vm4548
      %v4550 = vsel %vm4549, %v4542, %v4546
      %v4551 = vand.u32 2147483647, %v4316
      %vm4552 = vcmp.eq.f32.partialorder %v4551, 8.507059e+37
      %v4553 = vand.u32 %v4316, 2147483648
      %v4554 = vor.u32 1.1754944e-38, %v4553
      %v4555 = vsel %vm4552, %v4554, %v4550
      %v4556 = vmul.f32 %v3979, %v4555
      %v4558 = vsel %vm761, %v4029, 0
      %v4561 = vsel %vm761, %v4044, 0
      %v4564 = vsel %vm761, %v4331, 0
      %v4567 = vsel %vm761, %v4346, 0
      %v4570 = vsel %vm761, %v4361, 0
      %v4573 = vsel %vm761, %v4376, 0
      %v4576 = vsel %vm761, %v4391, 0
      %v4579 = vsel %vm761, %v4406, 0
      %v4582 = vsel %vm761, %v4421, 0
      %v4585 = vsel %vm761, %v4436, 0
      %v4588 = vsel %vm761, %v4451, 0
      %v4591 = vsel %vm761, %v4466, 0
      %v4594 = vsel %vm761, %v4481, 0
      %v4597 = vsel %vm761, %v4496, 0
      %v4600 = vsel %vm761, %v4511, 0
      %v4603 = vsel %vm761, %v4526, 0
      %v4606 = vsel %vm761, %v4541, 0
      %v4609 = vsel %vm761, %v4556, 0
      %4611 = vmatpush.xpose.msra.mxu0 %v4609
      %4612 = vmatpush.xpose.msra.mxu0 %v4606
      %4613 = vmatpush.xpose.msra.mxu0 %v4603
      %4614 = vmatpush.xpose.msra.mxu0 %v4600
      %4615 = vmatpush.xpose.msra.mxu0 %v4597
      %4616 = vmatpush.xpose.msra.mxu0 %v4594
      %4617 = vmatpush.xpose.msra.mxu0 %v4591
      %4618 = vmatpush.xpose.msra.mxu0 %v4588
      %4619 = vmatpush.xpose.msra.mxu0 %v4585
      %4620 = vmatpush.xpose.msra.mxu0 %v4582
      %4621 = vmatpush.xpose.msra.mxu0 %v4579
      %4622 = vmatpush.xpose.msra.mxu0 %v4576
      %4623 = vmatpush.xpose.msra.mxu0 %v4573
      %4624 = vmatpush.xpose.msra.mxu0 %v4570
      %4625 = vmatpush.xpose.msra.mxu0 %v4567
      %4626 = vmatpush.xpose.msra.mxu0 %v4564
      %4627 = vmatmul.f32.gmra.mxu0 %v4558
      %v4628 = vpop.f32.mrf.mxu0
      %v4629 = vadd.f32 0.0, %v4628
      %4630 = vmatmul.f32.gmra.mxu0 %v4561
      %v4631 = vpop.f32.mrf.mxu0
      %v4632 = vadd.f32 0.0, %v4631
      %4633 = vdwg.mxu0
      %s4634 = scalar_lea.vmem %s474, 16
      %4635 = vst [vmem:[%s4634] sm:$0xff] %v4629
      %4636 = vst [vmem:[%s4634 + $0x8] sm:$0xff] %v4632
      %v4638 = vsel %vm761, %v3914, 0
      %v4641 = vsel %vm761, %v3915, 0
      %v4644 = vsel %vm761, %v2996, 0
      %v4647 = vsel %vm761, %v2997, 0
      %v4650 = vsel %vm761, %v2998, 0
      %v4653 = vsel %vm761, %v2999, 0
      %v4656 = vsel %vm761, %v3000, 0
      %v4659 = vsel %vm761, %v3001, 0
      %v4662 = vsel %vm761, %v3002, 0
      %v4665 = vsel %vm761, %v3003, 0
      %v4668 = vsel %vm761, %v3004, 0
      %v4671 = vsel %vm761, %v3005, 0
      %v4674 = vsel %vm761, %v3006, 0
      %v4677 = vsel %vm761, %v3007, 0
      %v4680 = vsel %vm761, %v3008, 0
      %v4683 = vsel %vm761, %v3009, 0
      %v4686 = vsel %vm761, %v3010, 0
      %v4689 = vsel %vm761, %v3011, 0
      %4691 = vmatpush.xpose.msra.mxu0 %v4689
      %4692 = vmatpush.xpose.msra.mxu0 %v4686
      %4693 = vmatpush.xpose.msra.mxu0 %v4683
      %4694 = vmatpush.xpose.msra.mxu0 %v4680
      %4695 = vmatpush.xpose.msra.mxu0 %v4677
      %4696 = vmatpush.xpose.msra.mxu0 %v4674
      %4697 = vmatpush.xpose.msra.mxu0 %v4671
      %4698 = vmatpush.xpose.msra.mxu0 %v4668
      %4699 = vmatpush.xpose.msra.mxu0 %v4665
      %4700 = vmatpush.xpose.msra.mxu0 %v4662
      %4701 = vmatpush.xpose.msra.mxu0 %v4659
      %4702 = vmatpush.xpose.msra.mxu0 %v4656
      %4703 = vmatpush.xpose.msra.mxu0 %v4653
      %4704 = vmatpush.xpose.msra.mxu0 %v4650
      %4705 = vmatpush.xpose.msra.mxu0 %v4647
      %4706 = vmatpush.xpose.msra.mxu0 %v4644
      %4707 = vmatmul.f32.gmra.mxu0 %v4638
      %v4708 = vpop.f32.mrf.mxu0
      %v4709 = vadd.f32 0.0, %v4708
      %4710 = vmatmul.f32.gmra.mxu0 %v4641
      %v4711 = vpop.f32.mrf.mxu0
      %v4712 = vadd.f32 0.0, %v4711
      %4713 = vdwg.mxu0
      %s4714 = scalar_lea.vmem %s479, 16
      %4715 = vst [vmem:[%s4714] sm:$0xff] %v4709
      %4716 = vst [vmem:[%s4714 + $0x8] sm:$0xff] %v4712
      %v4717 = vstv %s3693
      %4718 = vst [vmem:[%s483] sm:$0xff] %v4717
      %p4719 = scmp.lt.s32.totalorder %s25, 1
      %s4720 = scalar_select %p4719, %s25, 1
      %s4721 = smul.addr %s4720, 4
      %s4722 = smul.addr %s4721, 8
      %s4723 = scalar_lea.vmem %s11, %s4722
      %p4724 = scmp.lt.s32.totalorder %s25, 1
      %s4725 = scalar_select %p4724, %s25, 1
      %s4726 = smul.addr %s4725, 4
      %s4727 = smul.addr %s4726, 8
      %s4728 = scalar_lea.vmem %s12, %s4727
      %p4729 = scmp.lt.s32.totalorder %s25, 1
      %s4730 = scalar_select %p4729, %s25, 1
      %s4731 = smul.addr %s4730, 8
      %s4732 = scalar_lea.vmem %s13, %s4731
      // Predicated region
      $region65: #{model_forward.3} parent=63 // pred_check
        %p4733 = pneg %p284
      $region66: #{model_forward.3} parent=63 // pred_check_branch
        %4735 = sbr.rel (%p4733) target = $region68
      $region67: #{model_forward.3} parent=63 // pred_region
        _
      $region68: #{model_forward.3} parent=63 // pred_fallthru
        _
      // Predicated region
      $region69: #{model_forward.3} parent=63 // pred_check
        %p4736 = pneg %p310
      $region70: #{model_forward.3} parent=63 // pred_check_branch
        %4738 = sbr.rel (%p4736) target = $region72
      $region71: #{model_forward.3} parent=63 // pred_region
        _
      $region72: #{model_forward.3} parent=63 // pred_fallthru
        _
      // Predicated region
      $region73: #{model_forward.3} parent=63 // pred_check
        %p4739 = pneg %p336
      $region74: #{model_forward.3} parent=63 // pred_check_branch
        %4741 = sbr.rel (%p4739) target = $region76
      $region75: #{model_forward.3} parent=63 // pred_region
        _
      $region76: #{model_forward.3} parent=63 // pred_fallthru
        _
    $region64: #{model_forward.3} parent=5 // pred_fallthru
      _
    %p4742 = scmp.le.s32.totalorder 2, %s20
    // Predicated region
    $region77: #{model_forward.3} parent=5 // pred_check
      %p4743 = pneg %p4742
    $region78: #{model_forward.3} parent=5 // pred_check_branch
      %4745 = sbr.rel (%p4743) target = $region80
    $region79: #{model_forward.3} parent=5 // pred_region
      %s4746 = ssub.s32 %s20, 2
      // Predicated region
      $region81: #{model_forward.3} parent=79 // pred_check
        %p4747 = pneg %p290
      $region82: #{model_forward.3} parent=79 // pred_check_branch
        %4749 = sbr.rel (%p4747) target = $region84
      $region83: #{model_forward.3} parent=79 // pred_region
        %p4750 = scmp.lt.s32.totalorder %s26, 1
        %s4751 = scalar_select %p4750, %s26, 1
        %s4752 = smul.addr %s4751, 4
        %s4753 = smul.addr %s4752, 8
        %s4754 = scalar_lea.vmem %s11, %s4753
      $region84: #{model_forward.3} parent=79 // pred_fallthru
        _
      // Predicated region
      $region85: #{model_forward.3} parent=79 // pred_check
        %p4755 = pneg %p316
      $region86: #{model_forward.3} parent=79 // pred_check_branch
        %4757 = sbr.rel (%p4755) target = $region88
      $region87: #{model_forward.3} parent=79 // pred_region
        %p4758 = scmp.lt.s32.totalorder %s26, 1
        %s4759 = scalar_select %p4758, %s26, 1
        %s4760 = smul.addr %s4759, 4
        %s4761 = smul.addr %s4760, 8
        %s4762 = scalar_lea.vmem %s12, %s4761
      $region88: #{model_forward.3} parent=79 // pred_fallthru
        _
      // Predicated region
      $region89: #{model_forward.3} parent=79 // pred_check
        %p4763 = pneg %p342
      $region90: #{model_forward.3} parent=79 // pred_check_branch
        %4765 = sbr.rel (%p4763) target = $region92
      $region91: #{model_forward.3} parent=79 // pred_region
        %p4766 = scmp.lt.s32.totalorder %s26, 1
        %s4767 = scalar_select %p4766, %s26, 1
        %s4768 = smul.addr %s4767, 8
        %s4769 = scalar_lea.vmem %s13, %s4768
      $region92: #{model_forward.3} parent=79 // pred_fallthru
        _
    $region80: #{model_forward.3} parent=5 // pred_fallthru
      _
  $region6: #{model_forward.3} parent=0 // loop_footer
    %s24 = sadd.s32 1, %s20
  $region7: #{model_forward.3} parent=0 // loop_footer_branch
    %19 = sbr.rel target = $region3
  $region8: #{model_forward.3} parent=0 // loop_exit
    _

</llo_original>
